<compile_context>
chip_gen: v5e
topology: v5e:2x2
jax: 0.10.0
libtpu: 0.0.40
codegen_flags: <defaults>
</compile_context>

<pallas_src>
import jax
import jax.numpy as jnp
from jax.experimental import pallas as pl
from jax.experimental.pallas import tpu as pltpu

LN_EPS_BLOCK = 1e-6   # MixerBlock norms: partial(nn.LayerNorm, eps=1e-6)
LN_EPS_FINAL = 1e-5   # final nn.LayerNorm default eps


# ----------------------------------------------------------------------------
# Small helpers (plain jnp; usable inside kernels and in the reference)
# ----------------------------------------------------------------------------
def _layernorm(x, gamma, beta, eps):
    mu = jnp.mean(x, axis=-1, keepdims=True)
    var = jnp.mean((x - mu) ** 2, axis=-1, keepdims=True)
    return (x - mu) * jax.lax.rsqrt(var + eps) * gamma + beta


def _gelu(x):
    # TODO(synk): PyTorch nn.GELU default is exact erf-GELU; the tanh
    # approximation is used here (EUP-friendly, max abs diff ~1e-3).
    return jax.nn.gelu(x, approximate=True)


def _pick_tile(n, candidates):
    for c in candidates:
        if n % c == 0:
            return c
    return n


def _nbytes(a):
    return int(a.size) * a.dtype.itemsize


# ----------------------------------------------------------------------------
# Stem: patch embedding (strided conv reduced to a matmul), tiled over rows
# ----------------------------------------------------------------------------
def _stem_kernel(p_ref, w_ref, b_ref, o_ref):
    o_ref[...] = (jnp.dot(p_ref[...], w_ref[...],
                          preferred_element_type=jnp.float32)
                  + b_ref[...]).astype(o_ref.dtype)


def stem(patches, w, b, *, tm=None):
    # patches: (B*P, K), w: (K, D), b: (1, D)
    BP, K = patches.shape
    D = w.shape[1]
    if tm is None:
        tm = _pick_tile(BP, (512, 256, 128, 64, 32, 16, 8))
    return pl.pallas_call(
        _stem_kernel,
        out_shape=jax.ShapeDtypeStruct((BP, D), patches.dtype),
        grid=(BP // tm,),
        in_specs=[pl.BlockSpec((tm, K), lambda i: (i, 0)),
                  pl.BlockSpec((K, D), lambda i: (0, 0)),
                  pl.BlockSpec((1, D), lambda i: (0, 0))],
        out_specs=pl.BlockSpec((tm, D), lambda i: (i, 0)),
        compiler_params=pltpu.CompilerParams(
            dimension_semantics=("parallel",)),
    )(patches, w, b)


# ----------------------------------------------------------------------------
# Fused mixer: ALL MixerBlocks in one pallas_call.
# grid = (batch_tiles, num_blocks); activations resident across the block axis.
# ----------------------------------------------------------------------------
def _fused_mixer_kernel(x_ref, g1_ref, b1_ref, tw1_ref, tb1_ref, tw2_ref,
                        tb2_ref, g2_ref, b2_ref, cw1_ref, cb1_ref, cw2_ref,
                        cb2_ref, o_ref):
    li = pl.program_id(1)

    # New batch tile: seed the resident accumulator from the stem output.
    @pl.when(li == 0)
    def _():
        o_ref[...] = x_ref[...]

    TB, S, D = o_ref.shape
    x = o_ref[...].astype(jnp.float32)                          # (TB, S, D)

    # ---- token mixing: x + MLP_tok(LN(x)) applied over the token axis ----
    y = _layernorm(x, g1_ref[0], b1_ref[0], LN_EPS_BLOCK)       # (TB, S, D)
    tw1 = tw1_ref[0]                                            # (S, Ht)
    tw2 = tw2_ref[0]                                            # (Ht, S)
    tb1 = tb1_ref[0]                                            # (1, Ht)
    tok = []
    for bidx in range(TB):
        # contract over S: (S,D) x (S,Ht) -> (D,Ht); the transposed operand is
        # handled by dot_general dimension numbers (no explicit .T / XLU work).
        hb = _gelu(jax.lax.dot_general(
            y[bidx], tw1, (((0,), (0,)), ((), ())),
            preferred_element_type=jnp.float32) + tb1)          # (D, Ht)
        # contract over Ht: (Ht,S) x (D,Ht) -> (S, D), already in (S, D).
        tok.append(jax.lax.dot_general(
            tw2, hb, (((0,), (1,)), ((), ())),
            preferred_element_type=jnp.float32))                # (S, D)
    x = x + (jnp.stack(tok, axis=0) + tb2_ref[0])               # (TB, S, D)

    # ---- channel mixing: x + MLP_ch(LN(x)), batched as (TB*S, D) matmuls ----
    y2 = _layernorm(x, g2_ref[0], b2_ref[0], LN_EPS_BLOCK)
    y2 = y2.reshape(TB * S, D)                                  # free reshape
    h2 = _gelu(jnp.dot(y2, cw1_ref[0],
                       preferred_element_type=jnp.float32) + cb1_ref[0])
    ch = jnp.dot(h2, cw2_ref[0],
                 preferred_element_type=jnp.float32) + cb2_ref[0]
    x = x + ch.reshape(TB, S, D)

    o_ref[...] = x.astype(o_ref.dtype)


def mixer_blocks(x, blk, *, tb=None, vmem_limit_bytes=48 * 1024 * 1024):
    B, S, D = x.shape
    NBLK, _, Ht = blk["tw1"].shape
    Hc = blk["cw1"].shape[2]
    if tb is None:
        tb = _pick_tile(B, (16, 8, 4, 2, 1))
    assert B % tb == 0
    nb = B // tb

    act_spec = pl.BlockSpec((tb, S, D), lambda bi, li: (bi, 0, 0))

    def wspec(arr):
        return pl.BlockSpec((1,) + tuple(arr.shape[1:]),
                            lambda bi, li: (li, 0, 0))

    order = ("g1", "b1", "tw1", "tb1", "tw2", "tb2",
             "g2", "b2", "cw1", "cb1", "cw2", "cb2")
    w_args = [blk[k] for k in order]

    flops = 4 * B * NBLK * (S * D * Ht + S * D * Hc)
    transc = B * NBLK * (D * Ht + S * Hc)
    bytes_acc = 2 * _nbytes(x) + nb * sum(_nbytes(a) for a in w_args)

    return pl.pallas_call(
        _fused_mixer_kernel,
        out_shape=jax.ShapeDtypeStruct((B, S, D), x.dtype),
        grid=(nb, NBLK),
        in_specs=[act_spec] + [wspec(a) for a in w_args],
        out_specs=act_spec,
        compiler_params=pltpu.CompilerParams(
            dimension_semantics=("parallel", "arbitrary"),
            vmem_limit_bytes=vmem_limit_bytes),
        cost_estimate=pl.CostEstimate(
            flops=int(flops), transcendentals=int(transc),
            bytes_accessed=int(bytes_acc)),
    )(x, *w_args)


# ----------------------------------------------------------------------------
# Head: final LayerNorm + mean over tokens + Linear classifier, tiled over B
# ----------------------------------------------------------------------------
def _head_kernel(x_ref, g_ref, b_ref, w_ref, hb_ref, o_ref):
    x = x_ref[...].astype(jnp.float32)                          # (TB, S, D)
    y = _layernorm(x, g_ref[...], b_ref[...], LN_EPS_FINAL)
    m = jnp.mean(y, axis=1)                                     # (TB, D)
    o_ref[...] = (jnp.dot(m, w_ref[...],
                          preferred_element_type=jnp.float32)
                  + hb_ref[...]).astype(o_ref.dtype)


def head(x, gamma, beta, w, b, *, tb=None):
    B, S, D = x.shape
    NC = w.shape[1]
    if tb is None:
        tb = _pick_tile(B, (256, 128, 64, 32, 16, 8))
    return pl.pallas_call(
        _head_kernel,
        out_shape=jax.ShapeDtypeStruct((B, NC), x.dtype),
        grid=(B // tb,),
        in_specs=[pl.BlockSpec((tb, S, D), lambda i: (i, 0, 0)),
                  pl.BlockSpec((1, D), lambda i: (0, 0)),
                  pl.BlockSpec((1, D), lambda i: (0, 0)),
                  pl.BlockSpec((D, NC), lambda i: (0, 0)),
                  pl.BlockSpec((1, NC), lambda i: (0, 0))],
        out_specs=pl.BlockSpec((tb, NC), lambda i: (i, 0)),
        compiler_params=pltpu.CompilerParams(
            dimension_semantics=("parallel",)),
    )(x, gamma, beta, w, b)


# ----------------------------------------------------------------------------
# Plain-JAX glue
# ----------------------------------------------------------------------------
def extract_patches(x, patch_size):
    # x: (B, C, H, W) NCHW -> (B, P, C*ps*ps); patch content ordered (C,kh,kw),
    # matching Conv2d weight.flatten(1) of the PyTorch stem.
    B, C, H, W = x.shape
    p = patch_size
    gh, gw = H // p, W // p
    x = x.reshape(B, C, gh, p, gw, p)
    x = x.transpose(0, 2, 4, 1, 3, 5)          # (B, gh, gw, C, p, p)
    return x.reshape(B, gh * gw, C * p * p)


def mixer_forward(x, params, *, tb=None):
    B = x.shape[0]
    patches = extract_patches(x, params["patch_size"])
    _, P, K = patches.shape
    tokens = stem(patches.reshape(B * P, K), params["stem_w"], params["stem_b"])
    tokens = tokens.reshape(B, P, -1)          # (B, S, D)
    tokens = mixer_blocks(tokens, params["blocks"], tb=tb)
    return head(tokens, params["norm_g"], params["norm_b"],
                params["head_w"], params["head_b"])


def mixer_forward_ref(x, params):
    """Pure-JAX reference (same math, HIGHEST matmul precision)."""
    hp = jax.lax.Precision.HIGHEST
    patches = extract_patches(x, params["patch_size"])
    t = jnp.einsum("bpk,kd->bpd", patches, params["stem_w"],
                   precision=hp) + params["stem_b"]
    blk = params["blocks"]
    for i in range(blk["tw1"].shape[0]):
        y = _layernorm(t, blk["g1"][i], blk["b1"][i], LN_EPS_BLOCK)
        h = _gelu(jnp.einsum("bsd,sh->bdh", y, blk["tw1"][i],
                             precision=hp) + blk["tb1"][i])
        t = t + (jnp.einsum("bdh,hs->bsd", h, blk["tw2"][i],
                            precision=hp) + blk["tb2"][i])
        y2 = _layernorm(t, blk["g2"][i], blk["b2"][i], LN_EPS_BLOCK)
        h2 = _gelu(jnp.einsum("bsd,dh->bsh", y2, blk["cw1"][i],
                              precision=hp) + blk["cb1"][i])
        t = t + (jnp.einsum("bsh,hd->bsd", h2, blk["cw2"][i],
                            precision=hp) + blk["cb2"][i])
    y = _layernorm(t, params["norm_g"], params["norm_b"], LN_EPS_FINAL)
    m = jnp.mean(y, axis=1)
    return jnp.einsum("bd,dc->bc", m, params["head_w"],
                      precision=hp) + params["head_b"]


def init_params(key, image_size, in_channels, num_classes, patch_size,
                hidden_dim, num_blocks, dtype=jnp.float32):
    S = (image_size // patch_size) ** 2
    D = hidden_dim
    Ht = int(D * 0.5)                          # token-mixing MLP width
    Hc = int(D * 4.0)                          # channel-mixing MLP width
    K = in_channels * patch_size * patch_size

    keys = jax.random.split(key, 12)

    def nrm(k, shape, scale=0.02):
        return (scale * jax.random.normal(k, shape, jnp.float32)).astype(dtype)

    blocks = {
        "g1": jnp.ones((num_blocks, 1, D), dtype),
        "b1": jnp.zeros((num_blocks, 1, D), dtype),
        "tw1": nrm(keys[4], (num_blocks, S, Ht)),
        "tb1": nrm(keys[5], (num_blocks, 1, Ht)),
        "tw2": nrm(keys[6], (num_blocks, Ht, S)),
        "tb2": nrm(keys[7], (num_blocks, S, 1)),
        "g2": jnp.ones((num_blocks, 1, D), dtype),
        "b2": jnp.zeros((num_blocks, 1, D), dtype),
        "cw1": nrm(keys[8], (num_blocks, D, Hc)),
        "cb1": nrm(keys[9], (num_blocks, 1, Hc)),
        "cw2": nrm(keys[10], (num_blocks, Hc, D)),
        "cb2": nrm(keys[11], (num_blocks, 1, D)),
    }
    return {
        "patch_size": patch_size,
        "stem_w": nrm(keys[0], (K, D)),
        "stem_b": nrm(keys[1], (1, D)),
        "norm_g": jnp.ones((1, D), dtype),
        "norm_b": jnp.zeros((1, D), dtype),
        "head_w": nrm(keys[2], (D, num_classes)),
        "head_b": nrm(keys[3], (1, num_classes)),
        "blocks": blocks,
    }


if __name__ == "__main__":
    # Small Mixer config: 32x32 image, patch 8 -> S=16 tokens, D=128
    # (lane-dense), 2 blocks, 128 classes, batch 8 (two batch tiles of 4).
    B, C, IMG, PS = 8, 3, 32, 8
    D, NBLK, NC = 128, 2, 128

    key = jax.random.PRNGKey(0)
    kx, kp = jax.random.split(key)
    x = jax.random.normal(kx, (B, C, IMG, IMG), jnp.float32)
    params = init_params(kp, IMG, C, NC, PS, D, NBLK)

    fwd = jax.jit(lambda inp: mixer_forward(inp, params, tb=4))
    out = jax.block_until_ready(fwd(x))
    assert out.shape == (B, NC)
    assert bool(jnp.all(jnp.isfinite(out)))

    # Check against a pure-JAX reference of the same forward pass.
    ref = jax.block_until_ready(mixer_forward_ref(x, params))
    err = float(jnp.max(jnp.abs(out - ref)))
    scale = float(jnp.max(jnp.abs(ref))) + 1e-6
    assert err / scale < 1e-2, f"mismatch: max abs err {err} (scale {scale})"

    print("KERNEL_OK")
</pallas_src>

<mosaic_0001>
module attributes {stable_mosaic.version = 11 : i64} {
  func.func @_stem_kernel(%arg0: i32, %arg1: memref<128x192xf32, #tpu.memory_space<vmem>>, %arg2: memref<192x128xf32, #tpu.memory_space<vmem>>, %arg3: memref<1x128xf32, #tpu.memory_space<vmem>>, %arg4: memref<128x128xf32, #tpu.memory_space<vmem>>) attributes {dimension_semantics = [#tpu.dimension_semantics<parallel>], iteration_bounds = array<i64: 1>, scalar_prefetch = 0 : i64, scratch_operands = 0 : i64, tpu.core_type = #tpu.core_type<tc>, window_params = [{transform_indices = @transform_0, window_bounds = array<i64: 128, 192>}, {pipeline_mode = #tpu.pipeline_mode<synchronous>, transform_indices = @transform_1, window_bounds = array<i64: 192, 128>}, {pipeline_mode = #tpu.pipeline_mode<synchronous>, transform_indices = @transform_2, window_bounds = array<i64: 1, 128>}, {transform_indices = @transform_3, window_bounds = array<i64: 128, 128>}]} {
    %c0 = arith.constant 0 : index
    %c0_0 = arith.constant 0 : index
    %0 = vector.load %arg1[%c0, %c0_0] : memref<128x192xf32, #tpu.memory_space<vmem>>, vector<128x192xf32>
    %c0_1 = arith.constant 0 : index
    %c0_2 = arith.constant 0 : index
    %1 = vector.load %arg2[%c0_1, %c0_2] : memref<192x128xf32, #tpu.memory_space<vmem>>, vector<192x128xf32>
    %cst = arith.constant dense<0.000000e+00> : vector<128x128xf32>
    %2 = tpu.matmul %0, %1, %cst {dimension_numbers = #tpu.dot_dimension_numbers<[1], [0], [0], [1], [0, 0, 1, 1], [], []>} : vector<128x192xf32>, vector<192x128xf32>, vector<128x128xf32> -> vector<128x128xf32>
    %c0_3 = arith.constant 0 : index
    %c0_4 = arith.constant 0 : index
    %3 = vector.load %arg3[%c0_3, %c0_4] : memref<1x128xf32, #tpu.memory_space<vmem>>, vector<1x128xf32>
    %4 = vector.broadcast %3 : vector<1x128xf32> to vector<128x128xf32>
    %5 = arith.addf %2, %4 : vector<128x128xf32>
    %c0_5 = arith.constant 0 : index
    %c0_6 = arith.constant 0 : index
    %6 = vector.load %arg4[%c0_5, %c0_6] : memref<128x128xf32, #tpu.memory_space<vmem>>, vector<128x128xf32>
    tpu.vector_store %arg4[%c0_5, %c0_6], %5 {strides = array<i32>} : memref<128x128xf32, #tpu.memory_space<vmem>>, vector<128x128xf32>,
    return
  }
  func.func @transform_0(%arg0: i32) -> (i32, i32) {
    %c0_i32 = arith.constant 0 : i32
    %c0_i32_0 = arith.constant 0 : i32
    return %arg0, %c0_i32 : i32, i32
  }
  func.func @transform_1(%arg0: i32) -> (i32, i32) {
    %c0_i32 = arith.constant 0 : i32
    %c0_i32_0 = arith.constant 0 : i32
    %c0_i32_1 = arith.constant 0 : i32
    return %c0_i32, %c0_i32_0 : i32, i32
  }
  func.func @transform_2(%arg0: i32) -> (i32, i32) {
    %c0_i32 = arith.constant 0 : i32
    %c0_i32_0 = arith.constant 0 : i32
    %c0_i32_1 = arith.constant 0 : i32
    return %c0_i32, %c0_i32_0 : i32, i32
  }
  func.func @transform_3(%arg0: i32) -> (i32, i32) {
    %c0_i32 = arith.constant 0 : i32
    %c0_i32_0 = arith.constant 0 : i32
    return %arg0, %c0_i32 : i32, i32
  }
}

module attributes {stable_mosaic.version = 11 : i64} {
  func.func @_head_kernel(%arg0: i32, %arg1: memref<8x16x128xf32, #tpu.memory_space<vmem>>, %arg2: memref<1x128xf32, #tpu.memory_space<vmem>>, %arg3: memref<1x128xf32, #tpu.memory_space<vmem>>, %arg4: memref<128x128xf32, #tpu.memory_space<vmem>>, %arg5: memref<1x128xf32, #tpu.memory_space<vmem>>, %arg6: memref<8x128xf32, #tpu.memory_space<vmem>>) attributes {dimension_semantics = [#tpu.dimension_semantics<parallel>], iteration_bounds = array<i64: 1>, scalar_prefetch = 0 : i64, scratch_operands = 0 : i64, tpu.core_type = #tpu.core_type<tc>, window_params = [{transform_indices = @transform_0, window_bounds = array<i64: 8, 16, 128>}, {pipeline_mode = #tpu.pipeline_mode<synchronous>, transform_indices = @transform_1, window_bounds = array<i64: 1, 128>}, {pipeline_mode = #tpu.pipeline_mode<synchronous>, transform_indices = @transform_2, window_bounds = array<i64: 1, 128>}, {pipeline_mode = #tpu.pipeline_mode<synchronous>, transform_indices = @transform_3, window_bounds = array<i64: 128, 128>}, {pipeline_mode = #tpu.pipeline_mode<synchronous>, transform_indices = @transform_4, window_bounds = array<i64: 1, 128>}, {transform_indices = @transform_5, window_bounds = array<i64: 8, 128>}]} {
    %c0 = arith.constant 0 : index
    %c0_0 = arith.constant 0 : index
    %c0_1 = arith.constant 0 : index
    %0 = vector.load %arg1[%c0, %c0_0, %c0_1] : memref<8x16x128xf32, #tpu.memory_space<vmem>>, vector<8x16x128xf32>
    %c0_2 = arith.constant 0 : index
    %c0_3 = arith.constant 0 : index
    %1 = vector.load %arg2[%c0_2, %c0_3] : memref<1x128xf32, #tpu.memory_space<vmem>>, vector<1x128xf32>
    %c0_4 = arith.constant 0 : index
    %c0_5 = arith.constant 0 : index
    %2 = vector.load %arg3[%c0_4, %c0_5] : memref<1x128xf32, #tpu.memory_space<vmem>>, vector<1x128xf32>
    %cst = arith.constant dense<0.000000e+00> : vector<8x16xf32>
    %3 = vector.multi_reduction <add>, %0, %cst [2] : vector<8x16x128xf32> to vector<8x16xf32>
    %4 = vector.shape_cast %3 : vector<8x16xf32> to vector<8x16x1xf32>
    %cst_6 = arith.constant 1.280000e+02 : f32
    %5 = vector.broadcast %cst_6 : f32 to vector<8x16x1xf32>
    %6 = arith.divf %4, %5 : vector<8x16x1xf32>
    %7 = vector.broadcast %6 : vector<8x16x1xf32> to vector<8x16x128xf32>
    %8 = arith.subf %0, %7 : vector<8x16x128xf32>
    %9 = arith.mulf %8, %8 : vector<8x16x128xf32>
    %cst_7 = arith.constant dense<0.000000e+00> : vector<8x16xf32>
    %10 = vector.multi_reduction <add>, %9, %cst_7 [2] : vector<8x16x128xf32> to vector<8x16xf32>
    %11 = vector.shape_cast %10 : vector<8x16xf32> to vector<8x16x1xf32>
    %cst_8 = arith.constant 1.280000e+02 : f32
    %12 = vector.broadcast %cst_8 : f32 to vector<8x16x1xf32>
    %13 = arith.divf %11, %12 : vector<8x16x1xf32>
    %14 = vector.broadcast %6 : vector<8x16x1xf32> to vector<8x16x128xf32>
    %15 = arith.subf %0, %14 : vector<8x16x128xf32>
    %cst_9 = arith.constant 9.99999974E-6 : f32
    %16 = vector.broadcast %cst_9 : f32 to vector<8x16x1xf32>
    %17 = arith.addf %13, %16 : vector<8x16x1xf32>
    %18 = math.rsqrt %17 : vector<8x16x1xf32>
    %19 = vector.broadcast %18 : vector<8x16x1xf32> to vector<8x16x128xf32>
    %20 = arith.mulf %15, %19 : vector<8x16x128xf32>
    %21 = vector.shape_cast %1 : vector<1x128xf32> to vector<1x1x128xf32>
    %22 = vector.broadcast %21 : vector<1x1x128xf32> to vector<8x16x128xf32>
    %23 = arith.mulf %20, %22 : vector<8x16x128xf32>
    %24 = vector.shape_cast %2 : vector<1x128xf32> to vector<1x1x128xf32>
    %25 = vector.broadcast %24 : vector<1x1x128xf32> to vector<8x16x128xf32>
    %26 = arith.addf %23, %25 : vector<8x16x128xf32>
    %cst_10 = arith.constant dense<0.000000e+00> : vector<8x128xf32>
    %27 = vector.multi_reduction <add>, %26, %cst_10 [1] : vector<8x16x128xf32> to vector<8x128xf32>
    %cst_11 = arith.constant 1.600000e+01 : f32
    %28 = vector.broadcast %cst_11 : f32 to vector<8x128xf32>
    %29 = arith.divf %27, %28 : vector<8x128xf32>
    %c0_12 = arith.constant 0 : index
    %c0_13 = arith.constant 0 : index
    %30 = vector.load %arg4[%c0_12, %c0_13] : memref<128x128xf32, #tpu.memory_space<vmem>>, vector<128x128xf32>
    %cst_14 = arith.constant dense<0.000000e+00> : vector<8x128xf32>
    %31 = tpu.matmul %29, %30, %cst_14 {dimension_numbers = #tpu.dot_dimension_numbers<[1], [0], [0], [1], [0, 0, 1, 1], [], []>} : vector<8x128xf32>, vector<128x128xf32>, vector<8x128xf32> -> vector<8x128xf32>
    %c0_15 = arith.constant 0 : index
    %c0_16 = arith.constant 0 : index
    %32 = vector.load %arg5[%c0_15, %c0_16] : memref<1x128xf32, #tpu.memory_space<vmem>>, vector<1x128xf32>
    %33 = vector.broadcast %32 : vector<1x128xf32> to vector<8x128xf32>
    %34 = arith.addf %31, %33 : vector<8x128xf32>
    %c0_17 = arith.constant 0 : index
    %c0_18 = arith.constant 0 : index
    %35 = vector.load %arg6[%c0_17, %c0_18] : memref<8x128xf32, #tpu.memory_space<vmem>>, vector<8x128xf32>
    tpu.vector_store %arg6[%c0_17, %c0_18], %34 {strides = array<i32>} : memref<8x128xf32, #tpu.memory_space<vmem>>, vector<8x128xf32>,
    return
  }
  func.func @transform_0(%arg0: i32) -> (i32, i32, i32) {
    %c0_i32 = arith.constant 0 : i32
    %c0_i32_0 = arith.constant 0 : i32
    %c0_i32_1 = arith.constant 0 : i32
    return %arg0, %c0_i32, %c0_i32_0 : i32, i32, i32
  }
  func.func @transform_1(%arg0: i32) -> (i32, i32) {
    %c0_i32 = arith.constant 0 : i32
    %c0_i32_0 = arith.constant 0 : i32
    %c0_i32_1 = arith.constant 0 : i32
    return %c0_i32, %c0_i32_0 : i32, i32
  }
  func.func @transform_2(%arg0: i32) -> (i32, i32) {
    %c0_i32 = arith.constant 0 : i32
    %c0_i32_0 = arith.constant 0 : i32
    %c0_i32_1 = arith.constant 0 : i32
    return %c0_i32, %c0_i32_0 : i32, i32
  }
  func.func @transform_3(%arg0: i32) -> (i32, i32) {
    %c0_i32 = arith.constant 0 : i32
    %c0_i32_0 = arith.constant 0 : i32
    %c0_i32_1 = arith.constant 0 : i32
    return %c0_i32, %c0_i32_0 : i32, i32
  }
  func.func @transform_4(%arg0: i32) -> (i32, i32) {
    %c0_i32 = arith.constant 0 : i32
    %c0_i32_0 = arith.constant 0 : i32
    %c0_i32_1 = arith.constant 0 : i32
    return %c0_i32, %c0_i32_0 : i32, i32
  }
  func.func @transform_5(%arg0: i32) -> (i32, i32) {
    %c0_i32 = arith.constant 0 : i32
    %c0_i32_0 = arith.constant 0 : i32
    return %arg0, %c0_i32 : i32, i32
  }
}

module attributes {stable_mosaic.version = 11 : i64} {
  func.func @_fused_mixer_kernel(%arg0: i32, %arg1: i32, %arg2: memref<4x16x128xf32, #tpu.memory_space<vmem>>, %arg3: memref<1x1x128xf32, #tpu.memory_space<vmem>>, %arg4: memref<1x1x128xf32, #tpu.memory_space<vmem>>, %arg5: memref<1x16x64xf32, #tpu.memory_space<vmem>>, %arg6: memref<1x1x64xf32, #tpu.memory_space<vmem>>, %arg7: memref<1x64x16xf32, #tpu.memory_space<vmem>>, %arg8: memref<1x16x1xf32, #tpu.memory_space<vmem>>, %arg9: memref<1x1x128xf32, #tpu.memory_space<vmem>>, %arg10: memref<1x1x128xf32, #tpu.memory_space<vmem>>, %arg11: memref<1x128x512xf32, #tpu.memory_space<vmem>>, %arg12: memref<1x1x512xf32, #tpu.memory_space<vmem>>, %arg13: memref<1x512x128xf32, #tpu.memory_space<vmem>>, %arg14: memref<1x1x128xf32, #tpu.memory_space<vmem>>, %arg15: memref<4x16x128xf32, #tpu.memory_space<vmem>>) attributes {dimension_semantics = [#tpu.dimension_semantics<parallel>, #tpu.dimension_semantics<arbitrary>], iteration_bounds = array<i64: 2, 2>, scalar_prefetch = 0 : i64, scratch_operands = 0 : i64, tpu.core_type = #tpu.core_type<tc>, window_params = [{transform_indices = @transform_0, window_bounds = array<i64: 4, 16, 128>}, {transform_indices = @transform_1, window_bounds = array<i64: 1, 1, 128>}, {transform_indices = @transform_2, window_bounds = array<i64: 1, 1, 128>}, {transform_indices = @transform_3, window_bounds = array<i64: 1, 16, 64>}, {transform_indices = @transform_4, window_bounds = array<i64: 1, 1, 64>}, {transform_indices = @transform_5, window_bounds = array<i64: 1, 64, 16>}, {transform_indices = @transform_6, window_bounds = array<i64: 1, 16, 1>}, {transform_indices = @transform_7, window_bounds = array<i64: 1, 1, 128>}, {transform_indices = @transform_8, window_bounds = array<i64: 1, 1, 128>}, {transform_indices = @transform_9, window_bounds = array<i64: 1, 128, 512>}, {transform_indices = @transform_10, window_bounds = array<i64: 1, 1, 512>}, {transform_indices = @transform_11, window_bounds = array<i64: 1, 512, 128>}, {transform_indices = @transform_12, window_bounds = array<i64: 1, 1, 128>}, {transform_indices = @transform_13, window_bounds = array<i64: 4, 16, 128>}]} {
    %c0_i32 = arith.constant 0 : i32
    %0 = arith.cmpi eq, %arg1, %c0_i32 : i32
    %1 = arith.extui %0 : i1 to i32
    %c0_i32_0 = arith.constant 0 : i32
    %2 = arith.cmpi ne, %1, %c0_i32_0 : i32
    scf.if %2 {
      %c0_81 = arith.constant 0 : index
      %c0_82 = arith.constant 0 : index
      %c0_83 = arith.constant 0 : index
      %184 = vector.load %arg2[%c0_81, %c0_82, %c0_83] : memref<4x16x128xf32, #tpu.memory_space<vmem>>, vector<4x16x128xf32>
      %c0_84 = arith.constant 0 : index
      %c0_85 = arith.constant 0 : index
      %c0_86 = arith.constant 0 : index
      %185 = vector.load %arg15[%c0_84, %c0_85, %c0_86] : memref<4x16x128xf32, #tpu.memory_space<vmem>>, vector<4x16x128xf32>
      tpu.vector_store %arg15[%c0_84, %c0_85, %c0_86], %184 {strides = array<i32>} : memref<4x16x128xf32, #tpu.memory_space<vmem>>, vector<4x16x128xf32>,
    } else {
    }
    %c0 = arith.constant 0 : index
    %c0_1 = arith.constant 0 : index
    %c0_2 = arith.constant 0 : index
    %3 = vector.load %arg15[%c0, %c0_1, %c0_2] : memref<4x16x128xf32, #tpu.memory_space<vmem>>, vector<4x16x128xf32>
    %c0_3 = arith.constant 0 : index
    %c0_4 = arith.constant 0 : index
    %c0_5 = arith.constant 0 : index
    %4 = vector.load %arg3[%c0_3, %c0_4, %c0_5] : memref<1x1x128xf32, #tpu.memory_space<vmem>>, vector<1x1x128xf32>
    %5 = vector.shape_cast %4 : vector<1x1x128xf32> to vector<1x128xf32>
    %c0_6 = arith.constant 0 : index
    %c0_7 = arith.constant 0 : index
    %c0_8 = arith.constant 0 : index
    %6 = vector.load %arg4[%c0_6, %c0_7, %c0_8] : memref<1x1x128xf32, #tpu.memory_space<vmem>>, vector<1x1x128xf32>
    %7 = vector.shape_cast %6 : vector<1x1x128xf32> to vector<1x128xf32>
    %cst = arith.constant dense<0.000000e+00> : vector<4x16xf32>
    %8 = vector.multi_reduction <add>, %3, %cst [2] : vector<4x16x128xf32> to vector<4x16xf32>
    %9 = vector.shape_cast %8 : vector<4x16xf32> to vector<4x16x1xf32>
    %cst_9 = arith.constant 1.280000e+02 : f32
    %10 = vector.broadcast %cst_9 : f32 to vector<4x16x1xf32>
    %11 = arith.divf %9, %10 : vector<4x16x1xf32>
    %12 = vector.broadcast %11 : vector<4x16x1xf32> to vector<4x16x128xf32>
    %13 = arith.subf %3, %12 : vector<4x16x128xf32>
    %14 = arith.mulf %13, %13 : vector<4x16x128xf32>
    %cst_10 = arith.constant dense<0.000000e+00> : vector<4x16xf32>
    %15 = vector.multi_reduction <add>, %14, %cst_10 [2] : vector<4x16x128xf32> to vector<4x16xf32>
    %16 = vector.shape_cast %15 : vector<4x16xf32> to vector<4x16x1xf32>
    %cst_11 = arith.constant 1.280000e+02 : f32
    %17 = vector.broadcast %cst_11 : f32 to vector<4x16x1xf32>
    %18 = arith.divf %16, %17 : vector<4x16x1xf32>
    %19 = vector.broadcast %11 : vector<4x16x1xf32> to vector<4x16x128xf32>
    %20 = arith.subf %3, %19 : vector<4x16x128xf32>
    %cst_12 = arith.constant 9.99999997E-7 : f32
    %21 = vector.broadcast %cst_12 : f32 to vector<4x16x1xf32>
    %22 = arith.addf %18, %21 : vector<4x16x1xf32>
    %23 = math.rsqrt %22 : vector<4x16x1xf32>
    %24 = vector.broadcast %23 : vector<4x16x1xf32> to vector<4x16x128xf32>
    %25 = arith.mulf %20, %24 : vector<4x16x128xf32>
    %26 = vector.shape_cast %5 : vector<1x128xf32> to vector<1x1x128xf32>
    %27 = vector.broadcast %26 : vector<1x1x128xf32> to vector<4x16x128xf32>
    %28 = arith.mulf %25, %27 : vector<4x16x128xf32>
    %29 = vector.shape_cast %7 : vector<1x128xf32> to vector<1x1x128xf32>
    %30 = vector.broadcast %29 : vector<1x1x128xf32> to vector<4x16x128xf32>
    %31 = arith.addf %28, %30 : vector<4x16x128xf32>
    %c0_13 = arith.constant 0 : index
    %c0_14 = arith.constant 0 : index
    %c0_15 = arith.constant 0 : index
    %32 = vector.load %arg5[%c0_13, %c0_14, %c0_15] : memref<1x16x64xf32, #tpu.memory_space<vmem>>, vector<1x16x64xf32>
    %33 = vector.shape_cast %32 : vector<1x16x64xf32> to vector<16x64xf32>
    %c0_16 = arith.constant 0 : index
    %c0_17 = arith.constant 0 : index
    %c0_18 = arith.constant 0 : index
    %34 = vector.load %arg7[%c0_16, %c0_17, %c0_18] : memref<1x64x16xf32, #tpu.memory_space<vmem>>, vector<1x64x16xf32>
    %35 = vector.shape_cast %34 : vector<1x64x16xf32> to vector<64x16xf32>
    %c0_19 = arith.constant 0 : index
    %c0_20 = arith.constant 0 : index
    %c0_21 = arith.constant 0 : index
    %36 = vector.load %arg6[%c0_19, %c0_20, %c0_21] : memref<1x1x64xf32, #tpu.memory_space<vmem>>, vector<1x1x64xf32>
    %37 = vector.shape_cast %36 : vector<1x1x64xf32> to vector<1x64xf32>
    %38 = vector.extract_strided_slice %31 {offsets = [0, 0, 0], sizes = [1, 16, 128], strides = [1, 1, 1]} : vector<4x16x128xf32> to vector<1x16x128xf32>
    %39 = vector.shape_cast %38 : vector<1x16x128xf32> to vector<16x128xf32>
    %cst_22 = arith.constant dense<0.000000e+00> : vector<128x64xf32>
    %40 = tpu.matmul %39, %33, %cst_22 {dimension_numbers = #tpu.dot_dimension_numbers<[0], [0], [1], [1], [0, 1, 1, 1], [], []>} : vector<16x128xf32>, vector<16x64xf32>, vector<128x64xf32> -> vector<128x64xf32>
    %41 = vector.broadcast %37 : vector<1x64xf32> to vector<128x64xf32>
    %42 = arith.addf %40, %41 : vector<128x64xf32>
    %43 = arith.mulf %42, %42 : vector<128x64xf32>
    %44 = arith.mulf %42, %43 : vector<128x64xf32>
    %cst_23 = arith.constant 4.471500e-02 : f32
    %45 = vector.broadcast %cst_23 : f32 to vector<128x64xf32>
    %46 = arith.mulf %45, %44 : vector<128x64xf32>
    %47 = arith.addf %42, %46 : vector<128x64xf32>
    %cst_24 = arith.constant 0.797884583 : f32
    %48 = vector.broadcast %cst_24 : f32 to vector<128x64xf32>
    %49 = arith.mulf %48, %47 : vector<128x64xf32>
    %50 = math.tanh %49 : vector<128x64xf32>
    %cst_25 = arith.constant 1.000000e+00 : f32
    %51 = vector.broadcast %cst_25 : f32 to vector<128x64xf32>
    %52 = arith.addf %51, %50 : vector<128x64xf32>
    %cst_26 = arith.constant 5.000000e-01 : f32
    %53 = vector.broadcast %cst_26 : f32 to vector<128x64xf32>
    %54 = arith.mulf %53, %52 : vector<128x64xf32>
    %55 = arith.mulf %42, %54 : vector<128x64xf32>
    %cst_27 = arith.constant dense<0.000000e+00> : vector<16x128xf32>
    %56 = tpu.matmul %35, %55, %cst_27 {dimension_numbers = #tpu.dot_dimension_numbers<[0], [1], [1], [0], [0, 1, 1, 0], [], []>} : vector<64x16xf32>, vector<128x64xf32>, vector<16x128xf32> -> vector<16x128xf32>
    %57 = vector.extract_strided_slice %31 {offsets = [1, 0, 0], sizes = [1, 16, 128], strides = [1, 1, 1]} : vector<4x16x128xf32> to vector<1x16x128xf32>
    %58 = vector.shape_cast %57 : vector<1x16x128xf32> to vector<16x128xf32>
    %cst_28 = arith.constant dense<0.000000e+00> : vector<128x64xf32>
    %59 = tpu.matmul %58, %33, %cst_28 {dimension_numbers = #tpu.dot_dimension_numbers<[0], [0], [1], [1], [0, 1, 1, 1], [], []>} : vector<16x128xf32>, vector<16x64xf32>, vector<128x64xf32> -> vector<128x64xf32>
    %60 = vector.broadcast %37 : vector<1x64xf32> to vector<128x64xf32>
    %61 = arith.addf %59, %60 : vector<128x64xf32>
    %62 = arith.mulf %61, %61 : vector<128x64xf32>
    %63 = arith.mulf %61, %62 : vector<128x64xf32>
    %cst_29 = arith.constant 4.471500e-02 : f32
    %64 = vector.broadcast %cst_29 : f32 to vector<128x64xf32>
    %65 = arith.mulf %64, %63 : vector<128x64xf32>
    %66 = arith.addf %61, %65 : vector<128x64xf32>
    %cst_30 = arith.constant 0.797884583 : f32
    %67 = vector.broadcast %cst_30 : f32 to vector<128x64xf32>
    %68 = arith.mulf %67, %66 : vector<128x64xf32>
    %69 = math.tanh %68 : vector<128x64xf32>
    %cst_31 = arith.constant 1.000000e+00 : f32
    %70 = vector.broadcast %cst_31 : f32 to vector<128x64xf32>
    %71 = arith.addf %70, %69 : vector<128x64xf32>
    %cst_32 = arith.constant 5.000000e-01 : f32
    %72 = vector.broadcast %cst_32 : f32 to vector<128x64xf32>
    %73 = arith.mulf %72, %71 : vector<128x64xf32>
    %74 = arith.mulf %61, %73 : vector<128x64xf32>
    %cst_33 = arith.constant dense<0.000000e+00> : vector<16x128xf32>
    %75 = tpu.matmul %35, %74, %cst_33 {dimension_numbers = #tpu.dot_dimension_numbers<[0], [1], [1], [0], [0, 1, 1, 0], [], []>} : vector<64x16xf32>, vector<128x64xf32>, vector<16x128xf32> -> vector<16x128xf32>
    %76 = vector.extract_strided_slice %31 {offsets = [2, 0, 0], sizes = [1, 16, 128], strides = [1, 1, 1]} : vector<4x16x128xf32> to vector<1x16x128xf32>
    %77 = vector.shape_cast %76 : vector<1x16x128xf32> to vector<16x128xf32>
    %cst_34 = arith.constant dense<0.000000e+00> : vector<128x64xf32>
    %78 = tpu.matmul %77, %33, %cst_34 {dimension_numbers = #tpu.dot_dimension_numbers<[0], [0], [1], [1], [0, 1, 1, 1], [], []>} : vector<16x128xf32>, vector<16x64xf32>, vector<128x64xf32> -> vector<128x64xf32>
    %79 = vector.broadcast %37 : vector<1x64xf32> to vector<128x64xf32>
    %80 = arith.addf %78, %79 : vector<128x64xf32>
    %81 = arith.mulf %80, %80 : vector<128x64xf32>
    %82 = arith.mulf %80, %81 : vector<128x64xf32>
    %cst_35 = arith.constant 4.471500e-02 : f32
    %83 = vector.broadcast %cst_35 : f32 to vector<128x64xf32>
    %84 = arith.mulf %83, %82 : vector<128x64xf32>
    %85 = arith.addf %80, %84 : vector<128x64xf32>
    %cst_36 = arith.constant 0.797884583 : f32
    %86 = vector.broadcast %cst_36 : f32 to vector<128x64xf32>
    %87 = arith.mulf %86, %85 : vector<128x64xf32>
    %88 = math.tanh %87 : vector<128x64xf32>
    %cst_37 = arith.constant 1.000000e+00 : f32
    %89 = vector.broadcast %cst_37 : f32 to vector<128x64xf32>
    %90 = arith.addf %89, %88 : vector<128x64xf32>
    %cst_38 = arith.constant 5.000000e-01 : f32
    %91 = vector.broadcast %cst_38 : f32 to vector<128x64xf32>
    %92 = arith.mulf %91, %90 : vector<128x64xf32>
    %93 = arith.mulf %80, %92 : vector<128x64xf32>
    %cst_39 = arith.constant dense<0.000000e+00> : vector<16x128xf32>
    %94 = tpu.matmul %35, %93, %cst_39 {dimension_numbers = #tpu.dot_dimension_numbers<[0], [1], [1], [0], [0, 1, 1, 0], [], []>} : vector<64x16xf32>, vector<128x64xf32>, vector<16x128xf32> -> vector<16x128xf32>
    %95 = vector.extract_strided_slice %31 {offsets = [3, 0, 0], sizes = [1, 16, 128], strides = [1, 1, 1]} : vector<4x16x128xf32> to vector<1x16x128xf32>
    %96 = vector.shape_cast %95 : vector<1x16x128xf32> to vector<16x128xf32>
    %cst_40 = arith.constant dense<0.000000e+00> : vector<128x64xf32>
    %97 = tpu.matmul %96, %33, %cst_40 {dimension_numbers = #tpu.dot_dimension_numbers<[0], [0], [1], [1], [0, 1, 1, 1], [], []>} : vector<16x128xf32>, vector<16x64xf32>, vector<128x64xf32> -> vector<128x64xf32>
    %98 = vector.broadcast %37 : vector<1x64xf32> to vector<128x64xf32>
    %99 = arith.addf %97, %98 : vector<128x64xf32>
    %100 = arith.mulf %99, %99 : vector<128x64xf32>
    %101 = arith.mulf %99, %100 : vector<128x64xf32>
    %cst_41 = arith.constant 4.471500e-02 : f32
    %102 = vector.broadcast %cst_41 : f32 to vector<128x64xf32>
    %103 = arith.mulf %102, %101 : vector<128x64xf32>
    %104 = arith.addf %99, %103 : vector<128x64xf32>
    %cst_42 = arith.constant 0.797884583 : f32
    %105 = vector.broadcast %cst_42 : f32 to vector<128x64xf32>
    %106 = arith.mulf %105, %104 : vector<128x64xf32>
    %107 = math.tanh %106 : vector<128x64xf32>
    %cst_43 = arith.constant 1.000000e+00 : f32
    %108 = vector.broadcast %cst_43 : f32 to vector<128x64xf32>
    %109 = arith.addf %108, %107 : vector<128x64xf32>
    %cst_44 = arith.constant 5.000000e-01 : f32
    %110 = vector.broadcast %cst_44 : f32 to vector<128x64xf32>
    %111 = arith.mulf %110, %109 : vector<128x64xf32>
    %112 = arith.mulf %99, %111 : vector<128x64xf32>
    %cst_45 = arith.constant dense<0.000000e+00> : vector<16x128xf32>
    %113 = tpu.matmul %35, %112, %cst_45 {dimension_numbers = #tpu.dot_dimension_numbers<[0], [1], [1], [0], [0, 1, 1, 0], [], []>} : vector<64x16xf32>, vector<128x64xf32>, vector<16x128xf32> -> vector<16x128xf32>
    %114 = vector.shape_cast %56 : vector<16x128xf32> to vector<1x16x128xf32>
    %115 = vector.shape_cast %75 : vector<16x128xf32> to vector<1x16x128xf32>
    %116 = vector.shape_cast %94 : vector<16x128xf32> to vector<1x16x128xf32>
    %117 = vector.shape_cast %113 : vector<16x128xf32> to vector<1x16x128xf32>
    %118 = tpu.concatenate %114, %115, %116, %117 in 0 : vector<1x16x128xf32>, vector<1x16x128xf32>, vector<1x16x128xf32>, vector<1x16x128xf32> -> vector<4x16x128xf32>
    %c0_46 = arith.constant 0 : index
    %c0_47 = arith.constant 0 : index
    %c0_48 = arith.constant 0 : index
    %119 = vector.load %arg8[%c0_46, %c0_47, %c0_48] : memref<1x16x1xf32, #tpu.memory_space<vmem>>, vector<1x16x1xf32>
    %120 = vector.shape_cast %119 : vector<1x16x1xf32> to vector<16x1xf32>
    %121 = vector.shape_cast %120 : vector<16x1xf32> to vector<1x16x1xf32>
    %122 = vector.broadcast %121 : vector<1x16x1xf32> to vector<4x16x128xf32>
    %123 = arith.addf %118, %122 : vector<4x16x128xf32>
    %124 = arith.addf %3, %123 : vector<4x16x128xf32>
    %c0_49 = arith.constant 0 : index
    %c0_50 = arith.constant 0 : index
    %c0_51 = arith.constant 0 : index
    %125 = vector.load %arg9[%c0_49, %c0_50, %c0_51] : memref<1x1x128xf32, #tpu.memory_space<vmem>>, vector<1x1x128xf32>
    %126 = vector.shape_cast %125 : vector<1x1x128xf32> to vector<1x128xf32>
    %c0_52 = arith.constant 0 : index
    %c0_53 = arith.constant 0 : index
    %c0_54 = arith.constant 0 : index
    %127 = vector.load %arg10[%c0_52, %c0_53, %c0_54] : memref<1x1x128xf32, #tpu.memory_space<vmem>>, vector<1x1x128xf32>
    %128 = vector.shape_cast %127 : vector<1x1x128xf32> to vector<1x128xf32>
    %cst_55 = arith.constant dense<0.000000e+00> : vector<4x16xf32>
    %129 = vector.multi_reduction <add>, %124, %cst_55 [2] : vector<4x16x128xf32> to vector<4x16xf32>
    %130 = vector.shape_cast %129 : vector<4x16xf32> to vector<4x16x1xf32>
    %cst_56 = arith.constant 1.280000e+02 : f32
    %131 = vector.broadcast %cst_56 : f32 to vector<4x16x1xf32>
    %132 = arith.divf %130, %131 : vector<4x16x1xf32>
    %133 = vector.broadcast %132 : vector<4x16x1xf32> to vector<4x16x128xf32>
    %134 = arith.subf %124, %133 : vector<4x16x128xf32>
    %135 = arith.mulf %134, %134 : vector<4x16x128xf32>
    %cst_57 = arith.constant dense<0.000000e+00> : vector<4x16xf32>
    %136 = vector.multi_reduction <add>, %135, %cst_57 [2] : vector<4x16x128xf32> to vector<4x16xf32>
    %137 = vector.shape_cast %136 : vector<4x16xf32> to vector<4x16x1xf32>
    %cst_58 = arith.constant 1.280000e+02 : f32
    %138 = vector.broadcast %cst_58 : f32 to vector<4x16x1xf32>
    %139 = arith.divf %137, %138 : vector<4x16x1xf32>
    %140 = vector.broadcast %132 : vector<4x16x1xf32> to vector<4x16x128xf32>
    %141 = arith.subf %124, %140 : vector<4x16x128xf32>
    %cst_59 = arith.constant 9.99999997E-7 : f32
    %142 = vector.broadcast %cst_59 : f32 to vector<4x16x1xf32>
    %143 = arith.addf %139, %142 : vector<4x16x1xf32>
    %144 = math.rsqrt %143 : vector<4x16x1xf32>
    %145 = vector.broadcast %144 : vector<4x16x1xf32> to vector<4x16x128xf32>
    %146 = arith.mulf %141, %145 : vector<4x16x128xf32>
    %147 = vector.shape_cast %126 : vector<1x128xf32> to vector<1x1x128xf32>
    %148 = vector.broadcast %147 : vector<1x1x128xf32> to vector<4x16x128xf32>
    %149 = arith.mulf %146, %148 : vector<4x16x128xf32>
    %150 = vector.shape_cast %128 : vector<1x128xf32> to vector<1x1x128xf32>
    %151 = vector.broadcast %150 : vector<1x1x128xf32> to vector<4x16x128xf32>
    %152 = arith.addf %149, %151 : vector<4x16x128xf32>
    %153 = vector.shape_cast %152 : vector<4x16x128xf32> to vector<64x128xf32>
    %c0_60 = arith.constant 0 : index
    %c0_61 = arith.constant 0 : index
    %c0_62 = arith.constant 0 : index
    %154 = vector.load %arg11[%c0_60, %c0_61, %c0_62] : memref<1x128x512xf32, #tpu.memory_space<vmem>>, vector<1x128x512xf32>
    %155 = vector.shape_cast %154 : vector<1x128x512xf32> to vector<128x512xf32>
    %cst_63 = arith.constant dense<0.000000e+00> : vector<64x512xf32>
    %156 = tpu.matmul %153, %155, %cst_63 {dimension_numbers = #tpu.dot_dimension_numbers<[1], [0], [0], [1], [0, 0, 1, 1], [], []>} : vector<64x128xf32>, vector<128x512xf32>, vector<64x512xf32> -> vector<64x512xf32>
    %c0_64 = arith.constant 0 : index
    %c0_65 = arith.constant 0 : index
    %c0_66 = arith.constant 0 : index
    %157 = vector.load %arg12[%c0_64, %c0_65, %c0_66] : memref<1x1x512xf32, #tpu.memory_space<vmem>>, vector<1x1x512xf32>
    %158 = vector.shape_cast %157 : vector<1x1x512xf32> to vector<1x512xf32>
    %159 = vector.broadcast %158 : vector<1x512xf32> to vector<64x512xf32>
    %160 = arith.addf %156, %159 : vector<64x512xf32>
    %161 = arith.mulf %160, %160 : vector<64x512xf32>
    %162 = arith.mulf %160, %161 : vector<64x512xf32>
    %cst_67 = arith.constant 4.471500e-02 : f32
    %163 = vector.broadcast %cst_67 : f32 to vector<64x512xf32>
    %164 = arith.mulf %163, %162 : vector<64x512xf32>
    %165 = arith.addf %160, %164 : vector<64x512xf32>
    %cst_68 = arith.constant 0.797884583 : f32
    %166 = vector.broadcast %cst_68 : f32 to vector<64x512xf32>
    %167 = arith.mulf %166, %165 : vector<64x512xf32>
    %168 = math.tanh %167 : vector<64x512xf32>
    %cst_69 = arith.constant 1.000000e+00 : f32
    %169 = vector.broadcast %cst_69 : f32 to vector<64x512xf32>
    %170 = arith.addf %169, %168 : vector<64x512xf32>
    %cst_70 = arith.constant 5.000000e-01 : f32
    %171 = vector.broadcast %cst_70 : f32 to vector<64x512xf32>
    %172 = arith.mulf %171, %170 : vector<64x512xf32>
    %173 = arith.mulf %160, %172 : vector<64x512xf32>
    %c0_71 = arith.constant 0 : index
    %c0_72 = arith.constant 0 : index
    %c0_73 = arith.constant 0 : index
    %174 = vector.load %arg13[%c0_71, %c0_72, %c0_73] : memref<1x512x128xf32, #tpu.memory_space<vmem>>, vector<1x512x128xf32>
    %175 = vector.shape_cast %174 : vector<1x512x128xf32> to vector<512x128xf32>
    %cst_74 = arith.constant dense<0.000000e+00> : vector<64x128xf32>
    %176 = tpu.matmul %173, %175, %cst_74 {dimension_numbers = #tpu.dot_dimension_numbers<[1], [0], [0], [1], [0, 0, 1, 1], [], []>} : vector<64x512xf32>, vector<512x128xf32>, vector<64x128xf32> -> vector<64x128xf32>
    %c0_75 = arith.constant 0 : index
    %c0_76 = arith.constant 0 : index
    %c0_77 = arith.constant 0 : index
    %177 = vector.load %arg14[%c0_75, %c0_76, %c0_77] : memref<1x1x128xf32, #tpu.memory_space<vmem>>, vector<1x1x128xf32>
    %178 = vector.shape_cast %177 : vector<1x1x128xf32> to vector<1x128xf32>
    %179 = vector.broadcast %178 : vector<1x128xf32> to vector<64x128xf32>
    %180 = arith.addf %176, %179 : vector<64x128xf32>
    %181 = vector.shape_cast %180 : vector<64x128xf32> to vector<4x16x128xf32>
    %182 = arith.addf %124, %181 : vector<4x16x128xf32>
    %c0_78 = arith.constant 0 : index
    %c0_79 = arith.constant 0 : index
    %c0_80 = arith.constant 0 : index
    %183 = vector.load %arg15[%c0_78, %c0_79, %c0_80] : memref<4x16x128xf32, #tpu.memory_space<vmem>>, vector<4x16x128xf32>
    tpu.vector_store %arg15[%c0_78, %c0_79, %c0_80], %182 {strides = array<i32>} : memref<4x16x128xf32, #tpu.memory_space<vmem>>, vector<4x16x128xf32>,
    return
  }
  func.func @transform_0(%arg0: i32, %arg1: i32) -> (i32, i32, i32) {
    %c0_i32 = arith.constant 0 : i32
    %c0_i32_0 = arith.constant 0 : i32
    %c0_i32_1 = arith.constant 0 : i32
    return %arg0, %c0_i32, %c0_i32_0 : i32, i32, i32
  }
  func.func @transform_1(%arg0: i32, %arg1: i32) -> (i32, i32, i32) {
    %c0_i32 = arith.constant 0 : i32
    %c0_i32_0 = arith.constant 0 : i32
    %c0_i32_1 = arith.constant 0 : i32
    return %arg1, %c0_i32, %c0_i32_0 : i32, i32, i32
  }
  func.func @transform_2(%arg0: i32, %arg1: i32) -> (i32, i32, i32) {
    %c0_i32 = arith.constant 0 : i32
    %c0_i32_0 = arith.constant 0 : i32
    %c0_i32_1 = arith.constant 0 : i32
    return %arg1, %c0_i32, %c0_i32_0 : i32, i32, i32
  }
  func.func @transform_3(%arg0: i32, %arg1: i32) -> (i32, i32, i32) {
    %c0_i32 = arith.constant 0 : i32
    %c0_i32_0 = arith.constant 0 : i32
    %c0_i32_1 = arith.constant 0 : i32
    return %arg1, %c0_i32, %c0_i32_0 : i32, i32, i32
  }
  func.func @transform_4(%arg0: i32, %arg1: i32) -> (i32, i32, i32) {
    %c0_i32 = arith.constant 0 : i32
    %c0_i32_0 = arith.constant 0 : i32
    %c0_i32_1 = arith.constant 0 : i32
    return %arg1, %c0_i32, %c0_i32_0 : i32, i32, i32
  }
  func.func @transform_5(%arg0: i32, %arg1: i32) -> (i32, i32, i32) {
    %c0_i32 = arith.constant 0 : i32
    %c0_i32_0 = arith.constant 0 : i32
    %c0_i32_1 = arith.constant 0 : i32
    return %arg1, %c0_i32, %c0_i32_0 : i32, i32, i32
  }
  func.func @transform_6(%arg0: i32, %arg1: i32) -> (i32, i32, i32) {
    %c0_i32 = arith.constant 0 : i32
    %c0_i32_0 = arith.constant 0 : i32
    %c0_i32_1 = arith.constant 0 : i32
    return %arg1, %c0_i32, %c0_i32_0 : i32, i32, i32
  }
  func.func @transform_7(%arg0: i32, %arg1: i32) -> (i32, i32, i32) {
    %c0_i32 = arith.constant 0 : i32
    %c0_i32_0 = arith.constant 0 : i32
    %c0_i32_1 = arith.constant 0 : i32
    return %arg1, %c0_i32, %c0_i32_0 : i32, i32, i32
  }
  func.func @transform_8(%arg0: i32, %arg1: i32) -> (i32, i32, i32) {
    %c0_i32 = arith.constant 0 : i32
    %c0_i32_0 = arith.constant 0 : i32
    %c0_i32_1 = arith.constant 0 : i32
    return %arg1, %c0_i32, %c0_i32_0 : i32, i32, i32
  }
  func.func @transform_9(%arg0: i32, %arg1: i32) -> (i32, i32, i32) {
    %c0_i32 = arith.constant 0 : i32
    %c0_i32_0 = arith.constant 0 : i32
    %c0_i32_1 = arith.constant 0 : i32
    return %arg1, %c0_i32, %c0_i32_0 : i32, i32, i32
  }
  func.func @transform_10(%arg0: i32, %arg1: i32) -> (i32, i32, i32) {
    %c0_i32 = arith.constant 0 : i32
    %c0_i32_0 = arith.constant 0 : i32
    %c0_i32_1 = arith.constant 0 : i32
    return %arg1, %c0_i32, %c0_i32_0 : i32, i32, i32
  }
  func.func @transform_11(%arg0: i32, %arg1: i32) -> (i32, i32, i32) {
    %c0_i32 = arith.constant 0 : i32
    %c0_i32_0 = arith.constant 0 : i32
    %c0_i32_1 = arith.constant 0 : i32
    return %arg1, %c0_i32, %c0_i32_0 : i32, i32, i32
  }
  func.func @transform_12(%arg0: i32, %arg1: i32) -> (i32, i32, i32) {
    %c0_i32 = arith.constant 0 : i32
    %c0_i32_0 = arith.constant 0 : i32
    %c0_i32_1 = arith.constant 0 : i32
    return %arg1, %c0_i32, %c0_i32_0 : i32, i32, i32
  }
  func.func @transform_13(%arg0: i32, %arg1: i32) -> (i32, i32, i32) {
    %c0_i32 = arith.constant 0 : i32
    %c0_i32_0 = arith.constant 0 : i32
    %c0_i32_1 = arith.constant 0 : i32
    return %arg0, %c0_i32, %c0_i32_0 : i32, i32, i32
  }
}

</mosaic_0001>

<llo_original>
// kernel: _lambda_.3
$region0: #{_lambda_.3}
  #allocation0 [shape = 'u32[]', space=smem, size = 0x4, offset = 0x4, fixed_abs, tag = 'smem constant byte address 0x4 - core index']
  #allocation1 [shape = 'u32[72,128]{1,0:T(1,128)}', space=vmem, size = 0x9000, scoped, tag = 'internal scratch']
  %s0 = inlined_call_operand.vmem [shape: f32[128,192], index: 0, kind: input, shape index: {}]
  %s1 = inlined_call_operand.vmem [shape: f32[192,128], index: 1, kind: input, shape index: {}]
  %s2 = inlined_call_operand.vmem [shape: f32[1,128], index: 2, kind: input, shape index: {}]
  %s3 = inlined_call_operand.vmem [shape: f32[128,128], index: 3, kind: output, shape index: {}]
  %s4 = sld [smem:[#allocation0]]
  $region22: #{_lambda_.3} parent=0
    _
  %s6 = ssub.s32 1, %s4
  %s7 = scalar_select 0, %s6, %s4
  // Predicated region
  $region2: #{_lambda_.3} parent=0 // pred_check
    _
  $region3: #{_lambda_.3} parent=0 // pred_check_branch
    %9 = sbr.rel (0) target = $region5
  $region4: #{_lambda_.3} parent=0 // pred_region
    _
  $region5: #{_lambda_.3} parent=0 // pred_fallthru
    _
  // Predicated region
  $region6: #{_lambda_.3} parent=0 // pred_check
    _
  $region7: #{_lambda_.3} parent=0 // pred_check_branch
    %11 = sbr.rel (0) target = $region9
  $region8: #{_lambda_.3} parent=0 // pred_region
    _
  $region9: #{_lambda_.3} parent=0 // pred_fallthru
    _
  // Predicated region
  $region10: #{_lambda_.3} parent=0 // pred_check
    _
  $region11: #{_lambda_.3} parent=0 // pred_check_branch
    %13 = sbr.rel (0) target = $region13
  $region12: #{_lambda_.3} parent=0 // pred_region
    _
  $region13: #{_lambda_.3} parent=0 // pred_fallthru
    _
  %v14 = vld [vmem:[%s0] sm:$0xff]
  %v15 = vld [vmem:[%s0 + $0x8] sm:$0xff]
  %v16 = vld [vmem:[%s0 + $0x10] sm:$0xff]
  %v17 = vld [vmem:[%s0 + $0x18] sm:$0xff]
  %v18 = vld [vmem:[%s0 + $0x20] sm:$0xff]
  %v19 = vld [vmem:[%s0 + $0x28] sm:$0xff]
  %v20 = vld [vmem:[%s0 + $0x30] sm:$0xff]
  %v21 = vld [vmem:[%s0 + $0x38] sm:$0xff]
  %v22 = vld [vmem:[%s0 + $0x40] sm:$0xff]
  %v23 = vld [vmem:[%s0 + $0x48] sm:$0xff]
  %v24 = vld [vmem:[%s0 + $0x50] sm:$0xff]
  %v25 = vld [vmem:[%s0 + $0x58] sm:$0xff]
  %v26 = vld [vmem:[%s0 + $0x60] sm:$0xff]
  %v27 = vld [vmem:[%s0 + $0x68] sm:$0xff]
  %v28 = vld [vmem:[%s0 + $0x70] sm:$0xff]
  %v29 = vld [vmem:[%s0 + $0x78] sm:$0xff]
  %v30 = vld [vmem:[%s0 + $0x80] sm:$0xff]
  %v31 = vld [vmem:[%s0 + $0x88] sm:$0xff]
  %v32 = vld [vmem:[%s0 + $0x90] sm:$0xff]
  %v33 = vld [vmem:[%s0 + $0x98] sm:$0xff]
  %v34 = vld [vmem:[%s0 + $0xa0] sm:$0xff]
  %v35 = vld [vmem:[%s0 + $0xa8] sm:$0xff]
  %v36 = vld [vmem:[%s0 + $0xb0] sm:$0xff]
  %v37 = vld [vmem:[%s0 + $0xb8] sm:$0xff]
  %v38 = vld [vmem:[%s0 + $0xc0] sm:$0xff]
  %v39 = vld [vmem:[%s0 + $0xc8] sm:$0xff]
  %v40 = vld [vmem:[%s0 + $0xd0] sm:$0xff]
  %v41 = vld [vmem:[%s0 + $0xd8] sm:$0xff]
  %v42 = vld [vmem:[%s0 + $0xe0] sm:$0xff]
  %v43 = vld [vmem:[%s0 + $0xe8] sm:$0xff]
  %v44 = vld [vmem:[%s0 + $0xf0] sm:$0xff]
  %v45 = vld [vmem:[%s0 + $0xf8] sm:$0xff]
  %v46 = vld [vmem:[%s1] sm:$0xff]
  %v47 = vld [vmem:[%s1 + $0x8] sm:$0xff]
  %v48 = vld [vmem:[%s1 + $0x10] sm:$0xff]
  %v49 = vld [vmem:[%s1 + $0x18] sm:$0xff]
  %v50 = vld [vmem:[%s1 + $0x20] sm:$0xff]
  %v51 = vld [vmem:[%s1 + $0x28] sm:$0xff]
  %v52 = vld [vmem:[%s1 + $0x30] sm:$0xff]
  %v53 = vld [vmem:[%s1 + $0x38] sm:$0xff]
  %v54 = vld [vmem:[%s1 + $0x40] sm:$0xff]
  %v55 = vld [vmem:[%s1 + $0x48] sm:$0xff]
  %v56 = vld [vmem:[%s1 + $0x50] sm:$0xff]
  %v57 = vld [vmem:[%s1 + $0x58] sm:$0xff]
  %v58 = vld [vmem:[%s1 + $0x60] sm:$0xff]
  %v59 = vld [vmem:[%s1 + $0x68] sm:$0xff]
  %v60 = vld [vmem:[%s1 + $0x70] sm:$0xff]
  %v61 = vld [vmem:[%s1 + $0x78] sm:$0xff]
  %v62 = vld [vmem:[%s1 + $0x80] sm:$0xff]
  %v63 = vld [vmem:[%s1 + $0x88] sm:$0xff]
  %v64 = vld [vmem:[%s1 + $0x90] sm:$0xff]
  %v65 = vld [vmem:[%s1 + $0x98] sm:$0xff]
  %v66 = vld [vmem:[%s1 + $0xa0] sm:$0xff]
  %v67 = vld [vmem:[%s1 + $0xa8] sm:$0xff]
  %v68 = vld [vmem:[%s1 + $0xb0] sm:$0xff]
  %v69 = vld [vmem:[%s1 + $0xb8] sm:$0xff]
  %v70 = vld [vmem:[%s2] sm:$0x1]
  %v72 = vperm.slane %v70, 0
  %vm74 = vcmask 523264
  %v76 = vsel %vm74, %v15, 0
  %v79 = vsel %vm74, %v17, 0
  %v82 = vsel %vm74, %v19, 0
  %v85 = vsel %vm74, %v21, 0
  %v88 = vsel %vm74, %v23, 0
  %v91 = vsel %vm74, %v25, 0
  %v94 = vsel %vm74, %v27, 0
  %v97 = vsel %vm74, %v29, 0
  %v100 = vsel %vm74, %v31, 0
  %v103 = vsel %vm74, %v33, 0
  %v106 = vsel %vm74, %v35, 0
  %v109 = vsel %vm74, %v37, 0
  %v112 = vsel %vm74, %v39, 0
  %v115 = vsel %vm74, %v41, 0
  %v118 = vsel %vm74, %v43, 0
  %v121 = vsel %vm74, %v45, 0
  %123 = vmatpush.msra.mxu0 %v61
  %124 = vmatpush.msra.mxu0 %v60
  %125 = vmatpush.msra.mxu0 %v59
  %126 = vmatpush.msra.mxu0 %v58
  %127 = vmatpush.msra.mxu0 %v57
  %128 = vmatpush.msra.mxu0 %v56
  %129 = vmatpush.msra.mxu0 %v55
  %130 = vmatpush.msra.mxu0 %v54
  %131 = vmatpush.msra.mxu0 %v53
  %132 = vmatpush.msra.mxu0 %v52
  %133 = vmatpush.msra.mxu0 %v51
  %134 = vmatpush.msra.mxu0 %v50
  %135 = vmatpush.msra.mxu0 %v49
  %136 = vmatpush.msra.mxu0 %v48
  %137 = vmatpush.msra.mxu0 %v47
  %138 = vmatpush.msra.mxu0 %v46
  %139 = vmatmul.f32.gmra.mxu0 %v14
  %v140 = vpop.f32.mrf.mxu0
  %v141 = vadd.f32 %v72, %v140
  %142 = vmatmul.f32.gmra.mxu0 %v16
  %v143 = vpop.f32.mrf.mxu0
  %v144 = vadd.f32 %v72, %v143
  %145 = vmatmul.f32.gmra.mxu0 %v18
  %v146 = vpop.f32.mrf.mxu0
  %v147 = vadd.f32 %v72, %v146
  %148 = vmatmul.f32.gmra.mxu0 %v20
  %v149 = vpop.f32.mrf.mxu0
  %v150 = vadd.f32 %v72, %v149
  %151 = vmatmul.f32.gmra.mxu0 %v22
  %v152 = vpop.f32.mrf.mxu0
  %v153 = vadd.f32 %v72, %v152
  %154 = vmatmul.f32.gmra.mxu0 %v24
  %v155 = vpop.f32.mrf.mxu0
  %v156 = vadd.f32 %v72, %v155
  %157 = vmatmul.f32.gmra.mxu0 %v26
  %v158 = vpop.f32.mrf.mxu0
  %v159 = vadd.f32 %v72, %v158
  %160 = vmatmul.f32.gmra.mxu0 %v28
  %v161 = vpop.f32.mrf.mxu0
  %v162 = vadd.f32 %v72, %v161
  %163 = vmatmul.f32.gmra.mxu0 %v30
  %v164 = vpop.f32.mrf.mxu0
  %v165 = vadd.f32 %v72, %v164
  %166 = vmatmul.f32.gmra.mxu0 %v32
  %v167 = vpop.f32.mrf.mxu0
  %v168 = vadd.f32 %v72, %v167
  %169 = vmatmul.f32.gmra.mxu0 %v34
  %v170 = vpop.f32.mrf.mxu0
  %v171 = vadd.f32 %v72, %v170
  %172 = vmatmul.f32.gmra.mxu0 %v36
  %v173 = vpop.f32.mrf.mxu0
  %v174 = vadd.f32 %v72, %v173
  %175 = vmatmul.f32.gmra.mxu0 %v38
  %v176 = vpop.f32.mrf.mxu0
  %v177 = vadd.f32 %v72, %v176
  %178 = vmatmul.f32.gmra.mxu0 %v40
  %v179 = vpop.f32.mrf.mxu0
  %v180 = vadd.f32 %v72, %v179
  %181 = vmatmul.f32.gmra.mxu0 %v42
  %v182 = vpop.f32.mrf.mxu0
  %v183 = vadd.f32 %v72, %v182
  %184 = vmatmul.f32.gmra.mxu0 %v44
  %v185 = vpop.f32.mrf.mxu0
  %v186 = vadd.f32 %v72, %v185
  %187 = vdwg.mxu0
  %188 = vmatpush.msra.mxu0 0.0
  %189 = vmatpush.msra.mxu0 0.0
  %190 = vmatpush.msra.mxu0 0.0
  %191 = vmatpush.msra.mxu0 0.0
  %192 = vmatpush.msra.mxu0 0.0
  %193 = vmatpush.msra.mxu0 0.0
  %194 = vmatpush.msra.mxu0 0.0
  %195 = vmatpush.msra.mxu0 0.0
  %196 = vmatpush.msra.mxu0 %v69
  %197 = vmatpush.msra.mxu0 %v68
  %198 = vmatpush.msra.mxu0 %v67
  %199 = vmatpush.msra.mxu0 %v66
  %200 = vmatpush.msra.mxu0 %v65
  %201 = vmatpush.msra.mxu0 %v64
  %202 = vmatpush.msra.mxu0 %v63
  %203 = vmatpush.msra.mxu0 %v62
  %204 = vmatmul.f32.gmra.mxu0 %v76
  %v205 = vpop.f32.mrf.mxu0
  %v206 = vadd.f32 %v141, %v205
  %207 = vmatmul.f32.gmra.mxu0 %v79
  %v208 = vpop.f32.mrf.mxu0
  %v209 = vadd.f32 %v144, %v208
  %210 = vmatmul.f32.gmra.mxu0 %v82
  %v211 = vpop.f32.mrf.mxu0
  %v212 = vadd.f32 %v147, %v211
  %213 = vmatmul.f32.gmra.mxu0 %v85
  %v214 = vpop.f32.mrf.mxu0
  %v215 = vadd.f32 %v150, %v214
  %216 = vmatmul.f32.gmra.mxu0 %v88
  %v217 = vpop.f32.mrf.mxu0
  %v218 = vadd.f32 %v153, %v217
  %219 = vmatmul.f32.gmra.mxu0 %v91
  %v220 = vpop.f32.mrf.mxu0
  %v221 = vadd.f32 %v156, %v220
  %222 = vmatmul.f32.gmra.mxu0 %v94
  %v223 = vpop.f32.mrf.mxu0
  %v224 = vadd.f32 %v159, %v223
  %225 = vmatmul.f32.gmra.mxu0 %v97
  %v226 = vpop.f32.mrf.mxu0
  %v227 = vadd.f32 %v162, %v226
  %228 = vmatmul.f32.gmra.mxu0 %v100
  %v229 = vpop.f32.mrf.mxu0
  %v230 = vadd.f32 %v165, %v229
  %231 = vmatmul.f32.gmra.mxu0 %v103
  %v232 = vpop.f32.mrf.mxu0
  %v233 = vadd.f32 %v168, %v232
  %234 = vmatmul.f32.gmra.mxu0 %v106
  %v235 = vpop.f32.mrf.mxu0
  %v236 = vadd.f32 %v171, %v235
  %237 = vmatmul.f32.gmra.mxu0 %v109
  %v238 = vpop.f32.mrf.mxu0
  %v239 = vadd.f32 %v174, %v238
  %240 = vmatmul.f32.gmra.mxu0 %v112
  %v241 = vpop.f32.mrf.mxu0
  %v242 = vadd.f32 %v177, %v241
  %243 = vmatmul.f32.gmra.mxu0 %v115
  %v244 = vpop.f32.mrf.mxu0
  %v245 = vadd.f32 %v180, %v244
  %246 = vmatmul.f32.gmra.mxu0 %v118
  %v247 = vpop.f32.mrf.mxu0
  %v248 = vadd.f32 %v183, %v247
  %249 = vmatmul.f32.gmra.mxu0 %v121
  %v250 = vpop.f32.mrf.mxu0
  %v251 = vadd.f32 %v186, %v250
  %252 = vdwg.mxu0
  %253 = vst [vmem:[%s3] sm:$0xff] %v206
  %254 = vst [vmem:[%s3 + $0x8] sm:$0xff] %v209
  %255 = vst [vmem:[%s3 + $0x10] sm:$0xff] %v212
  %256 = vst [vmem:[%s3 + $0x18] sm:$0xff] %v215
  %257 = vst [vmem:[%s3 + $0x20] sm:$0xff] %v218
  %258 = vst [vmem:[%s3 + $0x28] sm:$0xff] %v221
  %259 = vst [vmem:[%s3 + $0x30] sm:$0xff] %v224
  %260 = vst [vmem:[%s3 + $0x38] sm:$0xff] %v227
  %261 = vst [vmem:[%s3 + $0x40] sm:$0xff] %v230
  %262 = vst [vmem:[%s3 + $0x48] sm:$0xff] %v233
  %263 = vst [vmem:[%s3 + $0x50] sm:$0xff] %v236
  %264 = vst [vmem:[%s3 + $0x58] sm:$0xff] %v239
  %265 = vst [vmem:[%s3 + $0x60] sm:$0xff] %v242
  %266 = vst [vmem:[%s3 + $0x68] sm:$0xff] %v245
  %267 = vst [vmem:[%s3 + $0x70] sm:$0xff] %v248
  %268 = vst [vmem:[%s3 + $0x78] sm:$0xff] %v251
  // Predicated region
  $region14: #{_lambda_.3} parent=0 // pred_check
    _
  $region15: #{_lambda_.3} parent=0 // pred_check_branch
    %270 = sbr.rel (0) target = $region17
  $region16: #{_lambda_.3} parent=0 // pred_region
    _
  $region17: #{_lambda_.3} parent=0 // pred_fallthru
    _
  // Predicated region
  $region18: #{_lambda_.3} parent=0 // pred_check
    _
  $region19: #{_lambda_.3} parent=0 // pred_check_branch
    %272 = sbr.rel (0) target = $region21
  $region20: #{_lambda_.3} parent=0 // pred_region
    _
  $region21: #{_lambda_.3} parent=0 // pred_fallthru
    _

// kernel: _lambda_.5
$region0: #{_lambda_.5}
  #allocation0 [shape = 'u32[]', space=smem, size = 0x4, offset = 0x4, fixed_abs, tag = 'smem constant byte address 0x4 - core index']
  #allocation1 [shape = 'u32[72,128]{1,0:T(1,128)}', space=vmem, size = 0x9000, scoped, tag = 'internal scratch']
  %s0 = inlined_call_operand.vmem [shape: f32[8,16,128], index: 0, kind: input, shape index: {}]
  %s1 = inlined_call_operand.vmem [shape: f32[1,128], index: 1, kind: input, shape index: {}]
  %s2 = inlined_call_operand.vmem [shape: f32[1,128], index: 2, kind: input, shape index: {}]
  %s3 = inlined_call_operand.vmem [shape: f32[128,128], index: 3, kind: input, shape index: {}]
  %s4 = inlined_call_operand.vmem [shape: f32[1,128], index: 4, kind: input, shape index: {}]
  %s5 = inlined_call_operand.hbm [shape: f32[8,128], index: 5, kind: output, shape index: {}]
  %s6 = sld [smem:[#allocation0]]
  $region30: #{_lambda_.5} parent=0
    _
  %s8 = ssub.s32 1, %s6
  %s9 = scalar_select 0, %s8, %s6
  $region1: #{_lambda_.5} parent=0
    #allocation2 [shape = 'u8[4096]{0}', space=vmem, size = 0x1000, scoped, tag = 'output window, operand 0, single buffered']
    #allocation3 [shape = 's32[1]{0}', space=sflag, size = 0x4, scoped, tag = 'scoped memory for _lambda_.5']
    %10 = vsyncpa [#allocation3], 0
    // Predicated region
    $region2: #{_lambda_.5} parent=1 // pred_check
      _
    $region3: #{_lambda_.5} parent=1 // pred_check_branch
      %12 = sbr.rel (0) target = $region5
    $region4: #{_lambda_.5} parent=1 // pred_region
      _
    $region5: #{_lambda_.5} parent=1 // pred_fallthru
      _
    // Predicated region
    $region6: #{_lambda_.5} parent=1 // pred_check
      _
    $region7: #{_lambda_.5} parent=1 // pred_check_branch
      %14 = sbr.rel (0) target = $region9
    $region8: #{_lambda_.5} parent=1 // pred_region
      _
    $region9: #{_lambda_.5} parent=1 // pred_fallthru
      _
    // Predicated region
    $region10: #{_lambda_.5} parent=1 // pred_check
      _
    $region11: #{_lambda_.5} parent=1 // pred_check_branch
      %16 = sbr.rel (0) target = $region13
    $region12: #{_lambda_.5} parent=1 // pred_region
      _
    $region13: #{_lambda_.5} parent=1 // pred_fallthru
      _
    // Predicated region
    $region14: #{_lambda_.5} parent=1 // pred_check
      _
    $region15: #{_lambda_.5} parent=1 // pred_check_branch
      %18 = sbr.rel (0) target = $region17
    $region16: #{_lambda_.5} parent=1 // pred_region
      _
    $region17: #{_lambda_.5} parent=1 // pred_fallthru
      _
    // Predicated region
    $region18: #{_lambda_.5} parent=1 // pred_check
      _
    $region19: #{_lambda_.5} parent=1 // pred_check_branch
      %20 = sbr.rel (0) target = $region21
    $region20: #{_lambda_.5} parent=1 // pred_region
      _
    $region21: #{_lambda_.5} parent=1 // pred_fallthru
      _
    %v21 = vld [vmem:[%s0] sm:$0xff]
    %v22 = vld [vmem:[%s0 + $0x8] sm:$0xff]
    %v23 = vld [vmem:[%s0 + $0x10] sm:$0xff]
    %v24 = vld [vmem:[%s0 + $0x18] sm:$0xff]
    %v25 = vld [vmem:[%s0 + $0x20] sm:$0xff]
    %v26 = vld [vmem:[%s0 + $0x28] sm:$0xff]
    %v27 = vld [vmem:[%s0 + $0x30] sm:$0xff]
    %v28 = vld [vmem:[%s0 + $0x38] sm:$0xff]
    %v29 = vld [vmem:[%s0 + $0x40] sm:$0xff]
    %v30 = vld [vmem:[%s0 + $0x48] sm:$0xff]
    %v31 = vld [vmem:[%s0 + $0x50] sm:$0xff]
    %v32 = vld [vmem:[%s0 + $0x58] sm:$0xff]
    %v33 = vld [vmem:[%s0 + $0x60] sm:$0xff]
    %v34 = vld [vmem:[%s0 + $0x68] sm:$0xff]
    %v35 = vld [vmem:[%s0 + $0x70] sm:$0xff]
    %v36 = vld [vmem:[%s0 + $0x78] sm:$0xff]
    %v37 = vld [vmem:[%s1] sm:$0x1]
    %v38 = vld [vmem:[%s2] sm:$0x1]
    %39 = vadd.xlane.f32.xlu0 %v21
    %v40 = vpop.xlane.xlu0 %39
    %41 = vadd.xlane.f32.xlu0 %v22
    %v42 = vpop.xlane.xlu0 %41
    %43 = vadd.xlane.f32.xlu0 %v23
    %v44 = vpop.xlane.xlu0 %43
    %45 = vadd.xlane.f32.xlu0 %v24
    %v46 = vpop.xlane.xlu0 %45
    %47 = vadd.xlane.f32.xlu0 %v25
    %v48 = vpop.xlane.xlu0 %47
    %49 = vadd.xlane.f32.xlu0 %v26
    %v50 = vpop.xlane.xlu0 %49
    %51 = vadd.xlane.f32.xlu0 %v27
    %v52 = vpop.xlane.xlu0 %51
    %53 = vadd.xlane.f32.xlu0 %v28
    %v54 = vpop.xlane.xlu0 %53
    %55 = vadd.xlane.f32.xlu0 %v29
    %v56 = vpop.xlane.xlu0 %55
    %57 = vadd.xlane.f32.xlu0 %v30
    %v58 = vpop.xlane.xlu0 %57
    %59 = vadd.xlane.f32.xlu0 %v31
    %v60 = vpop.xlane.xlu0 %59
    %61 = vadd.xlane.f32.xlu0 %v32
    %v62 = vpop.xlane.xlu0 %61
    %63 = vadd.xlane.f32.xlu0 %v33
    %v64 = vpop.xlane.xlu0 %63
    %65 = vadd.xlane.f32.xlu0 %v34
    %v66 = vpop.xlane.xlu0 %65
    %67 = vadd.xlane.f32.xlu0 %v35
    %v68 = vpop.xlane.xlu0 %67
    %69 = vadd.xlane.f32.xlu0 %v36
    %v70 = vpop.xlane.xlu0 %69
    %v71 = vrcp.pop 128.0
    %v72 = vmul.f32 128.0, %v71
    %v73 = vsub.f32 1.0, %v72
    %v74 = vmul.f32 %v71, %v73
    %v75 = vadd.f32 %v71, %v74
    %vm76 = vweird.f32 %v71
    %v77 = vsel %vm76, %v71, %v75
    %v78 = vmul.f32 %v40, %v77
    %v79 = vmul.f32 %v42, %v77
    %v80 = vmul.f32 %v44, %v77
    %v81 = vmul.f32 %v46, %v77
    %v82 = vmul.f32 %v48, %v77
    %v83 = vmul.f32 %v50, %v77
    %v84 = vmul.f32 %v52, %v77
    %v85 = vmul.f32 %v54, %v77
    %v86 = vmul.f32 %v56, %v77
    %v87 = vmul.f32 %v58, %v77
    %v88 = vmul.f32 %v60, %v77
    %v89 = vmul.f32 %v62, %v77
    %v90 = vmul.f32 %v64, %v77
    %v91 = vmul.f32 %v66, %v77
    %v92 = vmul.f32 %v68, %v77
    %v93 = vmul.f32 %v70, %v77
    %v94 = vsub.f32 %v21, %v78
    %v95 = vsub.f32 %v22, %v79
    %v96 = vsub.f32 %v23, %v80
    %v97 = vsub.f32 %v24, %v81
    %v98 = vsub.f32 %v25, %v82
    %v99 = vsub.f32 %v26, %v83
    %v100 = vsub.f32 %v27, %v84
    %v101 = vsub.f32 %v28, %v85
    %v102 = vsub.f32 %v29, %v86
    %v103 = vsub.f32 %v30, %v87
    %v104 = vsub.f32 %v31, %v88
    %v105 = vsub.f32 %v32, %v89
    %v106 = vsub.f32 %v33, %v90
    %v107 = vsub.f32 %v34, %v91
    %v108 = vsub.f32 %v35, %v92
    %v109 = vsub.f32 %v36, %v93
    %v110 = vmul.f32 %v94, %v94
    %v111 = vmul.f32 %v95, %v95
    %v112 = vmul.f32 %v96, %v96
    %v113 = vmul.f32 %v97, %v97
    %v114 = vmul.f32 %v98, %v98
    %v115 = vmul.f32 %v99, %v99
    %v116 = vmul.f32 %v100, %v100
    %v117 = vmul.f32 %v101, %v101
    %v118 = vmul.f32 %v102, %v102
    %v119 = vmul.f32 %v103, %v103
    %v120 = vmul.f32 %v104, %v104
    %v121 = vmul.f32 %v105, %v105
    %v122 = vmul.f32 %v106, %v106
    %v123 = vmul.f32 %v107, %v107
    %v124 = vmul.f32 %v108, %v108
    %v125 = vmul.f32 %v109, %v109
    %126 = vadd.xlane.f32.xlu0 %v110
    %v127 = vpop.xlane.xlu0 %126
    %128 = vadd.xlane.f32.xlu0 %v111
    %v129 = vpop.xlane.xlu0 %128
    %130 = vadd.xlane.f32.xlu0 %v112
    %v131 = vpop.xlane.xlu0 %130
    %132 = vadd.xlane.f32.xlu0 %v113
    %v133 = vpop.xlane.xlu0 %132
    %134 = vadd.xlane.f32.xlu0 %v114
    %v135 = vpop.xlane.xlu0 %134
    %136 = vadd.xlane.f32.xlu0 %v115
    %v137 = vpop.xlane.xlu0 %136
    %138 = vadd.xlane.f32.xlu0 %v116
    %v139 = vpop.xlane.xlu0 %138
    %140 = vadd.xlane.f32.xlu0 %v117
    %v141 = vpop.xlane.xlu0 %140
    %142 = vadd.xlane.f32.xlu0 %v118
    %v143 = vpop.xlane.xlu0 %142
    %144 = vadd.xlane.f32.xlu0 %v119
    %v145 = vpop.xlane.xlu0 %144
    %146 = vadd.xlane.f32.xlu0 %v120
    %v147 = vpop.xlane.xlu0 %146
    %148 = vadd.xlane.f32.xlu0 %v121
    %v149 = vpop.xlane.xlu0 %148
    %150 = vadd.xlane.f32.xlu0 %v122
    %v151 = vpop.xlane.xlu0 %150
    %152 = vadd.xlane.f32.xlu0 %v123
    %v153 = vpop.xlane.xlu0 %152
    %154 = vadd.xlane.f32.xlu0 %v124
    %v155 = vpop.xlane.xlu0 %154
    %156 = vadd.xlane.f32.xlu0 %v125
    %v157 = vpop.xlane.xlu0 %156
    %v158 = vmul.f32 %v127, %v77
    %v159 = vmul.f32 %v129, %v77
    %v160 = vmul.f32 %v131, %v77
    %v161 = vmul.f32 %v133, %v77
    %v162 = vmul.f32 %v135, %v77
    %v163 = vmul.f32 %v137, %v77
    %v164 = vmul.f32 %v139, %v77
    %v165 = vmul.f32 %v141, %v77
    %v166 = vmul.f32 %v143, %v77
    %v167 = vmul.f32 %v145, %v77
    %v168 = vmul.f32 %v147, %v77
    %v169 = vmul.f32 %v149, %v77
    %v170 = vmul.f32 %v151, %v77
    %v171 = vmul.f32 %v153, %v77
    %v172 = vmul.f32 %v155, %v77
    %v173 = vmul.f32 %v157, %v77
    %v174 = vadd.f32 %v158, 1e-05
    %v175 = vadd.f32 %v159, 1e-05
    %v176 = vadd.f32 %v160, 1e-05
    %v177 = vadd.f32 %v161, 1e-05
    %v178 = vadd.f32 %v162, 1e-05
    %v179 = vadd.f32 %v163, 1e-05
    %v180 = vadd.f32 %v164, 1e-05
    %v181 = vadd.f32 %v165, 1e-05
    %v182 = vadd.f32 %v166, 1e-05
    %v183 = vadd.f32 %v167, 1e-05
    %v184 = vadd.f32 %v168, 1e-05
    %v185 = vadd.f32 %v169, 1e-05
    %v186 = vadd.f32 %v170, 1e-05
    %v187 = vadd.f32 %v171, 1e-05
    %v188 = vadd.f32 %v172, 1e-05
    %v189 = vadd.f32 %v173, 1e-05
    %v190 = vrsqrt.pop %v174
    %v191 = vmul.f32 %v190, %v174
    %v192 = vmul.f32 %v191, %v190
    %v193 = vmul.f32 0.5, %v192
    %v194 = vsub.f32 1.5, %v193
    %v195 = vmul.f32 %v190, %v194
    %vm196 = vweird.f32 %v174
    %vm197 = vweird.f32 %v190
    %vm198 = vmor %vm196, %vm197
    %v199 = vsel %vm198, %v190, %v195
    %v200 = vrsqrt.pop %v175
    %v201 = vmul.f32 %v200, %v175
    %v202 = vmul.f32 %v201, %v200
    %v203 = vmul.f32 0.5, %v202
    %v204 = vsub.f32 1.5, %v203
    %v205 = vmul.f32 %v200, %v204
    %vm206 = vweird.f32 %v175
    %vm207 = vweird.f32 %v200
    %vm208 = vmor %vm206, %vm207
    %v209 = vsel %vm208, %v200, %v205
    %v210 = vrsqrt.pop %v176
    %v211 = vmul.f32 %v210, %v176
    %v212 = vmul.f32 %v211, %v210
    %v213 = vmul.f32 0.5, %v212
    %v214 = vsub.f32 1.5, %v213
    %v215 = vmul.f32 %v210, %v214
    %vm216 = vweird.f32 %v176
    %vm217 = vweird.f32 %v210
    %vm218 = vmor %vm216, %vm217
    %v219 = vsel %vm218, %v210, %v215
    %v220 = vrsqrt.pop %v177
    %v221 = vmul.f32 %v220, %v177
    %v222 = vmul.f32 %v221, %v220
    %v223 = vmul.f32 0.5, %v222
    %v224 = vsub.f32 1.5, %v223
    %v225 = vmul.f32 %v220, %v224
    %vm226 = vweird.f32 %v177
    %vm227 = vweird.f32 %v220
    %vm228 = vmor %vm226, %vm227
    %v229 = vsel %vm228, %v220, %v225
    %v230 = vrsqrt.pop %v178
    %v231 = vmul.f32 %v230, %v178
    %v232 = vmul.f32 %v231, %v230
    %v233 = vmul.f32 0.5, %v232
    %v234 = vsub.f32 1.5, %v233
    %v235 = vmul.f32 %v230, %v234
    %vm236 = vweird.f32 %v178
    %vm237 = vweird.f32 %v230
    %vm238 = vmor %vm236, %vm237
    %v239 = vsel %vm238, %v230, %v235
    %v240 = vrsqrt.pop %v179
    %v241 = vmul.f32 %v240, %v179
    %v242 = vmul.f32 %v241, %v240
    %v243 = vmul.f32 0.5, %v242
    %v244 = vsub.f32 1.5, %v243
    %v245 = vmul.f32 %v240, %v244
    %vm246 = vweird.f32 %v179
    %vm247 = vweird.f32 %v240
    %vm248 = vmor %vm246, %vm247
    %v249 = vsel %vm248, %v240, %v245
    %v250 = vrsqrt.pop %v180
    %v251 = vmul.f32 %v250, %v180
    %v252 = vmul.f32 %v251, %v250
    %v253 = vmul.f32 0.5, %v252
    %v254 = vsub.f32 1.5, %v253
    %v255 = vmul.f32 %v250, %v254
    %vm256 = vweird.f32 %v180
    %vm257 = vweird.f32 %v250
    %vm258 = vmor %vm256, %vm257
    %v259 = vsel %vm258, %v250, %v255
    %v260 = vrsqrt.pop %v181
    %v261 = vmul.f32 %v260, %v181
    %v262 = vmul.f32 %v261, %v260
    %v263 = vmul.f32 0.5, %v262
    %v264 = vsub.f32 1.5, %v263
    %v265 = vmul.f32 %v260, %v264
    %vm266 = vweird.f32 %v181
    %vm267 = vweird.f32 %v260
    %vm268 = vmor %vm266, %vm267
    %v269 = vsel %vm268, %v260, %v265
    %v270 = vrsqrt.pop %v182
    %v271 = vmul.f32 %v270, %v182
    %v272 = vmul.f32 %v271, %v270
    %v273 = vmul.f32 0.5, %v272
    %v274 = vsub.f32 1.5, %v273
    %v275 = vmul.f32 %v270, %v274
    %vm276 = vweird.f32 %v182
    %vm277 = vweird.f32 %v270
    %vm278 = vmor %vm276, %vm277
    %v279 = vsel %vm278, %v270, %v275
    %v280 = vrsqrt.pop %v183
    %v281 = vmul.f32 %v280, %v183
    %v282 = vmul.f32 %v281, %v280
    %v283 = vmul.f32 0.5, %v282
    %v284 = vsub.f32 1.5, %v283
    %v285 = vmul.f32 %v280, %v284
    %vm286 = vweird.f32 %v183
    %vm287 = vweird.f32 %v280
    %vm288 = vmor %vm286, %vm287
    %v289 = vsel %vm288, %v280, %v285
    %v290 = vrsqrt.pop %v184
    %v291 = vmul.f32 %v290, %v184
    %v292 = vmul.f32 %v291, %v290
    %v293 = vmul.f32 0.5, %v292
    %v294 = vsub.f32 1.5, %v293
    %v295 = vmul.f32 %v290, %v294
    %vm296 = vweird.f32 %v184
    %vm297 = vweird.f32 %v290
    %vm298 = vmor %vm296, %vm297
    %v299 = vsel %vm298, %v290, %v295
    %v300 = vrsqrt.pop %v185
    %v301 = vmul.f32 %v300, %v185
    %v302 = vmul.f32 %v301, %v300
    %v303 = vmul.f32 0.5, %v302
    %v304 = vsub.f32 1.5, %v303
    %v305 = vmul.f32 %v300, %v304
    %vm306 = vweird.f32 %v185
    %vm307 = vweird.f32 %v300
    %vm308 = vmor %vm306, %vm307
    %v309 = vsel %vm308, %v300, %v305
    %v310 = vrsqrt.pop %v186
    %v311 = vmul.f32 %v310, %v186
    %v312 = vmul.f32 %v311, %v310
    %v313 = vmul.f32 0.5, %v312
    %v314 = vsub.f32 1.5, %v313
    %v315 = vmul.f32 %v310, %v314
    %vm316 = vweird.f32 %v186
    %vm317 = vweird.f32 %v310
    %vm318 = vmor %vm316, %vm317
    %v319 = vsel %vm318, %v310, %v315
    %v320 = vrsqrt.pop %v187
    %v321 = vmul.f32 %v320, %v187
    %v322 = vmul.f32 %v321, %v320
    %v323 = vmul.f32 0.5, %v322
    %v324 = vsub.f32 1.5, %v323
    %v325 = vmul.f32 %v320, %v324
    %vm326 = vweird.f32 %v187
    %vm327 = vweird.f32 %v320
    %vm328 = vmor %vm326, %vm327
    %v329 = vsel %vm328, %v320, %v325
    %v330 = vrsqrt.pop %v188
    %v331 = vmul.f32 %v330, %v188
    %v332 = vmul.f32 %v331, %v330
    %v333 = vmul.f32 0.5, %v332
    %v334 = vsub.f32 1.5, %v333
    %v335 = vmul.f32 %v330, %v334
    %vm336 = vweird.f32 %v188
    %vm337 = vweird.f32 %v330
    %vm338 = vmor %vm336, %vm337
    %v339 = vsel %vm338, %v330, %v335
    %v340 = vrsqrt.pop %v189
    %v341 = vmul.f32 %v340, %v189
    %v342 = vmul.f32 %v341, %v340
    %v343 = vmul.f32 0.5, %v342
    %v344 = vsub.f32 1.5, %v343
    %v345 = vmul.f32 %v340, %v344
    %vm346 = vweird.f32 %v189
    %vm347 = vweird.f32 %v340
    %vm348 = vmor %vm346, %vm347
    %v349 = vsel %vm348, %v340, %v345
    %v350 = vmul.f32 %v94, %v199
    %v351 = vmul.f32 %v95, %v209
    %v352 = vmul.f32 %v96, %v219
    %v353 = vmul.f32 %v97, %v229
    %v354 = vmul.f32 %v98, %v239
    %v355 = vmul.f32 %v99, %v249
    %v356 = vmul.f32 %v100, %v259
    %v357 = vmul.f32 %v101, %v269
    %v358 = vmul.f32 %v102, %v279
    %v359 = vmul.f32 %v103, %v289
    %v360 = vmul.f32 %v104, %v299
    %v361 = vmul.f32 %v105, %v309
    %v362 = vmul.f32 %v106, %v319
    %v363 = vmul.f32 %v107, %v329
    %v364 = vmul.f32 %v108, %v339
    %v365 = vmul.f32 %v109, %v349
    %v367 = vperm.slane %v37, 0
    %v369 = vmul.f32 %v350, %v367
    %v370 = vmul.f32 %v351, %v367
    %v371 = vmul.f32 %v352, %v367
    %v372 = vmul.f32 %v353, %v367
    %v373 = vmul.f32 %v354, %v367
    %v374 = vmul.f32 %v355, %v367
    %v375 = vmul.f32 %v356, %v367
    %v376 = vmul.f32 %v357, %v367
    %v377 = vmul.f32 %v358, %v367
    %v378 = vmul.f32 %v359, %v367
    %v379 = vmul.f32 %v360, %v367
    %v380 = vmul.f32 %v361, %v367
    %v381 = vmul.f32 %v362, %v367
    %v382 = vmul.f32 %v363, %v367
    %v383 = vmul.f32 %v364, %v367
    %v384 = vmul.f32 %v365, %v367
    %v386 = vperm.slane %v38, 0
    %v388 = vadd.f32 %v369, %v386
    %v389 = vadd.f32 %v370, %v386
    %v390 = vadd.f32 %v371, %v386
    %v391 = vadd.f32 %v372, %v386
    %v392 = vadd.f32 %v373, %v386
    %v393 = vadd.f32 %v374, %v386
    %v394 = vadd.f32 %v375, %v386
    %v395 = vadd.f32 %v376, %v386
    %v396 = vadd.f32 %v377, %v386
    %v397 = vadd.f32 %v378, %v386
    %v398 = vadd.f32 %v379, %v386
    %v399 = vadd.f32 %v380, %v386
    %v400 = vadd.f32 %v381, %v386
    %v401 = vadd.f32 %v382, %v386
    %v402 = vadd.f32 %v383, %v386
    %v403 = vadd.f32 %v384, %v386
    %v404 = vadd.f32 %v388, %v389
    %v405 = vrot.slane %v404, 4
    %v406 = vadd.f32 %v404, %v405
    %v407 = vrot.slane %v406, 2
    %v408 = vadd.f32 %v406, %v407
    %v409 = vrot.slane %v408, 1
    %v410 = vadd.f32 %v408, %v409
    %v411 = vadd.f32 %v390, %v391
    %v412 = vrot.slane %v411, 4
    %v413 = vadd.f32 %v411, %v412
    %v414 = vrot.slane %v413, 2
    %v415 = vadd.f32 %v413, %v414
    %v416 = vrot.slane %v415, 1
    %v417 = vadd.f32 %v415, %v416
    %v418 = vadd.f32 %v392, %v393
    %v419 = vrot.slane %v418, 4
    %v420 = vadd.f32 %v418, %v419
    %v421 = vrot.slane %v420, 2
    %v422 = vadd.f32 %v420, %v421
    %v423 = vrot.slane %v422, 1
    %v424 = vadd.f32 %v422, %v423
    %v425 = vadd.f32 %v394, %v395
    %v426 = vrot.slane %v425, 4
    %v427 = vadd.f32 %v425, %v426
    %v428 = vrot.slane %v427, 2
    %v429 = vadd.f32 %v427, %v428
    %v430 = vrot.slane %v429, 1
    %v431 = vadd.f32 %v429, %v430
    %v432 = vadd.f32 %v396, %v397
    %v433 = vrot.slane %v432, 4
    %v434 = vadd.f32 %v432, %v433
    %v435 = vrot.slane %v434, 2
    %v436 = vadd.f32 %v434, %v435
    %v437 = vrot.slane %v436, 1
    %v438 = vadd.f32 %v436, %v437
    %v439 = vadd.f32 %v398, %v399
    %v440 = vrot.slane %v439, 4
    %v441 = vadd.f32 %v439, %v440
    %v442 = vrot.slane %v441, 2
    %v443 = vadd.f32 %v441, %v442
    %v444 = vrot.slane %v443, 1
    %v445 = vadd.f32 %v443, %v444
    %v446 = vadd.f32 %v400, %v401
    %v447 = vrot.slane %v446, 4
    %v448 = vadd.f32 %v446, %v447
    %v449 = vrot.slane %v448, 2
    %v450 = vadd.f32 %v448, %v449
    %v451 = vrot.slane %v450, 1
    %v452 = vadd.f32 %v450, %v451
    %v453 = vadd.f32 %v402, %v403
    %v454 = vrot.slane %v453, 4
    %v455 = vadd.f32 %v453, %v454
    %v456 = vrot.slane %v455, 2
    %v457 = vadd.f32 %v455, %v456
    %v458 = vrot.slane %v457, 1
    %v459 = vadd.f32 %v457, %v458
    %v460 = vrcp.pop 16.0
    %v461 = vmul.f32 16.0, %v460
    %v462 = vsub.f32 1.0, %v461
    %v463 = vmul.f32 %v460, %v462
    %v464 = vadd.f32 %v460, %v463
    %vm465 = vweird.f32 %v460
    %v466 = vsel %vm465, %v460, %v464
    %v467 = vmul.f32 %v410, %v466
    %v468 = vmul.f32 %v417, %v466
    %v469 = vmul.f32 %v424, %v466
    %v470 = vmul.f32 %v431, %v466
    %v471 = vmul.f32 %v438, %v466
    %v472 = vmul.f32 %v445, %v466
    %v473 = vmul.f32 %v452, %v466
    %v474 = vmul.f32 %v459, %v466
    %v475 = vld [vmem:[%s3] sm:$0xff]
    %v476 = vld [vmem:[%s3 + $0x8] sm:$0xff]
    %v477 = vld [vmem:[%s3 + $0x10] sm:$0xff]
    %v478 = vld [vmem:[%s3 + $0x18] sm:$0xff]
    %v479 = vld [vmem:[%s3 + $0x20] sm:$0xff]
    %v480 = vld [vmem:[%s3 + $0x28] sm:$0xff]
    %v481 = vld [vmem:[%s3 + $0x30] sm:$0xff]
    %v482 = vld [vmem:[%s3 + $0x38] sm:$0xff]
    %v483 = vld [vmem:[%s3 + $0x40] sm:$0xff]
    %v484 = vld [vmem:[%s3 + $0x48] sm:$0xff]
    %v485 = vld [vmem:[%s3 + $0x50] sm:$0xff]
    %v486 = vld [vmem:[%s3 + $0x58] sm:$0xff]
    %v487 = vld [vmem:[%s3 + $0x60] sm:$0xff]
    %v488 = vld [vmem:[%s3 + $0x68] sm:$0xff]
    %v489 = vld [vmem:[%s3 + $0x70] sm:$0xff]
    %v490 = vld [vmem:[%s3 + $0x78] sm:$0xff]
    %v491 = vld [vmem:[%s4] sm:$0x1]
    %v493 = vperm.slane %v491, 0
    %vm503 = vcmask 1041409
    %v504 = vsel %vm503, %v468, %v467
    %vm505 = vcmask 1042434
    %v506 = vsel %vm505, %v469, %v504
    %vm507 = vcmask 1043459
    %v508 = vsel %vm507, %v470, %v506
    %vm509 = vcmask 1044484
    %v510 = vsel %vm509, %v471, %v508
    %vm511 = vcmask 1045509
    %v512 = vsel %vm511, %v472, %v510
    %vm513 = vcmask 1046534
    %v514 = vsel %vm513, %v473, %v512
    %vm515 = vcmask 1047559
    %v516 = vsel %vm515, %v474, %v514
    %518 = vmatpush.msra.mxu0 %v490
    %519 = vmatpush.msra.mxu0 %v489
    %520 = vmatpush.msra.mxu0 %v488
    %521 = vmatpush.msra.mxu0 %v487
    %522 = vmatpush.msra.mxu0 %v486
    %523 = vmatpush.msra.mxu0 %v485
    %524 = vmatpush.msra.mxu0 %v484
    %525 = vmatpush.msra.mxu0 %v483
    %526 = vmatpush.msra.mxu0 %v482
    %527 = vmatpush.msra.mxu0 %v481
    %528 = vmatpush.msra.mxu0 %v480
    %529 = vmatpush.msra.mxu0 %v479
    %530 = vmatpush.msra.mxu0 %v478
    %531 = vmatpush.msra.mxu0 %v477
    %532 = vmatpush.msra.mxu0 %v476
    %533 = vmatpush.msra.mxu0 %v475
    %534 = vmatmul.f32.gmra.mxu0 %v516
    %v535 = vpop.f32.mrf.mxu0
    %v536 = vadd.f32 %v493, %v535
    %537 = vdwg.mxu0
    %538 = vst [vmem:[#allocation2] sm:$0xff] %v536
    // Predicated region
    $region22: #{_lambda_.5} parent=1 // pred_check
      _
    $region23: #{_lambda_.5} parent=1 // pred_check_branch
      %540 = sbr.rel (0) target = $region25
    $region24: #{_lambda_.5} parent=1 // pred_region
      %542 = vsyncadd [#allocation3], 0
      %s544 = sshll.u32 [#allocation2], 4
      %s545 = int_to_ptr.vmem [resolvable:$true] %s544
      %s546 = sshll.u32 %s5, 4
      %s547 = int_to_ptr.hbm [resolvable:$true] %s546
      %549 = dma.vmem_to_hbm [thread:$0]  %s545, 128, %s547, [#allocation3]
    $region25: #{_lambda_.5} parent=1 // pred_fallthru
      _
    // Predicated region
    $region26: #{_lambda_.5} parent=1 // pred_check
      _
    $region27: #{_lambda_.5} parent=1 // pred_check_branch
      %551 = sbr.rel (0) target = $region29
    $region28: #{_lambda_.5} parent=1 // pred_region
      %553 = dma.done [#allocation3], 128
    $region29: #{_lambda_.5} parent=1 // pred_fallthru
      _
    %554 = vsyncpa [#allocation3], 1

// kernel: _lambda_.4
$region0: #{_lambda_.4}
  #allocation0 [shape = 'u32[]', space=smem, size = 0x4, offset = 0x4, fixed_abs, tag = 'smem constant byte address 0x4 - core index']
  #allocation1 [shape = 'u32[72,128]{1,0:T(1,128)}', space=vmem, size = 0x9000, scoped, tag = 'internal scratch']
  %s0 = inlined_call_operand.vmem [shape: f32[8,16,128], index: 0, kind: input, shape index: {}]
  %s1 = inlined_call_operand.vmem [shape: f32[2,1,128], index: 1, kind: input, shape index: {}, may-alias: {1,7}]
  %s2 = inlined_call_operand.vmem [shape: f32[2,1,128], index: 2, kind: input, shape index: {}, may-alias: {2,8}]
  %s3 = inlined_call_operand.vmem [shape: f32[2,16,64], index: 3, kind: input, shape index: {}]
  %s4 = inlined_call_operand.vmem [shape: f32[2,1,64], index: 4, kind: input, shape index: {}]
  %s5 = inlined_call_operand.vmem [shape: f32[2,64,16], index: 5, kind: input, shape index: {}]
  %s6 = inlined_call_operand.vmem [shape: f32[2,16,1], index: 6, kind: input, shape index: {}]
  %s7 = inlined_call_operand.vmem [shape: f32[2,1,128], index: 7, kind: input, shape index: {}, may-alias: {1,7}]
  %s8 = inlined_call_operand.vmem [shape: f32[2,1,128], index: 8, kind: input, shape index: {}, may-alias: {2,8}]
  %s9 = inlined_call_operand.vmem [shape: f32[2,128,512], index: 9, kind: input, shape index: {}]
  %s10 = inlined_call_operand.vmem [shape: f32[2,1,512], index: 10, kind: input, shape index: {}]
  %s11 = inlined_call_operand.vmem [shape: f32[2,512,128], index: 11, kind: input, shape index: {}]
  %s12 = inlined_call_operand.vmem [shape: f32[2,1,128], index: 12, kind: input, shape index: {}]
  %s13 = inlined_call_operand.vmem [shape: f32[8,16,128], index: 13, kind: output, shape index: {}]
  %s14 = sld [smem:[#allocation0]]
  $region89: #{_lambda_.4} parent=0
    _
  %s16 = ssub.s32 1, %s14
  %s17 = scalar_select 0, %s16, %s14
  loop: start=0, step=1, limit=6
  $region2: #{_lambda_.4} parent=0 // loop_pre_header
    _
  $region3: #{_lambda_.4} parent=0 // loop_header
    %s19 = sphi 0, %s23
    %p20 = scmp.ge.s32.totalorder %s19, 6
    %s26 = sphi 0, %s38
    %s27 = sphi 0, %s34
    %s28 = sphi 0, %s26
    %s29 = sphi 0, %s27
    %s30 = sphi 0, %s28
    %s31 = sphi 0, %s29
    %s41 = sphi 0, %s43
    %s44 = sphi 0, %s41
    %s45 = sphi 0, %s44
    %s61 = sphi 0, %s45
    %s67 = sphi 0, %s69
    %s70 = sphi 0, %s67
    %s71 = sphi 0, %s70
    %s87 = sphi 0, %s71
    %s93 = sphi 0, %s95
    %s96 = sphi 0, %s93
    %s97 = sphi 0, %s96
    %s113 = sphi 0, %s97
    %s119 = sphi 0, %s121
    %s122 = sphi 0, %s119
    %s123 = sphi 0, %s122
    %s139 = sphi 0, %s123
    %s145 = sphi 0, %s147
    %s148 = sphi 0, %s145
    %s149 = sphi 0, %s148
    %s165 = sphi 0, %s149
    %s171 = sphi 0, %s173
    %s174 = sphi 0, %s171
    %s175 = sphi 0, %s174
    %s191 = sphi 0, %s175
    %s197 = sphi 0, %s199
    %s200 = sphi 0, %s197
    %s201 = sphi 0, %s200
    %s217 = sphi 0, %s201
    %s223 = sphi 0, %s225
    %s226 = sphi 0, %s223
    %s227 = sphi 0, %s226
    %s243 = sphi 0, %s227
    %s249 = sphi 0, %s251
    %s252 = sphi 0, %s249
    %s253 = sphi 0, %s252
    %s269 = sphi 0, %s253
    %s275 = sphi 0, %s277
    %s278 = sphi 0, %s275
    %s279 = sphi 0, %s278
    %s295 = sphi 0, %s279
    %s301 = sphi 0, %s303
    %s304 = sphi 0, %s301
    %s305 = sphi 0, %s304
    %s321 = sphi 0, %s305
    %s327 = sphi 0, %s329
    %s330 = sphi 0, %s327
    %s331 = sphi 0, %s330
    %s347 = sphi 0, %s331
    %s353 = sphi 0, %s355
    %s356 = sphi 0, %s353
    %s357 = sphi 0, %s356
    %s373 = sphi 0, %s357
    %s379 = sphi 0, %s381
    %s382 = sphi 0, %s379
    %s383 = sphi 0, %s382
    %s399 = sphi 0, %s383
  $region4: #{_lambda_.4} parent=0 // loop_header_branch
    %22 = sbr.rel (%p20) target = $region8
  $region5: #{_lambda_.4} parent=0 // loop_body
    %s24 = ssub.s32 %s19, 1
    %s25 = ssub.s32 %s19, 2
    %s32 = sadd.s32 1, %s27
    %p33 = scmp.ge.s32.totalorder %s32, 2
    %s34 = scalar_select %p33, 0, %s32
    %s35 = sadd.s32 1, %s26
    %s36 = scalar_select %p33, %s35, %s26
    %p37 = scmp.ge.s32.totalorder %s36, 2
    %s38 = scalar_select %p37, 0, %s36
    %s39 = ssub.s32 %s26, %s38
    %p40 = scmp.eq.s32.totalorder %s39, 0
    %s42 = sadd.s32 %s41, 1
    %s43 = scalar_select %p40, %s41, %s42
    %p46 = pneg %p40
    %p47 = scmp.eq.s32.totalorder %s19, 3
    %p48 = por %p46, %p47
    %p49 = scmp.ne.s32.totalorder %s41, %s44
    %p50 = scmp.eq.s32.totalorder %s19, 0
    %p51 = por %p49, %p50
    %p52 = scmp.ne.s32.totalorder %s41, %s44
    %p53 = scmp.eq.s32.totalorder %s24, 3
    %p54 = por %p52, %p53
    %p55 = scmp.ne.s32.totalorder %s44, %s45
    %p56 = scmp.eq.s32.totalorder %s24, 0
    %p57 = por %p55, %p56
    %p58 = scmp.ne.s32.totalorder %s44, %s45
    %p59 = scmp.eq.s32.totalorder %s25, 3
    %p60 = por %p58, %p59
    %p62 = scmp.ne.s32.totalorder %s45, %s61
    %p63 = scmp.eq.s32.totalorder %s25, 0
    %p64 = por %p62, %p63
    %s65 = ssub.s32 %s27, %s34
    %p66 = scmp.eq.s32.totalorder %s65, 0
    %s68 = sadd.s32 %s67, 1
    %s69 = scalar_select %p66, %s67, %s68
    %p72 = pneg %p66
    %p73 = scmp.eq.s32.totalorder %s19, 3
    %p74 = por %p72, %p73
    %p75 = scmp.ne.s32.totalorder %s67, %s70
    %p76 = scmp.eq.s32.totalorder %s19, 0
    %p77 = por %p75, %p76
    %p78 = scmp.ne.s32.totalorder %s67, %s70
    %p79 = scmp.eq.s32.totalorder %s24, 3
    %p80 = por %p78, %p79
    %p81 = scmp.ne.s32.totalorder %s70, %s71
    %p82 = scmp.eq.s32.totalorder %s24, 0
    %p83 = por %p81, %p82
    %p84 = scmp.ne.s32.totalorder %s70, %s71
    %p85 = scmp.eq.s32.totalorder %s25, 3
    %p86 = por %p84, %p85
    %p88 = scmp.ne.s32.totalorder %s71, %s87
    %p89 = scmp.eq.s32.totalorder %s25, 0
    %p90 = por %p88, %p89
    %s91 = ssub.s32 %s27, %s34
    %p92 = scmp.eq.s32.totalorder %s91, 0
    %s94 = sadd.s32 %s93, 1
    %s95 = scalar_select %p92, %s93, %s94
    %p98 = pneg %p92
    %p99 = scmp.eq.s32.totalorder %s19, 3
    %p100 = por %p98, %p99
    %p101 = scmp.ne.s32.totalorder %s93, %s96
    %p102 = scmp.eq.s32.totalorder %s19, 0
    %p103 = por %p101, %p102
    %p104 = scmp.ne.s32.totalorder %s93, %s96
    %p105 = scmp.eq.s32.totalorder %s24, 3
    %p106 = por %p104, %p105
    %p107 = scmp.ne.s32.totalorder %s96, %s97
    %p108 = scmp.eq.s32.totalorder %s24, 0
    %p109 = por %p107, %p108
    %p110 = scmp.ne.s32.totalorder %s96, %s97
    %p111 = scmp.eq.s32.totalorder %s25, 3
    %p112 = por %p110, %p111
    %p114 = scmp.ne.s32.totalorder %s97, %s113
    %p115 = scmp.eq.s32.totalorder %s25, 0
    %p116 = por %p114, %p115
    %s117 = ssub.s32 %s27, %s34
    %p118 = scmp.eq.s32.totalorder %s117, 0
    %s120 = sadd.s32 %s119, 1
    %s121 = scalar_select %p118, %s119, %s120
    %p124 = pneg %p118
    %p125 = scmp.eq.s32.totalorder %s19, 3
    %p126 = por %p124, %p125
    %p127 = scmp.ne.s32.totalorder %s119, %s122
    %p128 = scmp.eq.s32.totalorder %s19, 0
    %p129 = por %p127, %p128
    %p130 = scmp.ne.s32.totalorder %s119, %s122
    %p131 = scmp.eq.s32.totalorder %s24, 3
    %p132 = por %p130, %p131
    %p133 = scmp.ne.s32.totalorder %s122, %s123
    %p134 = scmp.eq.s32.totalorder %s24, 0
    %p135 = por %p133, %p134
    %p136 = scmp.ne.s32.totalorder %s122, %s123
    %p137 = scmp.eq.s32.totalorder %s25, 3
    %p138 = por %p136, %p137
    %p140 = scmp.ne.s32.totalorder %s123, %s139
    %p141 = scmp.eq.s32.totalorder %s25, 0
    %p142 = por %p140, %p141
    %s143 = ssub.s32 %s27, %s34
    %p144 = scmp.eq.s32.totalorder %s143, 0
    %s146 = sadd.s32 %s145, 1
    %s147 = scalar_select %p144, %s145, %s146
    %p150 = pneg %p144
    %p151 = scmp.eq.s32.totalorder %s19, 3
    %p152 = por %p150, %p151
    %p153 = scmp.ne.s32.totalorder %s145, %s148
    %p154 = scmp.eq.s32.totalorder %s19, 0
    %p155 = por %p153, %p154
    %p156 = scmp.ne.s32.totalorder %s145, %s148
    %p157 = scmp.eq.s32.totalorder %s24, 3
    %p158 = por %p156, %p157
    %p159 = scmp.ne.s32.totalorder %s148, %s149
    %p160 = scmp.eq.s32.totalorder %s24, 0
    %p161 = por %p159, %p160
    %p162 = scmp.ne.s32.totalorder %s148, %s149
    %p163 = scmp.eq.s32.totalorder %s25, 3
    %p164 = por %p162, %p163
    %p166 = scmp.ne.s32.totalorder %s149, %s165
    %p167 = scmp.eq.s32.totalorder %s25, 0
    %p168 = por %p166, %p167
    %s169 = ssub.s32 %s27, %s34
    %p170 = scmp.eq.s32.totalorder %s169, 0
    %s172 = sadd.s32 %s171, 1
    %s173 = scalar_select %p170, %s171, %s172
    %p176 = pneg %p170
    %p177 = scmp.eq.s32.totalorder %s19, 3
    %p178 = por %p176, %p177
    %p179 = scmp.ne.s32.totalorder %s171, %s174
    %p180 = scmp.eq.s32.totalorder %s19, 0
    %p181 = por %p179, %p180
    %p182 = scmp.ne.s32.totalorder %s171, %s174
    %p183 = scmp.eq.s32.totalorder %s24, 3
    %p184 = por %p182, %p183
    %p185 = scmp.ne.s32.totalorder %s174, %s175
    %p186 = scmp.eq.s32.totalorder %s24, 0
    %p187 = por %p185, %p186
    %p188 = scmp.ne.s32.totalorder %s174, %s175
    %p189 = scmp.eq.s32.totalorder %s25, 3
    %p190 = por %p188, %p189
    %p192 = scmp.ne.s32.totalorder %s175, %s191
    %p193 = scmp.eq.s32.totalorder %s25, 0
    %p194 = por %p192, %p193
    %s195 = ssub.s32 %s27, %s34
    %p196 = scmp.eq.s32.totalorder %s195, 0
    %s198 = sadd.s32 %s197, 1
    %s199 = scalar_select %p196, %s197, %s198
    %p202 = pneg %p196
    %p203 = scmp.eq.s32.totalorder %s19, 3
    %p204 = por %p202, %p203
    %p205 = scmp.ne.s32.totalorder %s197, %s200
    %p206 = scmp.eq.s32.totalorder %s19, 0
    %p207 = por %p205, %p206
    %p208 = scmp.ne.s32.totalorder %s197, %s200
    %p209 = scmp.eq.s32.totalorder %s24, 3
    %p210 = por %p208, %p209
    %p211 = scmp.ne.s32.totalorder %s200, %s201
    %p212 = scmp.eq.s32.totalorder %s24, 0
    %p213 = por %p211, %p212
    %p214 = scmp.ne.s32.totalorder %s200, %s201
    %p215 = scmp.eq.s32.totalorder %s25, 3
    %p216 = por %p214, %p215
    %p218 = scmp.ne.s32.totalorder %s201, %s217
    %p219 = scmp.eq.s32.totalorder %s25, 0
    %p220 = por %p218, %p219
    %s221 = ssub.s32 %s27, %s34
    %p222 = scmp.eq.s32.totalorder %s221, 0
    %s224 = sadd.s32 %s223, 1
    %s225 = scalar_select %p222, %s223, %s224
    %p228 = pneg %p222
    %p229 = scmp.eq.s32.totalorder %s19, 3
    %p230 = por %p228, %p229
    %p231 = scmp.ne.s32.totalorder %s223, %s226
    %p232 = scmp.eq.s32.totalorder %s19, 0
    %p233 = por %p231, %p232
    %p234 = scmp.ne.s32.totalorder %s223, %s226
    %p235 = scmp.eq.s32.totalorder %s24, 3
    %p236 = por %p234, %p235
    %p237 = scmp.ne.s32.totalorder %s226, %s227
    %p238 = scmp.eq.s32.totalorder %s24, 0
    %p239 = por %p237, %p238
    %p240 = scmp.ne.s32.totalorder %s226, %s227
    %p241 = scmp.eq.s32.totalorder %s25, 3
    %p242 = por %p240, %p241
    %p244 = scmp.ne.s32.totalorder %s227, %s243
    %p245 = scmp.eq.s32.totalorder %s25, 0
    %p246 = por %p244, %p245
    %s247 = ssub.s32 %s27, %s34
    %p248 = scmp.eq.s32.totalorder %s247, 0
    %s250 = sadd.s32 %s249, 1
    %s251 = scalar_select %p248, %s249, %s250
    %p254 = pneg %p248
    %p255 = scmp.eq.s32.totalorder %s19, 3
    %p256 = por %p254, %p255
    %p257 = scmp.ne.s32.totalorder %s249, %s252
    %p258 = scmp.eq.s32.totalorder %s19, 0
    %p259 = por %p257, %p258
    %p260 = scmp.ne.s32.totalorder %s249, %s252
    %p261 = scmp.eq.s32.totalorder %s24, 3
    %p262 = por %p260, %p261
    %p263 = scmp.ne.s32.totalorder %s252, %s253
    %p264 = scmp.eq.s32.totalorder %s24, 0
    %p265 = por %p263, %p264
    %p266 = scmp.ne.s32.totalorder %s252, %s253
    %p267 = scmp.eq.s32.totalorder %s25, 3
    %p268 = por %p266, %p267
    %p270 = scmp.ne.s32.totalorder %s253, %s269
    %p271 = scmp.eq.s32.totalorder %s25, 0
    %p272 = por %p270, %p271
    %s273 = ssub.s32 %s27, %s34
    %p274 = scmp.eq.s32.totalorder %s273, 0
    %s276 = sadd.s32 %s275, 1
    %s277 = scalar_select %p274, %s275, %s276
    %p280 = pneg %p274
    %p281 = scmp.eq.s32.totalorder %s19, 3
    %p282 = por %p280, %p281
    %p283 = scmp.ne.s32.totalorder %s275, %s278
    %p284 = scmp.eq.s32.totalorder %s19, 0
    %p285 = por %p283, %p284
    %p286 = scmp.ne.s32.totalorder %s275, %s278
    %p287 = scmp.eq.s32.totalorder %s24, 3
    %p288 = por %p286, %p287
    %p289 = scmp.ne.s32.totalorder %s278, %s279
    %p290 = scmp.eq.s32.totalorder %s24, 0
    %p291 = por %p289, %p290
    %p292 = scmp.ne.s32.totalorder %s278, %s279
    %p293 = scmp.eq.s32.totalorder %s25, 3
    %p294 = por %p292, %p293
    %p296 = scmp.ne.s32.totalorder %s279, %s295
    %p297 = scmp.eq.s32.totalorder %s25, 0
    %p298 = por %p296, %p297
    %s299 = ssub.s32 %s27, %s34
    %p300 = scmp.eq.s32.totalorder %s299, 0
    %s302 = sadd.s32 %s301, 1
    %s303 = scalar_select %p300, %s301, %s302
    %p306 = pneg %p300
    %p307 = scmp.eq.s32.totalorder %s19, 3
    %p308 = por %p306, %p307
    %p309 = scmp.ne.s32.totalorder %s301, %s304
    %p310 = scmp.eq.s32.totalorder %s19, 0
    %p311 = por %p309, %p310
    %p312 = scmp.ne.s32.totalorder %s301, %s304
    %p313 = scmp.eq.s32.totalorder %s24, 3
    %p314 = por %p312, %p313
    %p315 = scmp.ne.s32.totalorder %s304, %s305
    %p316 = scmp.eq.s32.totalorder %s24, 0
    %p317 = por %p315, %p316
    %p318 = scmp.ne.s32.totalorder %s304, %s305
    %p319 = scmp.eq.s32.totalorder %s25, 3
    %p320 = por %p318, %p319
    %p322 = scmp.ne.s32.totalorder %s305, %s321
    %p323 = scmp.eq.s32.totalorder %s25, 0
    %p324 = por %p322, %p323
    %s325 = ssub.s32 %s27, %s34
    %p326 = scmp.eq.s32.totalorder %s325, 0
    %s328 = sadd.s32 %s327, 1
    %s329 = scalar_select %p326, %s327, %s328
    %p332 = pneg %p326
    %p333 = scmp.eq.s32.totalorder %s19, 3
    %p334 = por %p332, %p333
    %p335 = scmp.ne.s32.totalorder %s327, %s330
    %p336 = scmp.eq.s32.totalorder %s19, 0
    %p337 = por %p335, %p336
    %p338 = scmp.ne.s32.totalorder %s327, %s330
    %p339 = scmp.eq.s32.totalorder %s24, 3
    %p340 = por %p338, %p339
    %p341 = scmp.ne.s32.totalorder %s330, %s331
    %p342 = scmp.eq.s32.totalorder %s24, 0
    %p343 = por %p341, %p342
    %p344 = scmp.ne.s32.totalorder %s330, %s331
    %p345 = scmp.eq.s32.totalorder %s25, 3
    %p346 = por %p344, %p345
    %p348 = scmp.ne.s32.totalorder %s331, %s347
    %p349 = scmp.eq.s32.totalorder %s25, 0
    %p350 = por %p348, %p349
    %s351 = ssub.s32 %s27, %s34
    %p352 = scmp.eq.s32.totalorder %s351, 0
    %s354 = sadd.s32 %s353, 1
    %s355 = scalar_select %p352, %s353, %s354
    %p358 = pneg %p352
    %p359 = scmp.eq.s32.totalorder %s19, 3
    %p360 = por %p358, %p359
    %p361 = scmp.ne.s32.totalorder %s353, %s356
    %p362 = scmp.eq.s32.totalorder %s19, 0
    %p363 = por %p361, %p362
    %p364 = scmp.ne.s32.totalorder %s353, %s356
    %p365 = scmp.eq.s32.totalorder %s24, 3
    %p366 = por %p364, %p365
    %p367 = scmp.ne.s32.totalorder %s356, %s357
    %p368 = scmp.eq.s32.totalorder %s24, 0
    %p369 = por %p367, %p368
    %p370 = scmp.ne.s32.totalorder %s356, %s357
    %p371 = scmp.eq.s32.totalorder %s25, 3
    %p372 = por %p370, %p371
    %p374 = scmp.ne.s32.totalorder %s357, %s373
    %p375 = scmp.eq.s32.totalorder %s25, 0
    %p376 = por %p374, %p375
    %s377 = ssub.s32 %s26, %s38
    %p378 = scmp.eq.s32.totalorder %s377, 0
    %s380 = sadd.s32 %s379, 1
    %s381 = scalar_select %p378, %s379, %s380
    %p384 = pneg %p378
    %p385 = scmp.eq.s32.totalorder %s19, 3
    %p386 = por %p384, %p385
    %p387 = scmp.ne.s32.totalorder %s379, %s382
    %p388 = scmp.eq.s32.totalorder %s19, 0
    %p389 = por %p387, %p388
    %p390 = scmp.ne.s32.totalorder %s379, %s382
    %p391 = scmp.eq.s32.totalorder %s24, 3
    %p392 = por %p390, %p391
    %p393 = scmp.ne.s32.totalorder %s382, %s383
    %p394 = scmp.eq.s32.totalorder %s24, 0
    %p395 = por %p393, %p394
    %p396 = scmp.ne.s32.totalorder %s382, %s383
    %p397 = scmp.eq.s32.totalorder %s25, 3
    %p398 = por %p396, %p397
    %p400 = scmp.ne.s32.totalorder %s383, %s399
    %p401 = scmp.eq.s32.totalorder %s25, 0
    %p402 = por %p400, %p401
    %p403 = scmp.le.s32.totalorder 1, %s19
    %p404 = scmp.lt.s32.totalorder %s19, 5
    %p405 = pnand %p403, %p404
    %p406 = pneg %p405
    // Predicated region
    $region9: #{_lambda_.4} parent=5 // pred_check
      _
    $region10: #{_lambda_.4} parent=5 // pred_check_branch
      %408 = sbr.rel (%p405) target = $region12
    $region11: #{_lambda_.4} parent=5 // pred_region
      %s409 = ssub.s32 %s19, 1
    $region12: #{_lambda_.4} parent=5 // pred_fallthru
      _
    %p410 = scmp.lt.s32.totalorder %s19, 4
    // Predicated region
    $region13: #{_lambda_.4} parent=5 // pred_check
      %p411 = pneg %p410
    $region14: #{_lambda_.4} parent=5 // pred_check_branch
      %413 = sbr.rel (%p411) target = $region16
    $region15: #{_lambda_.4} parent=5 // pred_region
      // Predicated region
      $region17: #{_lambda_.4} parent=15 // pred_check
        %p414 = pneg %p51
      $region18: #{_lambda_.4} parent=15 // pred_check_branch
        %416 = sbr.rel (%p414) target = $region20
      $region19: #{_lambda_.4} parent=15 // pred_region
        %s417 = smul.u32 4, %s26
        %p418 = scmp.lt.s32.totalorder %s417, 7
        %s419 = scalar_select %p418, %s417, 7
        %s420 = smul.addr %s419, 2
        %s421 = smul.addr %s420, 8
        %s422 = scalar_lea.vmem %s0, %s421
        %s423 = smul.u32 4, %s26
      $region20: #{_lambda_.4} parent=15 // pred_fallthru
        _
      // Predicated region
      $region21: #{_lambda_.4} parent=15 // pred_check
        %p424 = pneg %p77
      $region22: #{_lambda_.4} parent=15 // pred_check_branch
        %426 = sbr.rel (%p424) target = $region24
      $region23: #{_lambda_.4} parent=15 // pred_region
        %p427 = scmp.lt.s32.totalorder %s27, 1
        %s428 = scalar_select %p427, %s27, 1
        %s429 = scalar_lea.vmem %s1, %s428
      $region24: #{_lambda_.4} parent=15 // pred_fallthru
        _
      // Predicated region
      $region25: #{_lambda_.4} parent=15 // pred_check
        %p430 = pneg %p103
      $region26: #{_lambda_.4} parent=15 // pred_check_branch
        %432 = sbr.rel (%p430) target = $region28
      $region27: #{_lambda_.4} parent=15 // pred_region
        %p433 = scmp.lt.s32.totalorder %s27, 1
        %s434 = scalar_select %p433, %s27, 1
        %s435 = scalar_lea.vmem %s2, %s434
      $region28: #{_lambda_.4} parent=15 // pred_fallthru
        _
      // Predicated region
      $region29: #{_lambda_.4} parent=15 // pred_check
        %p436 = pneg %p129
      $region30: #{_lambda_.4} parent=15 // pred_check_branch
        %438 = sbr.rel (%p436) target = $region32
      $region31: #{_lambda_.4} parent=15 // pred_region
        %p439 = scmp.lt.s32.totalorder %s27, 1
        %s440 = scalar_select %p439, %s27, 1
        %s441 = smul.addr %s440, 2
        %s442 = smul.addr %s441, 8
        %s443 = scalar_lea.vmem %s3, %s442
      $region32: #{_lambda_.4} parent=15 // pred_fallthru
        _
      // Predicated region
      $region33: #{_lambda_.4} parent=15 // pred_check
        %p444 = pneg %p155
      $region34: #{_lambda_.4} parent=15 // pred_check_branch
        %446 = sbr.rel (%p444) target = $region36
      $region35: #{_lambda_.4} parent=15 // pred_region
        %p447 = scmp.lt.s32.totalorder %s27, 1
        %s448 = scalar_select %p447, %s27, 1
        %s449 = scalar_lea.vmem %s4, %s448
      $region36: #{_lambda_.4} parent=15 // pred_fallthru
        _
      // Predicated region
      $region37: #{_lambda_.4} parent=15 // pred_check
        %p450 = pneg %p181
      $region38: #{_lambda_.4} parent=15 // pred_check_branch
        %452 = sbr.rel (%p450) target = $region40
      $region39: #{_lambda_.4} parent=15 // pred_region
        %p453 = scmp.lt.s32.totalorder %s27, 1
        %s454 = scalar_select %p453, %s27, 1
        %s455 = smul.addr %s454, 8
        %s456 = smul.addr %s455, 8
        %s457 = scalar_lea.vmem %s5, %s456
      $region40: #{_lambda_.4} parent=15 // pred_fallthru
        _
      // Predicated region
      $region41: #{_lambda_.4} parent=15 // pred_check
        %p458 = pneg %p207
      $region42: #{_lambda_.4} parent=15 // pred_check_branch
        %460 = sbr.rel (%p458) target = $region44
      $region43: #{_lambda_.4} parent=15 // pred_region
        %p461 = scmp.lt.s32.totalorder %s27, 1
        %s462 = scalar_select %p461, %s27, 1
        %s463 = smul.addr %s462, 2
        %s464 = smul.addr %s463, 8
        %s465 = scalar_lea.vmem %s6, %s464
      $region44: #{_lambda_.4} parent=15 // pred_fallthru
        _
      // Predicated region
      $region45: #{_lambda_.4} parent=15 // pred_check
        %p466 = pneg %p233
      $region46: #{_lambda_.4} parent=15 // pred_check_branch
        %468 = sbr.rel (%p466) target = $region48
      $region47: #{_lambda_.4} parent=15 // pred_region
        %p469 = scmp.lt.s32.totalorder %s27, 1
        %s470 = scalar_select %p469, %s27, 1
        %s471 = scalar_lea.vmem %s7, %s470
      $region48: #{_lambda_.4} parent=15 // pred_fallthru
        _
      // Predicated region
      $region49: #{_lambda_.4} parent=15 // pred_check
        %p472 = pneg %p259
      $region50: #{_lambda_.4} parent=15 // pred_check_branch
        %474 = sbr.rel (%p472) target = $region52
      $region51: #{_lambda_.4} parent=15 // pred_region
        %p475 = scmp.lt.s32.totalorder %s27, 1
        %s476 = scalar_select %p475, %s27, 1
        %s477 = scalar_lea.vmem %s8, %s476
      $region52: #{_lambda_.4} parent=15 // pred_fallthru
        _
      // Predicated region
      $region53: #{_lambda_.4} parent=15 // pred_check
        %p478 = pneg %p285
      $region54: #{_lambda_.4} parent=15 // pred_check_branch
        %480 = sbr.rel (%p478) target = $region56
      $region55: #{_lambda_.4} parent=15 // pred_region
        %p481 = scmp.lt.s32.totalorder %s27, 1
        %s482 = scalar_select %p481, %s27, 1
        %s483 = smul.addr %s482, 64
        %s484 = smul.addr %s483, 8
        %s485 = scalar_lea.vmem %s9, %s484
      $region56: #{_lambda_.4} parent=15 // pred_fallthru
        _
      // Predicated region
      $region57: #{_lambda_.4} parent=15 // pred_check
        %p486 = pneg %p311
      $region58: #{_lambda_.4} parent=15 // pred_check_branch
        %488 = sbr.rel (%p486) target = $region60
      $region59: #{_lambda_.4} parent=15 // pred_region
        %p489 = scmp.lt.s32.totalorder %s27, 1
        %s490 = scalar_select %p489, %s27, 1
        %s491 = smul.addr %s490, 4
        %s492 = scalar_lea.vmem %s10, %s491
      $region60: #{_lambda_.4} parent=15 // pred_fallthru
        _
      // Predicated region
      $region61: #{_lambda_.4} parent=15 // pred_check
        %p493 = pneg %p337
      $region62: #{_lambda_.4} parent=15 // pred_check_branch
        %495 = sbr.rel (%p493) target = $region64
      $region63: #{_lambda_.4} parent=15 // pred_region
        %p496 = scmp.lt.s32.totalorder %s27, 1
        %s497 = scalar_select %p496, %s27, 1
        %s498 = smul.addr %s497, 64
        %s499 = smul.addr %s498, 8
        %s500 = scalar_lea.vmem %s11, %s499
      $region64: #{_lambda_.4} parent=15 // pred_fallthru
        _
      // Predicated region
      $region65: #{_lambda_.4} parent=15 // pred_check
        %p501 = pneg %p363
      $region66: #{_lambda_.4} parent=15 // pred_check_branch
        %503 = sbr.rel (%p501) target = $region68
      $region67: #{_lambda_.4} parent=15 // pred_region
        %p504 = scmp.lt.s32.totalorder %s27, 1
        %s505 = scalar_select %p504, %s27, 1
        %s506 = scalar_lea.vmem %s12, %s505
      $region68: #{_lambda_.4} parent=15 // pred_fallthru
        _
    $region16: #{_lambda_.4} parent=5 // pred_fallthru
      _
    %p507 = scmp.le.s32.totalorder 1, %s19
    %p508 = scmp.lt.s32.totalorder %s19, 5
    %p509 = pnand %p507, %p508
    %p510 = pneg %p509
    // Predicated region
    $region69: #{_lambda_.4} parent=5 // pred_check
      _
    $region70: #{_lambda_.4} parent=5 // pred_check_branch
      %512 = sbr.rel (%p509) target = $region72
    $region71: #{_lambda_.4} parent=5 // pred_region
      %s513 = ssub.s32 %s19, 1
      %s514 = smul.u32 4, %s28
      %p515 = scmp.lt.s32.totalorder %s514, 7
      %s516 = scalar_select %p515, %s514, 7
      %s517 = smul.addr %s516, 2
      %s518 = smul.addr %s517, 8
      %s519 = scalar_lea.vmem %s0, %s518
      %p520 = pneg %p57
      %p521 = pneg %p54
      %p522 = scmp.lt.s32.totalorder %s29, 1
      %s523 = scalar_select %p522, %s29, 1
      %s524 = scalar_lea.vmem %s1, %s523
      %p525 = pneg %p83
      %p526 = pneg %p80
      %p527 = scmp.lt.s32.totalorder %s29, 1
      %s528 = scalar_select %p527, %s29, 1
      %s529 = scalar_lea.vmem %s2, %s528
      %p530 = pneg %p109
      %p531 = pneg %p106
      %p532 = scmp.lt.s32.totalorder %s29, 1
      %s533 = scalar_select %p532, %s29, 1
      %s534 = smul.addr %s533, 2
      %s535 = smul.addr %s534, 8
      %s536 = scalar_lea.vmem %s3, %s535
      %p537 = pneg %p135
      %p538 = pneg %p132
      %p539 = scmp.lt.s32.totalorder %s29, 1
      %s540 = scalar_select %p539, %s29, 1
      %s541 = scalar_lea.vmem %s4, %s540
      %p542 = pneg %p161
      %p543 = pneg %p158
      %p544 = scmp.lt.s32.totalorder %s29, 1
      %s545 = scalar_select %p544, %s29, 1
      %s546 = smul.addr %s545, 8
      %s547 = smul.addr %s546, 8
      %s548 = scalar_lea.vmem %s5, %s547
      %p549 = pneg %p187
      %p550 = pneg %p184
      %p551 = scmp.lt.s32.totalorder %s29, 1
      %s552 = scalar_select %p551, %s29, 1
      %s553 = smul.addr %s552, 2
      %s554 = smul.addr %s553, 8
      %s555 = scalar_lea.vmem %s6, %s554
      %p556 = pneg %p213
      %p557 = pneg %p210
      %p558 = scmp.lt.s32.totalorder %s29, 1
      %s559 = scalar_select %p558, %s29, 1
      %s560 = scalar_lea.vmem %s7, %s559
      %p561 = pneg %p239
      %p562 = pneg %p236
      %p563 = scmp.lt.s32.totalorder %s29, 1
      %s564 = scalar_select %p563, %s29, 1
      %s565 = scalar_lea.vmem %s8, %s564
      %p566 = pneg %p265
      %p567 = pneg %p262
      %p568 = scmp.lt.s32.totalorder %s29, 1
      %s569 = scalar_select %p568, %s29, 1
      %s570 = smul.addr %s569, 64
      %s571 = smul.addr %s570, 8
      %s572 = scalar_lea.vmem %s9, %s571
      %p573 = pneg %p291
      %p574 = pneg %p288
      %p575 = scmp.lt.s32.totalorder %s29, 1
      %s576 = scalar_select %p575, %s29, 1
      %s577 = smul.addr %s576, 4
      %s578 = scalar_lea.vmem %s10, %s577
      %p579 = pneg %p317
      %p580 = pneg %p314
      %p581 = scmp.lt.s32.totalorder %s29, 1
      %s582 = scalar_select %p581, %s29, 1
      %s583 = smul.addr %s582, 64
      %s584 = smul.addr %s583, 8
      %s585 = scalar_lea.vmem %s11, %s584
      %p586 = pneg %p343
      %p587 = pneg %p340
      %p588 = scmp.lt.s32.totalorder %s29, 1
      %s589 = scalar_select %p588, %s29, 1
      %s590 = scalar_lea.vmem %s12, %s589
      %p591 = pneg %p369
      %p592 = pneg %p366
      %p593 = pneg %p395
      %p594 = pneg %p392
      %s595 = smul.u32 4, %s28
      %p596 = scmp.lt.s32.totalorder %s595, 7
      %s597 = scalar_select %p596, %s595, 7
      %s598 = smul.addr %s597, 2
      %s599 = smul.addr %s598, 8
      %s600 = scalar_lea.vmem %s13, %s599
      %s601 = smul.u32 4, %s28
      %p602 = scmp.lt.s32.totalorder %s601, 7
      %s603 = scalar_select %p602, %s601, 7
      %s604 = smul.addr %s603, 2
      %s605 = smul.addr %s604, 8
      %s606 = scalar_lea.vmem %s0, %s605
      %s607 = smul.u32 4, %s28
      %p608 = scmp.lt.s32.totalorder %s29, 1
      %s609 = scalar_select %p608, %s29, 1
      %s610 = scalar_lea.vmem %s1, %s609
      %p611 = scmp.lt.s32.totalorder %s29, 1
      %s612 = scalar_select %p611, %s29, 1
      %s613 = scalar_lea.vmem %s2, %s612
      %p614 = scmp.lt.s32.totalorder %s29, 1
      %s615 = scalar_select %p614, %s29, 1
      %s616 = smul.addr %s615, 2
      %s617 = smul.addr %s616, 8
      %s618 = scalar_lea.vmem %s3, %s617
      %p619 = scmp.lt.s32.totalorder %s29, 1
      %s620 = scalar_select %p619, %s29, 1
      %s621 = scalar_lea.vmem %s4, %s620
      %p622 = scmp.lt.s32.totalorder %s29, 1
      %s623 = scalar_select %p622, %s29, 1
      %s624 = smul.addr %s623, 8
      %s625 = smul.addr %s624, 8
      %s626 = scalar_lea.vmem %s5, %s625
      %p627 = scmp.lt.s32.totalorder %s29, 1
      %s628 = scalar_select %p627, %s29, 1
      %s629 = smul.addr %s628, 2
      %s630 = smul.addr %s629, 8
      %s631 = scalar_lea.vmem %s6, %s630
      %p632 = scmp.lt.s32.totalorder %s29, 1
      %s633 = scalar_select %p632, %s29, 1
      %s634 = scalar_lea.vmem %s7, %s633
      %p635 = scmp.lt.s32.totalorder %s29, 1
      %s636 = scalar_select %p635, %s29, 1
      %s637 = scalar_lea.vmem %s8, %s636
      %p638 = scmp.lt.s32.totalorder %s29, 1
      %s639 = scalar_select %p638, %s29, 1
      %s640 = smul.addr %s639, 64
      %s641 = smul.addr %s640, 8
      %s642 = scalar_lea.vmem %s9, %s641
      %p643 = scmp.lt.s32.totalorder %s29, 1
      %s644 = scalar_select %p643, %s29, 1
      %s645 = smul.addr %s644, 4
      %s646 = scalar_lea.vmem %s10, %s645
      %p647 = scmp.lt.s32.totalorder %s29, 1
      %s648 = scalar_select %p647, %s29, 1
      %s649 = smul.addr %s648, 64
      %s650 = smul.addr %s649, 8
      %s651 = scalar_lea.vmem %s11, %s650
      %p652 = scmp.lt.s32.totalorder %s29, 1
      %s653 = scalar_select %p652, %s29, 1
      %s654 = scalar_lea.vmem %s12, %s653
      %s655 = smul.u32 4, %s28
      %p656 = scmp.lt.s32.totalorder %s655, 7
      %s657 = scalar_select %p656, %s655, 7
      %s658 = smul.addr %s657, 2
      %s659 = smul.addr %s658, 8
      %s660 = scalar_lea.vmem %s13, %s659
      %s661 = smul.u32 4, %s28
      %p662 = scmp.eq.s32.totalorder %s29, 0
      // Predicated region
      $region73: #{_lambda_.4} parent=71 // pred_check
        %p663 = pneg %p662
      $region74: #{_lambda_.4} parent=71 // pred_check_branch
        %665 = sbr.rel (%p663) target = $region76
      $region75: #{_lambda_.4} parent=71 // pred_region
        %v666 = vld [vmem:[%s606] sm:$0xff]
        %v667 = vld [vmem:[%s606 + $0x8] sm:$0xff]
        %v668 = vld [vmem:[%s606 + $0x10] sm:$0xff]
        %v669 = vld [vmem:[%s606 + $0x18] sm:$0xff]
        %v670 = vld [vmem:[%s606 + $0x20] sm:$0xff]
        %v671 = vld [vmem:[%s606 + $0x28] sm:$0xff]
        %v672 = vld [vmem:[%s606 + $0x30] sm:$0xff]
        %v673 = vld [vmem:[%s606 + $0x38] sm:$0xff]
        %674 = vst [vmem:[%s660] sm:$0xff] %v666
        %675 = vst [vmem:[%s660 + $0x8] sm:$0xff] %v667
        %676 = vst [vmem:[%s660 + $0x10] sm:$0xff] %v668
        %677 = vst [vmem:[%s660 + $0x18] sm:$0xff] %v669
        %678 = vst [vmem:[%s660 + $0x20] sm:$0xff] %v670
        %679 = vst [vmem:[%s660 + $0x28] sm:$0xff] %v671
        %680 = vst [vmem:[%s660 + $0x30] sm:$0xff] %v672
        %681 = vst [vmem:[%s660 + $0x38] sm:$0xff] %v673
      $region76: #{_lambda_.4} parent=71 // pred_fallthru
        _
      %v682 = vld [vmem:[%s660] sm:$0xff]
      %v683 = vld [vmem:[%s660 + $0x8] sm:$0xff]
      %v684 = vld [vmem:[%s660 + $0x10] sm:$0xff]
      %v685 = vld [vmem:[%s660 + $0x18] sm:$0xff]
      %v686 = vld [vmem:[%s660 + $0x20] sm:$0xff]
      %v687 = vld [vmem:[%s660 + $0x28] sm:$0xff]
      %v688 = vld [vmem:[%s660 + $0x30] sm:$0xff]
      %v689 = vld [vmem:[%s660 + $0x38] sm:$0xff]
      %v690 = vld [vmem:[%s610] sm:$0x1]
      %v691 = vld [vmem:[%s613] sm:$0x1]
      %692 = vadd.xlane.f32.xlu0 %v682
      %v693 = vpop.xlane.xlu0 %692
      %694 = vadd.xlane.f32.xlu0 %v683
      %v695 = vpop.xlane.xlu0 %694
      %696 = vadd.xlane.f32.xlu0 %v684
      %v697 = vpop.xlane.xlu0 %696
      %698 = vadd.xlane.f32.xlu0 %v685
      %v699 = vpop.xlane.xlu0 %698
      %700 = vadd.xlane.f32.xlu0 %v686
      %v701 = vpop.xlane.xlu0 %700
      %702 = vadd.xlane.f32.xlu0 %v687
      %v703 = vpop.xlane.xlu0 %702
      %704 = vadd.xlane.f32.xlu0 %v688
      %v705 = vpop.xlane.xlu0 %704
      %706 = vadd.xlane.f32.xlu0 %v689
      %v707 = vpop.xlane.xlu0 %706
      %v708 = vrcp.pop 128.0
      %v709 = vmul.f32 128.0, %v708
      %v710 = vsub.f32 1.0, %v709
      %v711 = vmul.f32 %v708, %v710
      %v712 = vadd.f32 %v708, %v711
      %vm713 = vweird.f32 %v708
      %v714 = vsel %vm713, %v708, %v712
      %v715 = vmul.f32 %v693, %v714
      %v716 = vmul.f32 %v695, %v714
      %v717 = vmul.f32 %v697, %v714
      %v718 = vmul.f32 %v699, %v714
      %v719 = vmul.f32 %v701, %v714
      %v720 = vmul.f32 %v703, %v714
      %v721 = vmul.f32 %v705, %v714
      %v722 = vmul.f32 %v707, %v714
      %v723 = vsub.f32 %v682, %v715
      %v724 = vsub.f32 %v683, %v716
      %v725 = vsub.f32 %v684, %v717
      %v726 = vsub.f32 %v685, %v718
      %v727 = vsub.f32 %v686, %v719
      %v728 = vsub.f32 %v687, %v720
      %v729 = vsub.f32 %v688, %v721
      %v730 = vsub.f32 %v689, %v722
      %v731 = vmul.f32 %v723, %v723
      %v732 = vmul.f32 %v724, %v724
      %v733 = vmul.f32 %v725, %v725
      %v734 = vmul.f32 %v726, %v726
      %v735 = vmul.f32 %v727, %v727
      %v736 = vmul.f32 %v728, %v728
      %v737 = vmul.f32 %v729, %v729
      %v738 = vmul.f32 %v730, %v730
      %739 = vadd.xlane.f32.xlu0 %v731
      %v740 = vpop.xlane.xlu0 %739
      %741 = vadd.xlane.f32.xlu0 %v732
      %v742 = vpop.xlane.xlu0 %741
      %743 = vadd.xlane.f32.xlu0 %v733
      %v744 = vpop.xlane.xlu0 %743
      %745 = vadd.xlane.f32.xlu0 %v734
      %v746 = vpop.xlane.xlu0 %745
      %747 = vadd.xlane.f32.xlu0 %v735
      %v748 = vpop.xlane.xlu0 %747
      %749 = vadd.xlane.f32.xlu0 %v736
      %v750 = vpop.xlane.xlu0 %749
      %751 = vadd.xlane.f32.xlu0 %v737
      %v752 = vpop.xlane.xlu0 %751
      %753 = vadd.xlane.f32.xlu0 %v738
      %v754 = vpop.xlane.xlu0 %753
      %v755 = vmul.f32 %v740, %v714
      %v756 = vmul.f32 %v742, %v714
      %v757 = vmul.f32 %v744, %v714
      %v758 = vmul.f32 %v746, %v714
      %v759 = vmul.f32 %v748, %v714
      %v760 = vmul.f32 %v750, %v714
      %v761 = vmul.f32 %v752, %v714
      %v762 = vmul.f32 %v754, %v714
      %v763 = vadd.f32 %v755, 1e-06
      %v764 = vadd.f32 %v756, 1e-06
      %v765 = vadd.f32 %v757, 1e-06
      %v766 = vadd.f32 %v758, 1e-06
      %v767 = vadd.f32 %v759, 1e-06
      %v768 = vadd.f32 %v760, 1e-06
      %v769 = vadd.f32 %v761, 1e-06
      %v770 = vadd.f32 %v762, 1e-06
      %v771 = vrsqrt.pop %v763
      %v772 = vmul.f32 %v771, %v763
      %v773 = vmul.f32 %v772, %v771
      %v774 = vmul.f32 0.5, %v773
      %v775 = vsub.f32 1.5, %v774
      %v776 = vmul.f32 %v771, %v775
      %vm777 = vweird.f32 %v763
      %vm778 = vweird.f32 %v771
      %vm779 = vmor %vm777, %vm778
      %v780 = vsel %vm779, %v771, %v776
      %v781 = vrsqrt.pop %v764
      %v782 = vmul.f32 %v781, %v764
      %v783 = vmul.f32 %v782, %v781
      %v784 = vmul.f32 0.5, %v783
      %v785 = vsub.f32 1.5, %v784
      %v786 = vmul.f32 %v781, %v785
      %vm787 = vweird.f32 %v764
      %vm788 = vweird.f32 %v781
      %vm789 = vmor %vm787, %vm788
      %v790 = vsel %vm789, %v781, %v786
      %v791 = vrsqrt.pop %v765
      %v792 = vmul.f32 %v791, %v765
      %v793 = vmul.f32 %v792, %v791
      %v794 = vmul.f32 0.5, %v793
      %v795 = vsub.f32 1.5, %v794
      %v796 = vmul.f32 %v791, %v795
      %vm797 = vweird.f32 %v765
      %vm798 = vweird.f32 %v791
      %vm799 = vmor %vm797, %vm798
      %v800 = vsel %vm799, %v791, %v796
      %v801 = vrsqrt.pop %v766
      %v802 = vmul.f32 %v801, %v766
      %v803 = vmul.f32 %v802, %v801
      %v804 = vmul.f32 0.5, %v803
      %v805 = vsub.f32 1.5, %v804
      %v806 = vmul.f32 %v801, %v805
      %vm807 = vweird.f32 %v766
      %vm808 = vweird.f32 %v801
      %vm809 = vmor %vm807, %vm808
      %v810 = vsel %vm809, %v801, %v806
      %v811 = vrsqrt.pop %v767
      %v812 = vmul.f32 %v811, %v767
      %v813 = vmul.f32 %v812, %v811
      %v814 = vmul.f32 0.5, %v813
      %v815 = vsub.f32 1.5, %v814
      %v816 = vmul.f32 %v811, %v815
      %vm817 = vweird.f32 %v767
      %vm818 = vweird.f32 %v811
      %vm819 = vmor %vm817, %vm818
      %v820 = vsel %vm819, %v811, %v816
      %v821 = vrsqrt.pop %v768
      %v822 = vmul.f32 %v821, %v768
      %v823 = vmul.f32 %v822, %v821
      %v824 = vmul.f32 0.5, %v823
      %v825 = vsub.f32 1.5, %v824
      %v826 = vmul.f32 %v821, %v825
      %vm827 = vweird.f32 %v768
      %vm828 = vweird.f32 %v821
      %vm829 = vmor %vm827, %vm828
      %v830 = vsel %vm829, %v821, %v826
      %v831 = vrsqrt.pop %v769
      %v832 = vmul.f32 %v831, %v769
      %v833 = vmul.f32 %v832, %v831
      %v834 = vmul.f32 0.5, %v833
      %v835 = vsub.f32 1.5, %v834
      %v836 = vmul.f32 %v831, %v835
      %vm837 = vweird.f32 %v769
      %vm838 = vweird.f32 %v831
      %vm839 = vmor %vm837, %vm838
      %v840 = vsel %vm839, %v831, %v836
      %v841 = vrsqrt.pop %v770
      %v842 = vmul.f32 %v841, %v770
      %v843 = vmul.f32 %v842, %v841
      %v844 = vmul.f32 0.5, %v843
      %v845 = vsub.f32 1.5, %v844
      %v846 = vmul.f32 %v841, %v845
      %vm847 = vweird.f32 %v770
      %vm848 = vweird.f32 %v841
      %vm849 = vmor %vm847, %vm848
      %v850 = vsel %vm849, %v841, %v846
      %v851 = vmul.f32 %v723, %v780
      %v852 = vmul.f32 %v724, %v790
      %v853 = vmul.f32 %v725, %v800
      %v854 = vmul.f32 %v726, %v810
      %v855 = vmul.f32 %v727, %v820
      %v856 = vmul.f32 %v728, %v830
      %v857 = vmul.f32 %v729, %v840
      %v858 = vmul.f32 %v730, %v850
      %v860 = vperm.slane %v690, 0
      %v862 = vmul.f32 %v851, %v860
      %v863 = vmul.f32 %v852, %v860
      %v864 = vmul.f32 %v853, %v860
      %v865 = vmul.f32 %v854, %v860
      %v866 = vmul.f32 %v855, %v860
      %v867 = vmul.f32 %v856, %v860
      %v868 = vmul.f32 %v857, %v860
      %v869 = vmul.f32 %v858, %v860
      %v871 = vperm.slane %v691, 0
      %v873 = vadd.f32 %v862, %v871
      %v874 = vadd.f32 %v863, %v871
      %v875 = vadd.f32 %v864, %v871
      %v876 = vadd.f32 %v865, %v871
      %v877 = vadd.f32 %v866, %v871
      %v878 = vadd.f32 %v867, %v871
      %v879 = vadd.f32 %v868, %v871
      %v880 = vadd.f32 %v869, %v871
      %v881 = vld [vmem:[%s618] sm:$0xff]
      %v882 = vld [vmem:[%s618 + $0x8] sm:$0xff]
      %v883 = vld [vmem:[%s626] sm:$0xff]
      %v884 = vld [vmem:[%s626 + $0x8] sm:$0xff]
      %v885 = vld [vmem:[%s626 + $0x10] sm:$0xff]
      %v886 = vld [vmem:[%s626 + $0x18] sm:$0xff]
      %v887 = vld [vmem:[%s626 + $0x20] sm:$0xff]
      %v888 = vld [vmem:[%s626 + $0x28] sm:$0xff]
      %v889 = vld [vmem:[%s626 + $0x30] sm:$0xff]
      %v890 = vld [vmem:[%s626 + $0x38] sm:$0xff]
      %v891 = vld [vmem:[%s621] sm:$0x1]
      %v893 = vperm.slane %v891, 0
      %895 = vxpose.xlu0.b32.start [1/16] %v873, 128
      %896 = vxpose.xlu0.b32.cont [2/16] %v874, 128
      %897 = vxpose.xlu0.b32.cont [3/16] 0.0, 128
      %898 = vxpose.xlu0.b32.cont [4/16] 0.0, 128
      %899 = vxpose.xlu0.b32.cont [5/16] 0.0, 128
      %900 = vxpose.xlu0.b32.cont [6/16] 0.0, 128
      %901 = vxpose.xlu0.b32.cont [7/16] 0.0, 128
      %902 = vxpose.xlu0.b32.cont [8/16] 0.0, 128
      %903 = vxpose.xlu0.b32.cont [9/16] 0.0, 128
      %904 = vxpose.xlu0.b32.cont [10/16] 0.0, 128
      %905 = vxpose.xlu0.b32.cont [11/16] 0.0, 128
      %906 = vxpose.xlu0.b32.cont [12/16] 0.0, 128
      %907 = vxpose.xlu0.b32.cont [13/16] 0.0, 128
      %908 = vxpose.xlu0.b32.cont [14/16] 0.0, 128
      %909 = vxpose.xlu0.b32.cont [15/16] 0.0, 128
      %910 = vxpose.xlu0.b32.end [16/16] 0.0, 128
      %v911 = vpop.trf.xlu0
      %v912 = vpop.trf.xlu0
      %v913 = vpop.trf.xlu0
      %v914 = vpop.trf.xlu0
      %v915 = vpop.trf.xlu0
      %v916 = vpop.trf.xlu0
      %v917 = vpop.trf.xlu0
      %v918 = vpop.trf.xlu0
      %v919 = vpop.trf.xlu0
      %v920 = vpop.trf.xlu0
      %v921 = vpop.trf.xlu0
      %v922 = vpop.trf.xlu0
      %v923 = vpop.trf.xlu0
      %v924 = vpop.trf.xlu0
      %v925 = vpop.trf.xlu0
      %v926 = vpop.trf.xlu0
      %vm927 = vcmask 130048
      %v929 = vsel %vm927, %v911, 0
      %v932 = vsel %vm927, %v912, 0
      %v935 = vsel %vm927, %v913, 0
      %v938 = vsel %vm927, %v914, 0
      %v941 = vsel %vm927, %v915, 0
      %v944 = vsel %vm927, %v916, 0
      %v947 = vsel %vm927, %v917, 0
      %v950 = vsel %vm927, %v918, 0
      %v953 = vsel %vm927, %v919, 0
      %v956 = vsel %vm927, %v920, 0
      %v959 = vsel %vm927, %v921, 0
      %v962 = vsel %vm927, %v922, 0
      %v965 = vsel %vm927, %v923, 0
      %v968 = vsel %vm927, %v924, 0
      %v971 = vsel %vm927, %v925, 0
      %v974 = vsel %vm927, %v926, 0
      %976 = vmatpush.msra.mxu0 0.0
      %977 = vmatpush.msra.mxu0 0.0
      %978 = vmatpush.msra.mxu0 0.0
      %979 = vmatpush.msra.mxu0 0.0
      %980 = vmatpush.msra.mxu0 0.0
      %981 = vmatpush.msra.mxu0 0.0
      %982 = vmatpush.msra.mxu0 0.0
      %983 = vmatpush.msra.mxu0 0.0
      %984 = vmatpush.msra.mxu0 0.0
      %985 = vmatpush.msra.mxu0 0.0
      %986 = vmatpush.msra.mxu0 0.0
      %987 = vmatpush.msra.mxu0 0.0
      %988 = vmatpush.msra.mxu0 0.0
      %989 = vmatpush.msra.mxu0 0.0
      %990 = vmatpush.msra.mxu0 %v882
      %991 = vmatpush.msra.mxu0 %v881
      %992 = vmatmul.f32.gmra.mxu0 %v929
      %v993 = vpop.f32.mrf.mxu0
      %v994 = vadd.f32 %v893, %v993
      %995 = vmatmul.f32.gmra.mxu0 %v932
      %v996 = vpop.f32.mrf.mxu0
      %v997 = vadd.f32 %v893, %v996
      %998 = vmatmul.f32.gmra.mxu0 %v935
      %v999 = vpop.f32.mrf.mxu0
      %v1000 = vadd.f32 %v893, %v999
      %1001 = vmatmul.f32.gmra.mxu0 %v938
      %v1002 = vpop.f32.mrf.mxu0
      %v1003 = vadd.f32 %v893, %v1002
      %1004 = vmatmul.f32.gmra.mxu0 %v941
      %v1005 = vpop.f32.mrf.mxu0
      %v1006 = vadd.f32 %v893, %v1005
      %1007 = vmatmul.f32.gmra.mxu0 %v944
      %v1008 = vpop.f32.mrf.mxu0
      %v1009 = vadd.f32 %v893, %v1008
      %1010 = vmatmul.f32.gmra.mxu0 %v947
      %v1011 = vpop.f32.mrf.mxu0
      %v1012 = vadd.f32 %v893, %v1011
      %1013 = vmatmul.f32.gmra.mxu0 %v950
      %v1014 = vpop.f32.mrf.mxu0
      %v1015 = vadd.f32 %v893, %v1014
      %1016 = vmatmul.f32.gmra.mxu0 %v953
      %v1017 = vpop.f32.mrf.mxu0
      %v1018 = vadd.f32 %v893, %v1017
      %1019 = vmatmul.f32.gmra.mxu0 %v956
      %v1020 = vpop.f32.mrf.mxu0
      %v1021 = vadd.f32 %v893, %v1020
      %1022 = vmatmul.f32.gmra.mxu0 %v959
      %v1023 = vpop.f32.mrf.mxu0
      %v1024 = vadd.f32 %v893, %v1023
      %1025 = vmatmul.f32.gmra.mxu0 %v962
      %v1026 = vpop.f32.mrf.mxu0
      %v1027 = vadd.f32 %v893, %v1026
      %1028 = vmatmul.f32.gmra.mxu0 %v965
      %v1029 = vpop.f32.mrf.mxu0
      %v1030 = vadd.f32 %v893, %v1029
      %1031 = vmatmul.f32.gmra.mxu0 %v968
      %v1032 = vpop.f32.mrf.mxu0
      %v1033 = vadd.f32 %v893, %v1032
      %1034 = vmatmul.f32.gmra.mxu0 %v971
      %v1035 = vpop.f32.mrf.mxu0
      %v1036 = vadd.f32 %v893, %v1035
      %1037 = vmatmul.f32.gmra.mxu0 %v974
      %v1038 = vpop.f32.mrf.mxu0
      %v1039 = vadd.f32 %v893, %v1038
      %1040 = vdwg.mxu0
      %v1041 = vmul.f32 %v994, %v994
      %v1042 = vmul.f32 %v997, %v997
      %v1043 = vmul.f32 %v1000, %v1000
      %v1044 = vmul.f32 %v1003, %v1003
      %v1045 = vmul.f32 %v1006, %v1006
      %v1046 = vmul.f32 %v1009, %v1009
      %v1047 = vmul.f32 %v1012, %v1012
      %v1048 = vmul.f32 %v1015, %v1015
      %v1049 = vmul.f32 %v1018, %v1018
      %v1050 = vmul.f32 %v1021, %v1021
      %v1051 = vmul.f32 %v1024, %v1024
      %v1052 = vmul.f32 %v1027, %v1027
      %v1053 = vmul.f32 %v1030, %v1030
      %v1054 = vmul.f32 %v1033, %v1033
      %v1055 = vmul.f32 %v1036, %v1036
      %v1056 = vmul.f32 %v1039, %v1039
      %v1057 = vmul.f32 %v994, %v1041
      %v1058 = vmul.f32 %v997, %v1042
      %v1059 = vmul.f32 %v1000, %v1043
      %v1060 = vmul.f32 %v1003, %v1044
      %v1061 = vmul.f32 %v1006, %v1045
      %v1062 = vmul.f32 %v1009, %v1046
      %v1063 = vmul.f32 %v1012, %v1047
      %v1064 = vmul.f32 %v1015, %v1048
      %v1065 = vmul.f32 %v1018, %v1049
      %v1066 = vmul.f32 %v1021, %v1050
      %v1067 = vmul.f32 %v1024, %v1051
      %v1068 = vmul.f32 %v1027, %v1052
      %v1069 = vmul.f32 %v1030, %v1053
      %v1070 = vmul.f32 %v1033, %v1054
      %v1071 = vmul.f32 %v1036, %v1055
      %v1072 = vmul.f32 %v1039, %v1056
      %v1073 = vmul.f32 %v1057, 0.044715
      %v1074 = vmul.f32 %v1058, 0.044715
      %v1075 = vmul.f32 %v1059, 0.044715
      %v1076 = vmul.f32 %v1060, 0.044715
      %v1077 = vmul.f32 %v1061, 0.044715
      %v1078 = vmul.f32 %v1062, 0.044715
      %v1079 = vmul.f32 %v1063, 0.044715
      %v1080 = vmul.f32 %v1064, 0.044715
      %v1081 = vmul.f32 %v1065, 0.044715
      %v1082 = vmul.f32 %v1066, 0.044715
      %v1083 = vmul.f32 %v1067, 0.044715
      %v1084 = vmul.f32 %v1068, 0.044715
      %v1085 = vmul.f32 %v1069, 0.044715
      %v1086 = vmul.f32 %v1070, 0.044715
      %v1087 = vmul.f32 %v1071, 0.044715
      %v1088 = vmul.f32 %v1072, 0.044715
      %v1089 = vadd.f32 %v994, %v1073
      %v1090 = vadd.f32 %v997, %v1074
      %v1091 = vadd.f32 %v1000, %v1075
      %v1092 = vadd.f32 %v1003, %v1076
      %v1093 = vadd.f32 %v1006, %v1077
      %v1094 = vadd.f32 %v1009, %v1078
      %v1095 = vadd.f32 %v1012, %v1079
      %v1096 = vadd.f32 %v1015, %v1080
      %v1097 = vadd.f32 %v1018, %v1081
      %v1098 = vadd.f32 %v1021, %v1082
      %v1099 = vadd.f32 %v1024, %v1083
      %v1100 = vadd.f32 %v1027, %v1084
      %v1101 = vadd.f32 %v1030, %v1085
      %v1102 = vadd.f32 %v1033, %v1086
      %v1103 = vadd.f32 %v1036, %v1087
      %v1104 = vadd.f32 %v1039, %v1088
      %v1105 = vmul.f32 %v1089, 0.7978846
      %v1106 = vmul.f32 %v1090, 0.7978846
      %v1107 = vmul.f32 %v1091, 0.7978846
      %v1108 = vmul.f32 %v1092, 0.7978846
      %v1109 = vmul.f32 %v1093, 0.7978846
      %v1110 = vmul.f32 %v1094, 0.7978846
      %v1111 = vmul.f32 %v1095, 0.7978846
      %v1112 = vmul.f32 %v1096, 0.7978846
      %v1113 = vmul.f32 %v1097, 0.7978846
      %v1114 = vmul.f32 %v1098, 0.7978846
      %v1115 = vmul.f32 %v1099, 0.7978846
      %v1116 = vmul.f32 %v1100, 0.7978846
      %v1117 = vmul.f32 %v1101, 0.7978846
      %v1118 = vmul.f32 %v1102, 0.7978846
      %v1119 = vmul.f32 %v1103, 0.7978846
      %v1120 = vmul.f32 %v1104, 0.7978846
      %v1121 = vtanh.pop %v1105
      %v1122 = vtanh.pop %v1106
      %v1123 = vtanh.pop %v1107
      %v1124 = vtanh.pop %v1108
      %v1125 = vtanh.pop %v1109
      %v1126 = vtanh.pop %v1110
      %v1127 = vtanh.pop %v1111
      %v1128 = vtanh.pop %v1112
      %v1129 = vtanh.pop %v1113
      %v1130 = vtanh.pop %v1114
      %v1131 = vtanh.pop %v1115
      %v1132 = vtanh.pop %v1116
      %v1133 = vtanh.pop %v1117
      %v1134 = vtanh.pop %v1118
      %v1135 = vtanh.pop %v1119
      %v1136 = vtanh.pop %v1120
      %v1137 = vadd.f32 %v1121, 1.0
      %v1138 = vadd.f32 %v1122, 1.0
      %v1139 = vadd.f32 %v1123, 1.0
      %v1140 = vadd.f32 %v1124, 1.0
      %v1141 = vadd.f32 %v1125, 1.0
      %v1142 = vadd.f32 %v1126, 1.0
      %v1143 = vadd.f32 %v1127, 1.0
      %v1144 = vadd.f32 %v1128, 1.0
      %v1145 = vadd.f32 %v1129, 1.0
      %v1146 = vadd.f32 %v1130, 1.0
      %v1147 = vadd.f32 %v1131, 1.0
      %v1148 = vadd.f32 %v1132, 1.0
      %v1149 = vadd.f32 %v1133, 1.0
      %v1150 = vadd.f32 %v1134, 1.0
      %v1151 = vadd.f32 %v1135, 1.0
      %v1152 = vadd.f32 %v1136, 1.0
      %v1153 = vmul.f32 %v1137, 0.5
      %v1154 = vmul.f32 %v1138, 0.5
      %v1155 = vmul.f32 %v1139, 0.5
      %v1156 = vmul.f32 %v1140, 0.5
      %v1157 = vmul.f32 %v1141, 0.5
      %v1158 = vmul.f32 %v1142, 0.5
      %v1159 = vmul.f32 %v1143, 0.5
      %v1160 = vmul.f32 %v1144, 0.5
      %v1161 = vmul.f32 %v1145, 0.5
      %v1162 = vmul.f32 %v1146, 0.5
      %v1163 = vmul.f32 %v1147, 0.5
      %v1164 = vmul.f32 %v1148, 0.5
      %v1165 = vmul.f32 %v1149, 0.5
      %v1166 = vmul.f32 %v1150, 0.5
      %v1167 = vmul.f32 %v1151, 0.5
      %v1168 = vmul.f32 %v1152, 0.5
      %v1169 = vmul.f32 %v994, %v1153
      %v1170 = vmul.f32 %v997, %v1154
      %v1171 = vmul.f32 %v1000, %v1155
      %v1172 = vmul.f32 %v1003, %v1156
      %v1173 = vmul.f32 %v1006, %v1157
      %v1174 = vmul.f32 %v1009, %v1158
      %v1175 = vmul.f32 %v1012, %v1159
      %v1176 = vmul.f32 %v1015, %v1160
      %v1177 = vmul.f32 %v1018, %v1161
      %v1178 = vmul.f32 %v1021, %v1162
      %v1179 = vmul.f32 %v1024, %v1163
      %v1180 = vmul.f32 %v1027, %v1164
      %v1181 = vmul.f32 %v1030, %v1165
      %v1182 = vmul.f32 %v1033, %v1166
      %v1183 = vmul.f32 %v1036, %v1167
      %v1184 = vmul.f32 %v1039, %v1168
      %1185 = vxpose.xlu0.b32.start [1/16] %v883, 128
      %1186 = vxpose.xlu0.b32.cont [2/16] %v884, 128
      %1187 = vxpose.xlu0.b32.cont [3/16] %v885, 128
      %1188 = vxpose.xlu0.b32.cont [4/16] %v886, 128
      %1189 = vxpose.xlu0.b32.cont [5/16] %v887, 128
      %1190 = vxpose.xlu0.b32.cont [6/16] %v888, 128
      %1191 = vxpose.xlu0.b32.cont [7/16] %v889, 128
      %1192 = vxpose.xlu0.b32.cont [8/16] %v890, 128
      %1193 = vxpose.xlu0.b32.cont [9/16] 0.0, 128
      %1194 = vxpose.xlu0.b32.cont [10/16] 0.0, 128
      %1195 = vxpose.xlu0.b32.cont [11/16] 0.0, 128
      %1196 = vxpose.xlu0.b32.cont [12/16] 0.0, 128
      %1197 = vxpose.xlu0.b32.cont [13/16] 0.0, 128
      %1198 = vxpose.xlu0.b32.cont [14/16] 0.0, 128
      %1199 = vxpose.xlu0.b32.cont [15/16] 0.0, 128
      %1200 = vxpose.xlu0.b32.end [16/16] 0.0, 128
      %v1201 = vpop.trf.xlu0
      %v1202 = vpop.trf.xlu0
      %v1203 = vpop.trf.xlu0
      %v1204 = vpop.trf.xlu0
      %v1205 = vpop.trf.xlu0
      %v1206 = vpop.trf.xlu0
      %v1207 = vpop.trf.xlu0
      %v1208 = vpop.trf.xlu0
      %v1209 = vpop.trf.xlu0
      %v1210 = vpop.trf.xlu0
      %v1211 = vpop.trf.xlu0
      %v1212 = vpop.trf.xlu0
      %v1213 = vpop.trf.xlu0
      %v1214 = vpop.trf.xlu0
      %v1215 = vpop.trf.xlu0
      %v1216 = vpop.trf.xlu0
      %vm1217 = vcmask 523264
      %v1219 = vsel %vm1217, %v1201, 0
      %v1222 = vsel %vm1217, %v1202, 0
      %v1225 = vsel %vm1217, %v1169, 0
      %v1228 = vsel %vm1217, %v1170, 0
      %v1231 = vsel %vm1217, %v1171, 0
      %v1234 = vsel %vm1217, %v1172, 0
      %v1237 = vsel %vm1217, %v1173, 0
      %v1240 = vsel %vm1217, %v1174, 0
      %v1243 = vsel %vm1217, %v1175, 0
      %v1246 = vsel %vm1217, %v1176, 0
      %v1249 = vsel %vm1217, %v1177, 0
      %v1252 = vsel %vm1217, %v1178, 0
      %v1255 = vsel %vm1217, %v1179, 0
      %v1258 = vsel %vm1217, %v1180, 0
      %v1261 = vsel %vm1217, %v1181, 0
      %v1264 = vsel %vm1217, %v1182, 0
      %v1267 = vsel %vm1217, %v1183, 0
      %v1270 = vsel %vm1217, %v1184, 0
      %1272 = vmatpush.xpose.msra.mxu0 %v1270
      %1273 = vmatpush.xpose.msra.mxu0 %v1267
      %1274 = vmatpush.xpose.msra.mxu0 %v1264
      %1275 = vmatpush.xpose.msra.mxu0 %v1261
      %1276 = vmatpush.xpose.msra.mxu0 %v1258
      %1277 = vmatpush.xpose.msra.mxu0 %v1255
      %1278 = vmatpush.xpose.msra.mxu0 %v1252
      %1279 = vmatpush.xpose.msra.mxu0 %v1249
      %1280 = vmatpush.xpose.msra.mxu0 %v1246
      %1281 = vmatpush.xpose.msra.mxu0 %v1243
      %1282 = vmatpush.xpose.msra.mxu0 %v1240
      %1283 = vmatpush.xpose.msra.mxu0 %v1237
      %1284 = vmatpush.xpose.msra.mxu0 %v1234
      %1285 = vmatpush.xpose.msra.mxu0 %v1231
      %1286 = vmatpush.xpose.msra.mxu0 %v1228
      %1287 = vmatpush.xpose.msra.mxu0 %v1225
      %1288 = vmatmul.f32.gmra.mxu0 %v1219
      %v1289 = vpop.f32.mrf.mxu0
      %v1290 = vadd.f32 0.0, %v1289
      %1291 = vmatmul.f32.gmra.mxu0 %v1222
      %v1292 = vpop.f32.mrf.mxu0
      %v1293 = vadd.f32 0.0, %v1292
      %1294 = vdwg.mxu0
      %1295 = vxpose.xlu0.b32.start [1/16] %v875, 128
      %1296 = vxpose.xlu0.b32.cont [2/16] %v876, 128
      %1297 = vxpose.xlu0.b32.cont [3/16] 0.0, 128
      %1298 = vxpose.xlu0.b32.cont [4/16] 0.0, 128
      %1299 = vxpose.xlu0.b32.cont [5/16] 0.0, 128
      %1300 = vxpose.xlu0.b32.cont [6/16] 0.0, 128
      %1301 = vxpose.xlu0.b32.cont [7/16] 0.0, 128
      %1302 = vxpose.xlu0.b32.cont [8/16] 0.0, 128
      %1303 = vxpose.xlu0.b32.cont [9/16] 0.0, 128
      %1304 = vxpose.xlu0.b32.cont [10/16] 0.0, 128
      %1305 = vxpose.xlu0.b32.cont [11/16] 0.0, 128
      %1306 = vxpose.xlu0.b32.cont [12/16] 0.0, 128
      %1307 = vxpose.xlu0.b32.cont [13/16] 0.0, 128
      %1308 = vxpose.xlu0.b32.cont [14/16] 0.0, 128
      %1309 = vxpose.xlu0.b32.cont [15/16] 0.0, 128
      %1310 = vxpose.xlu0.b32.end [16/16] 0.0, 128
      %v1311 = vpop.trf.xlu0
      %v1312 = vpop.trf.xlu0
      %v1313 = vpop.trf.xlu0
      %v1314 = vpop.trf.xlu0
      %v1315 = vpop.trf.xlu0
      %v1316 = vpop.trf.xlu0
      %v1317 = vpop.trf.xlu0
      %v1318 = vpop.trf.xlu0
      %v1319 = vpop.trf.xlu0
      %v1320 = vpop.trf.xlu0
      %v1321 = vpop.trf.xlu0
      %v1322 = vpop.trf.xlu0
      %v1323 = vpop.trf.xlu0
      %v1324 = vpop.trf.xlu0
      %v1325 = vpop.trf.xlu0
      %v1326 = vpop.trf.xlu0
      %v1328 = vsel %vm927, %v1311, 0
      %v1331 = vsel %vm927, %v1312, 0
      %v1334 = vsel %vm927, %v1313, 0
      %v1337 = vsel %vm927, %v1314, 0
      %v1340 = vsel %vm927, %v1315, 0
      %v1343 = vsel %vm927, %v1316, 0
      %v1346 = vsel %vm927, %v1317, 0
      %v1349 = vsel %vm927, %v1318, 0
      %v1352 = vsel %vm927, %v1319, 0
      %v1355 = vsel %vm927, %v1320, 0
      %v1358 = vsel %vm927, %v1321, 0
      %v1361 = vsel %vm927, %v1322, 0
      %v1364 = vsel %vm927, %v1323, 0
      %v1367 = vsel %vm927, %v1324, 0
      %v1370 = vsel %vm927, %v1325, 0
      %v1373 = vsel %vm927, %v1326, 0
      %1375 = vmatpush.msra.mxu0 0.0
      %1376 = vmatpush.msra.mxu0 0.0
      %1377 = vmatpush.msra.mxu0 0.0
      %1378 = vmatpush.msra.mxu0 0.0
      %1379 = vmatpush.msra.mxu0 0.0
      %1380 = vmatpush.msra.mxu0 0.0
      %1381 = vmatpush.msra.mxu0 0.0
      %1382 = vmatpush.msra.mxu0 0.0
      %1383 = vmatpush.msra.mxu0 0.0
      %1384 = vmatpush.msra.mxu0 0.0
      %1385 = vmatpush.msra.mxu0 0.0
      %1386 = vmatpush.msra.mxu0 0.0
      %1387 = vmatpush.msra.mxu0 0.0
      %1388 = vmatpush.msra.mxu0 0.0
      %1389 = vmatpush.msra.mxu0 %v882
      %1390 = vmatpush.msra.mxu0 %v881
      %1391 = vmatmul.f32.gmra.mxu0 %v1328
      %v1392 = vpop.f32.mrf.mxu0
      %v1393 = vadd.f32 %v893, %v1392
      %1394 = vmatmul.f32.gmra.mxu0 %v1331
      %v1395 = vpop.f32.mrf.mxu0
      %v1396 = vadd.f32 %v893, %v1395
      %1397 = vmatmul.f32.gmra.mxu0 %v1334
      %v1398 = vpop.f32.mrf.mxu0
      %v1399 = vadd.f32 %v893, %v1398
      %1400 = vmatmul.f32.gmra.mxu0 %v1337
      %v1401 = vpop.f32.mrf.mxu0
      %v1402 = vadd.f32 %v893, %v1401
      %1403 = vmatmul.f32.gmra.mxu0 %v1340
      %v1404 = vpop.f32.mrf.mxu0
      %v1405 = vadd.f32 %v893, %v1404
      %1406 = vmatmul.f32.gmra.mxu0 %v1343
      %v1407 = vpop.f32.mrf.mxu0
      %v1408 = vadd.f32 %v893, %v1407
      %1409 = vmatmul.f32.gmra.mxu0 %v1346
      %v1410 = vpop.f32.mrf.mxu0
      %v1411 = vadd.f32 %v893, %v1410
      %1412 = vmatmul.f32.gmra.mxu0 %v1349
      %v1413 = vpop.f32.mrf.mxu0
      %v1414 = vadd.f32 %v893, %v1413
      %1415 = vmatmul.f32.gmra.mxu0 %v1352
      %v1416 = vpop.f32.mrf.mxu0
      %v1417 = vadd.f32 %v893, %v1416
      %1418 = vmatmul.f32.gmra.mxu0 %v1355
      %v1419 = vpop.f32.mrf.mxu0
      %v1420 = vadd.f32 %v893, %v1419
      %1421 = vmatmul.f32.gmra.mxu0 %v1358
      %v1422 = vpop.f32.mrf.mxu0
      %v1423 = vadd.f32 %v893, %v1422
      %1424 = vmatmul.f32.gmra.mxu0 %v1361
      %v1425 = vpop.f32.mrf.mxu0
      %v1426 = vadd.f32 %v893, %v1425
      %1427 = vmatmul.f32.gmra.mxu0 %v1364
      %v1428 = vpop.f32.mrf.mxu0
      %v1429 = vadd.f32 %v893, %v1428
      %1430 = vmatmul.f32.gmra.mxu0 %v1367
      %v1431 = vpop.f32.mrf.mxu0
      %v1432 = vadd.f32 %v893, %v1431
      %1433 = vmatmul.f32.gmra.mxu0 %v1370
      %v1434 = vpop.f32.mrf.mxu0
      %v1435 = vadd.f32 %v893, %v1434
      %1436 = vmatmul.f32.gmra.mxu0 %v1373
      %v1437 = vpop.f32.mrf.mxu0
      %v1438 = vadd.f32 %v893, %v1437
      %1439 = vdwg.mxu0
      %v1440 = vmul.f32 %v1393, %v1393
      %v1441 = vmul.f32 %v1396, %v1396
      %v1442 = vmul.f32 %v1399, %v1399
      %v1443 = vmul.f32 %v1402, %v1402
      %v1444 = vmul.f32 %v1405, %v1405
      %v1445 = vmul.f32 %v1408, %v1408
      %v1446 = vmul.f32 %v1411, %v1411
      %v1447 = vmul.f32 %v1414, %v1414
      %v1448 = vmul.f32 %v1417, %v1417
      %v1449 = vmul.f32 %v1420, %v1420
      %v1450 = vmul.f32 %v1423, %v1423
      %v1451 = vmul.f32 %v1426, %v1426
      %v1452 = vmul.f32 %v1429, %v1429
      %v1453 = vmul.f32 %v1432, %v1432
      %v1454 = vmul.f32 %v1435, %v1435
      %v1455 = vmul.f32 %v1438, %v1438
      %v1456 = vmul.f32 %v1393, %v1440
      %v1457 = vmul.f32 %v1396, %v1441
      %v1458 = vmul.f32 %v1399, %v1442
      %v1459 = vmul.f32 %v1402, %v1443
      %v1460 = vmul.f32 %v1405, %v1444
      %v1461 = vmul.f32 %v1408, %v1445
      %v1462 = vmul.f32 %v1411, %v1446
      %v1463 = vmul.f32 %v1414, %v1447
      %v1464 = vmul.f32 %v1417, %v1448
      %v1465 = vmul.f32 %v1420, %v1449
      %v1466 = vmul.f32 %v1423, %v1450
      %v1467 = vmul.f32 %v1426, %v1451
      %v1468 = vmul.f32 %v1429, %v1452
      %v1469 = vmul.f32 %v1432, %v1453
      %v1470 = vmul.f32 %v1435, %v1454
      %v1471 = vmul.f32 %v1438, %v1455
      %v1472 = vmul.f32 %v1456, 0.044715
      %v1473 = vmul.f32 %v1457, 0.044715
      %v1474 = vmul.f32 %v1458, 0.044715
      %v1475 = vmul.f32 %v1459, 0.044715
      %v1476 = vmul.f32 %v1460, 0.044715
      %v1477 = vmul.f32 %v1461, 0.044715
      %v1478 = vmul.f32 %v1462, 0.044715
      %v1479 = vmul.f32 %v1463, 0.044715
      %v1480 = vmul.f32 %v1464, 0.044715
      %v1481 = vmul.f32 %v1465, 0.044715
      %v1482 = vmul.f32 %v1466, 0.044715
      %v1483 = vmul.f32 %v1467, 0.044715
      %v1484 = vmul.f32 %v1468, 0.044715
      %v1485 = vmul.f32 %v1469, 0.044715
      %v1486 = vmul.f32 %v1470, 0.044715
      %v1487 = vmul.f32 %v1471, 0.044715
      %v1488 = vadd.f32 %v1393, %v1472
      %v1489 = vadd.f32 %v1396, %v1473
      %v1490 = vadd.f32 %v1399, %v1474
      %v1491 = vadd.f32 %v1402, %v1475
      %v1492 = vadd.f32 %v1405, %v1476
      %v1493 = vadd.f32 %v1408, %v1477
      %v1494 = vadd.f32 %v1411, %v1478
      %v1495 = vadd.f32 %v1414, %v1479
      %v1496 = vadd.f32 %v1417, %v1480
      %v1497 = vadd.f32 %v1420, %v1481
      %v1498 = vadd.f32 %v1423, %v1482
      %v1499 = vadd.f32 %v1426, %v1483
      %v1500 = vadd.f32 %v1429, %v1484
      %v1501 = vadd.f32 %v1432, %v1485
      %v1502 = vadd.f32 %v1435, %v1486
      %v1503 = vadd.f32 %v1438, %v1487
      %v1504 = vmul.f32 %v1488, 0.7978846
      %v1505 = vmul.f32 %v1489, 0.7978846
      %v1506 = vmul.f32 %v1490, 0.7978846
      %v1507 = vmul.f32 %v1491, 0.7978846
      %v1508 = vmul.f32 %v1492, 0.7978846
      %v1509 = vmul.f32 %v1493, 0.7978846
      %v1510 = vmul.f32 %v1494, 0.7978846
      %v1511 = vmul.f32 %v1495, 0.7978846
      %v1512 = vmul.f32 %v1496, 0.7978846
      %v1513 = vmul.f32 %v1497, 0.7978846
      %v1514 = vmul.f32 %v1498, 0.7978846
      %v1515 = vmul.f32 %v1499, 0.7978846
      %v1516 = vmul.f32 %v1500, 0.7978846
      %v1517 = vmul.f32 %v1501, 0.7978846
      %v1518 = vmul.f32 %v1502, 0.7978846
      %v1519 = vmul.f32 %v1503, 0.7978846
      %v1520 = vtanh.pop %v1504
      %v1521 = vtanh.pop %v1505
      %v1522 = vtanh.pop %v1506
      %v1523 = vtanh.pop %v1507
      %v1524 = vtanh.pop %v1508
      %v1525 = vtanh.pop %v1509
      %v1526 = vtanh.pop %v1510
      %v1527 = vtanh.pop %v1511
      %v1528 = vtanh.pop %v1512
      %v1529 = vtanh.pop %v1513
      %v1530 = vtanh.pop %v1514
      %v1531 = vtanh.pop %v1515
      %v1532 = vtanh.pop %v1516
      %v1533 = vtanh.pop %v1517
      %v1534 = vtanh.pop %v1518
      %v1535 = vtanh.pop %v1519
      %v1536 = vadd.f32 %v1520, 1.0
      %v1537 = vadd.f32 %v1521, 1.0
      %v1538 = vadd.f32 %v1522, 1.0
      %v1539 = vadd.f32 %v1523, 1.0
      %v1540 = vadd.f32 %v1524, 1.0
      %v1541 = vadd.f32 %v1525, 1.0
      %v1542 = vadd.f32 %v1526, 1.0
      %v1543 = vadd.f32 %v1527, 1.0
      %v1544 = vadd.f32 %v1528, 1.0
      %v1545 = vadd.f32 %v1529, 1.0
      %v1546 = vadd.f32 %v1530, 1.0
      %v1547 = vadd.f32 %v1531, 1.0
      %v1548 = vadd.f32 %v1532, 1.0
      %v1549 = vadd.f32 %v1533, 1.0
      %v1550 = vadd.f32 %v1534, 1.0
      %v1551 = vadd.f32 %v1535, 1.0
      %v1552 = vmul.f32 %v1536, 0.5
      %v1553 = vmul.f32 %v1537, 0.5
      %v1554 = vmul.f32 %v1538, 0.5
      %v1555 = vmul.f32 %v1539, 0.5
      %v1556 = vmul.f32 %v1540, 0.5
      %v1557 = vmul.f32 %v1541, 0.5
      %v1558 = vmul.f32 %v1542, 0.5
      %v1559 = vmul.f32 %v1543, 0.5
      %v1560 = vmul.f32 %v1544, 0.5
      %v1561 = vmul.f32 %v1545, 0.5
      %v1562 = vmul.f32 %v1546, 0.5
      %v1563 = vmul.f32 %v1547, 0.5
      %v1564 = vmul.f32 %v1548, 0.5
      %v1565 = vmul.f32 %v1549, 0.5
      %v1566 = vmul.f32 %v1550, 0.5
      %v1567 = vmul.f32 %v1551, 0.5
      %v1568 = vmul.f32 %v1393, %v1552
      %v1569 = vmul.f32 %v1396, %v1553
      %v1570 = vmul.f32 %v1399, %v1554
      %v1571 = vmul.f32 %v1402, %v1555
      %v1572 = vmul.f32 %v1405, %v1556
      %v1573 = vmul.f32 %v1408, %v1557
      %v1574 = vmul.f32 %v1411, %v1558
      %v1575 = vmul.f32 %v1414, %v1559
      %v1576 = vmul.f32 %v1417, %v1560
      %v1577 = vmul.f32 %v1420, %v1561
      %v1578 = vmul.f32 %v1423, %v1562
      %v1579 = vmul.f32 %v1426, %v1563
      %v1580 = vmul.f32 %v1429, %v1564
      %v1581 = vmul.f32 %v1432, %v1565
      %v1582 = vmul.f32 %v1435, %v1566
      %v1583 = vmul.f32 %v1438, %v1567
      %v1585 = vsel %vm1217, %v1568, 0
      %v1588 = vsel %vm1217, %v1569, 0
      %v1591 = vsel %vm1217, %v1570, 0
      %v1594 = vsel %vm1217, %v1571, 0
      %v1597 = vsel %vm1217, %v1572, 0
      %v1600 = vsel %vm1217, %v1573, 0
      %v1603 = vsel %vm1217, %v1574, 0
      %v1606 = vsel %vm1217, %v1575, 0
      %v1609 = vsel %vm1217, %v1576, 0
      %v1612 = vsel %vm1217, %v1577, 0
      %v1615 = vsel %vm1217, %v1578, 0
      %v1618 = vsel %vm1217, %v1579, 0
      %v1621 = vsel %vm1217, %v1580, 0
      %v1624 = vsel %vm1217, %v1581, 0
      %v1627 = vsel %vm1217, %v1582, 0
      %v1630 = vsel %vm1217, %v1583, 0
      %1632 = vmatpush.xpose.msra.mxu0 %v1630
      %1633 = vmatpush.xpose.msra.mxu0 %v1627
      %1634 = vmatpush.xpose.msra.mxu0 %v1624
      %1635 = vmatpush.xpose.msra.mxu0 %v1621
      %1636 = vmatpush.xpose.msra.mxu0 %v1618
      %1637 = vmatpush.xpose.msra.mxu0 %v1615
      %1638 = vmatpush.xpose.msra.mxu0 %v1612
      %1639 = vmatpush.xpose.msra.mxu0 %v1609
      %1640 = vmatpush.xpose.msra.mxu0 %v1606
      %1641 = vmatpush.xpose.msra.mxu0 %v1603
      %1642 = vmatpush.xpose.msra.mxu0 %v1600
      %1643 = vmatpush.xpose.msra.mxu0 %v1597
      %1644 = vmatpush.xpose.msra.mxu0 %v1594
      %1645 = vmatpush.xpose.msra.mxu0 %v1591
      %1646 = vmatpush.xpose.msra.mxu0 %v1588
      %1647 = vmatpush.xpose.msra.mxu0 %v1585
      %1648 = vmatmul.f32.gmra.mxu0 %v1219
      %v1649 = vpop.f32.mrf.mxu0
      %v1650 = vadd.f32 0.0, %v1649
      %1651 = vmatmul.f32.gmra.mxu0 %v1222
      %v1652 = vpop.f32.mrf.mxu0
      %v1653 = vadd.f32 0.0, %v1652
      %1654 = vdwg.mxu0
      %1655 = vxpose.xlu0.b32.start [1/16] %v877, 128
      %1656 = vxpose.xlu0.b32.cont [2/16] %v878, 128
      %1657 = vxpose.xlu0.b32.cont [3/16] 0.0, 128
      %1658 = vxpose.xlu0.b32.cont [4/16] 0.0, 128
      %1659 = vxpose.xlu0.b32.cont [5/16] 0.0, 128
      %1660 = vxpose.xlu0.b32.cont [6/16] 0.0, 128
      %1661 = vxpose.xlu0.b32.cont [7/16] 0.0, 128
      %1662 = vxpose.xlu0.b32.cont [8/16] 0.0, 128
      %1663 = vxpose.xlu0.b32.cont [9/16] 0.0, 128
      %1664 = vxpose.xlu0.b32.cont [10/16] 0.0, 128
      %1665 = vxpose.xlu0.b32.cont [11/16] 0.0, 128
      %1666 = vxpose.xlu0.b32.cont [12/16] 0.0, 128
      %1667 = vxpose.xlu0.b32.cont [13/16] 0.0, 128
      %1668 = vxpose.xlu0.b32.cont [14/16] 0.0, 128
      %1669 = vxpose.xlu0.b32.cont [15/16] 0.0, 128
      %1670 = vxpose.xlu0.b32.end [16/16] 0.0, 128
      %v1671 = vpop.trf.xlu0
      %v1672 = vpop.trf.xlu0
      %v1673 = vpop.trf.xlu0
      %v1674 = vpop.trf.xlu0
      %v1675 = vpop.trf.xlu0
      %v1676 = vpop.trf.xlu0
      %v1677 = vpop.trf.xlu0
      %v1678 = vpop.trf.xlu0
      %v1679 = vpop.trf.xlu0
      %v1680 = vpop.trf.xlu0
      %v1681 = vpop.trf.xlu0
      %v1682 = vpop.trf.xlu0
      %v1683 = vpop.trf.xlu0
      %v1684 = vpop.trf.xlu0
      %v1685 = vpop.trf.xlu0
      %v1686 = vpop.trf.xlu0
      %v1688 = vsel %vm927, %v1671, 0
      %v1691 = vsel %vm927, %v1672, 0
      %v1694 = vsel %vm927, %v1673, 0
      %v1697 = vsel %vm927, %v1674, 0
      %v1700 = vsel %vm927, %v1675, 0
      %v1703 = vsel %vm927, %v1676, 0
      %v1706 = vsel %vm927, %v1677, 0
      %v1709 = vsel %vm927, %v1678, 0
      %v1712 = vsel %vm927, %v1679, 0
      %v1715 = vsel %vm927, %v1680, 0
      %v1718 = vsel %vm927, %v1681, 0
      %v1721 = vsel %vm927, %v1682, 0
      %v1724 = vsel %vm927, %v1683, 0
      %v1727 = vsel %vm927, %v1684, 0
      %v1730 = vsel %vm927, %v1685, 0
      %v1733 = vsel %vm927, %v1686, 0
      %1735 = vmatpush.msra.mxu0 0.0
      %1736 = vmatpush.msra.mxu0 0.0
      %1737 = vmatpush.msra.mxu0 0.0
      %1738 = vmatpush.msra.mxu0 0.0
      %1739 = vmatpush.msra.mxu0 0.0
      %1740 = vmatpush.msra.mxu0 0.0
      %1741 = vmatpush.msra.mxu0 0.0
      %1742 = vmatpush.msra.mxu0 0.0
      %1743 = vmatpush.msra.mxu0 0.0
      %1744 = vmatpush.msra.mxu0 0.0
      %1745 = vmatpush.msra.mxu0 0.0
      %1746 = vmatpush.msra.mxu0 0.0
      %1747 = vmatpush.msra.mxu0 0.0
      %1748 = vmatpush.msra.mxu0 0.0
      %1749 = vmatpush.msra.mxu0 %v882
      %1750 = vmatpush.msra.mxu0 %v881
      %1751 = vmatmul.f32.gmra.mxu0 %v1688
      %v1752 = vpop.f32.mrf.mxu0
      %v1753 = vadd.f32 %v893, %v1752
      %1754 = vmatmul.f32.gmra.mxu0 %v1691
      %v1755 = vpop.f32.mrf.mxu0
      %v1756 = vadd.f32 %v893, %v1755
      %1757 = vmatmul.f32.gmra.mxu0 %v1694
      %v1758 = vpop.f32.mrf.mxu0
      %v1759 = vadd.f32 %v893, %v1758
      %1760 = vmatmul.f32.gmra.mxu0 %v1697
      %v1761 = vpop.f32.mrf.mxu0
      %v1762 = vadd.f32 %v893, %v1761
      %1763 = vmatmul.f32.gmra.mxu0 %v1700
      %v1764 = vpop.f32.mrf.mxu0
      %v1765 = vadd.f32 %v893, %v1764
      %1766 = vmatmul.f32.gmra.mxu0 %v1703
      %v1767 = vpop.f32.mrf.mxu0
      %v1768 = vadd.f32 %v893, %v1767
      %1769 = vmatmul.f32.gmra.mxu0 %v1706
      %v1770 = vpop.f32.mrf.mxu0
      %v1771 = vadd.f32 %v893, %v1770
      %1772 = vmatmul.f32.gmra.mxu0 %v1709
      %v1773 = vpop.f32.mrf.mxu0
      %v1774 = vadd.f32 %v893, %v1773
      %1775 = vmatmul.f32.gmra.mxu0 %v1712
      %v1776 = vpop.f32.mrf.mxu0
      %v1777 = vadd.f32 %v893, %v1776
      %1778 = vmatmul.f32.gmra.mxu0 %v1715
      %v1779 = vpop.f32.mrf.mxu0
      %v1780 = vadd.f32 %v893, %v1779
      %1781 = vmatmul.f32.gmra.mxu0 %v1718
      %v1782 = vpop.f32.mrf.mxu0
      %v1783 = vadd.f32 %v893, %v1782
      %1784 = vmatmul.f32.gmra.mxu0 %v1721
      %v1785 = vpop.f32.mrf.mxu0
      %v1786 = vadd.f32 %v893, %v1785
      %1787 = vmatmul.f32.gmra.mxu0 %v1724
      %v1788 = vpop.f32.mrf.mxu0
      %v1789 = vadd.f32 %v893, %v1788
      %1790 = vmatmul.f32.gmra.mxu0 %v1727
      %v1791 = vpop.f32.mrf.mxu0
      %v1792 = vadd.f32 %v893, %v1791
      %1793 = vmatmul.f32.gmra.mxu0 %v1730
      %v1794 = vpop.f32.mrf.mxu0
      %v1795 = vadd.f32 %v893, %v1794
      %1796 = vmatmul.f32.gmra.mxu0 %v1733
      %v1797 = vpop.f32.mrf.mxu0
      %v1798 = vadd.f32 %v893, %v1797
      %1799 = vdwg.mxu0
      %v1800 = vmul.f32 %v1753, %v1753
      %v1801 = vmul.f32 %v1756, %v1756
      %v1802 = vmul.f32 %v1759, %v1759
      %v1803 = vmul.f32 %v1762, %v1762
      %v1804 = vmul.f32 %v1765, %v1765
      %v1805 = vmul.f32 %v1768, %v1768
      %v1806 = vmul.f32 %v1771, %v1771
      %v1807 = vmul.f32 %v1774, %v1774
      %v1808 = vmul.f32 %v1777, %v1777
      %v1809 = vmul.f32 %v1780, %v1780
      %v1810 = vmul.f32 %v1783, %v1783
      %v1811 = vmul.f32 %v1786, %v1786
      %v1812 = vmul.f32 %v1789, %v1789
      %v1813 = vmul.f32 %v1792, %v1792
      %v1814 = vmul.f32 %v1795, %v1795
      %v1815 = vmul.f32 %v1798, %v1798
      %v1816 = vmul.f32 %v1753, %v1800
      %v1817 = vmul.f32 %v1756, %v1801
      %v1818 = vmul.f32 %v1759, %v1802
      %v1819 = vmul.f32 %v1762, %v1803
      %v1820 = vmul.f32 %v1765, %v1804
      %v1821 = vmul.f32 %v1768, %v1805
      %v1822 = vmul.f32 %v1771, %v1806
      %v1823 = vmul.f32 %v1774, %v1807
      %v1824 = vmul.f32 %v1777, %v1808
      %v1825 = vmul.f32 %v1780, %v1809
      %v1826 = vmul.f32 %v1783, %v1810
      %v1827 = vmul.f32 %v1786, %v1811
      %v1828 = vmul.f32 %v1789, %v1812
      %v1829 = vmul.f32 %v1792, %v1813
      %v1830 = vmul.f32 %v1795, %v1814
      %v1831 = vmul.f32 %v1798, %v1815
      %v1832 = vmul.f32 %v1816, 0.044715
      %v1833 = vmul.f32 %v1817, 0.044715
      %v1834 = vmul.f32 %v1818, 0.044715
      %v1835 = vmul.f32 %v1819, 0.044715
      %v1836 = vmul.f32 %v1820, 0.044715
      %v1837 = vmul.f32 %v1821, 0.044715
      %v1838 = vmul.f32 %v1822, 0.044715
      %v1839 = vmul.f32 %v1823, 0.044715
      %v1840 = vmul.f32 %v1824, 0.044715
      %v1841 = vmul.f32 %v1825, 0.044715
      %v1842 = vmul.f32 %v1826, 0.044715
      %v1843 = vmul.f32 %v1827, 0.044715
      %v1844 = vmul.f32 %v1828, 0.044715
      %v1845 = vmul.f32 %v1829, 0.044715
      %v1846 = vmul.f32 %v1830, 0.044715
      %v1847 = vmul.f32 %v1831, 0.044715
      %v1848 = vadd.f32 %v1753, %v1832
      %v1849 = vadd.f32 %v1756, %v1833
      %v1850 = vadd.f32 %v1759, %v1834
      %v1851 = vadd.f32 %v1762, %v1835
      %v1852 = vadd.f32 %v1765, %v1836
      %v1853 = vadd.f32 %v1768, %v1837
      %v1854 = vadd.f32 %v1771, %v1838
      %v1855 = vadd.f32 %v1774, %v1839
      %v1856 = vadd.f32 %v1777, %v1840
      %v1857 = vadd.f32 %v1780, %v1841
      %v1858 = vadd.f32 %v1783, %v1842
      %v1859 = vadd.f32 %v1786, %v1843
      %v1860 = vadd.f32 %v1789, %v1844
      %v1861 = vadd.f32 %v1792, %v1845
      %v1862 = vadd.f32 %v1795, %v1846
      %v1863 = vadd.f32 %v1798, %v1847
      %v1864 = vmul.f32 %v1848, 0.7978846
      %v1865 = vmul.f32 %v1849, 0.7978846
      %v1866 = vmul.f32 %v1850, 0.7978846
      %v1867 = vmul.f32 %v1851, 0.7978846
      %v1868 = vmul.f32 %v1852, 0.7978846
      %v1869 = vmul.f32 %v1853, 0.7978846
      %v1870 = vmul.f32 %v1854, 0.7978846
      %v1871 = vmul.f32 %v1855, 0.7978846
      %v1872 = vmul.f32 %v1856, 0.7978846
      %v1873 = vmul.f32 %v1857, 0.7978846
      %v1874 = vmul.f32 %v1858, 0.7978846
      %v1875 = vmul.f32 %v1859, 0.7978846
      %v1876 = vmul.f32 %v1860, 0.7978846
      %v1877 = vmul.f32 %v1861, 0.7978846
      %v1878 = vmul.f32 %v1862, 0.7978846
      %v1879 = vmul.f32 %v1863, 0.7978846
      %v1880 = vtanh.pop %v1864
      %v1881 = vtanh.pop %v1865
      %v1882 = vtanh.pop %v1866
      %v1883 = vtanh.pop %v1867
      %v1884 = vtanh.pop %v1868
      %v1885 = vtanh.pop %v1869
      %v1886 = vtanh.pop %v1870
      %v1887 = vtanh.pop %v1871
      %v1888 = vtanh.pop %v1872
      %v1889 = vtanh.pop %v1873
      %v1890 = vtanh.pop %v1874
      %v1891 = vtanh.pop %v1875
      %v1892 = vtanh.pop %v1876
      %v1893 = vtanh.pop %v1877
      %v1894 = vtanh.pop %v1878
      %v1895 = vtanh.pop %v1879
      %v1896 = vadd.f32 %v1880, 1.0
      %v1897 = vadd.f32 %v1881, 1.0
      %v1898 = vadd.f32 %v1882, 1.0
      %v1899 = vadd.f32 %v1883, 1.0
      %v1900 = vadd.f32 %v1884, 1.0
      %v1901 = vadd.f32 %v1885, 1.0
      %v1902 = vadd.f32 %v1886, 1.0
      %v1903 = vadd.f32 %v1887, 1.0
      %v1904 = vadd.f32 %v1888, 1.0
      %v1905 = vadd.f32 %v1889, 1.0
      %v1906 = vadd.f32 %v1890, 1.0
      %v1907 = vadd.f32 %v1891, 1.0
      %v1908 = vadd.f32 %v1892, 1.0
      %v1909 = vadd.f32 %v1893, 1.0
      %v1910 = vadd.f32 %v1894, 1.0
      %v1911 = vadd.f32 %v1895, 1.0
      %v1912 = vmul.f32 %v1896, 0.5
      %v1913 = vmul.f32 %v1897, 0.5
      %v1914 = vmul.f32 %v1898, 0.5
      %v1915 = vmul.f32 %v1899, 0.5
      %v1916 = vmul.f32 %v1900, 0.5
      %v1917 = vmul.f32 %v1901, 0.5
      %v1918 = vmul.f32 %v1902, 0.5
      %v1919 = vmul.f32 %v1903, 0.5
      %v1920 = vmul.f32 %v1904, 0.5
      %v1921 = vmul.f32 %v1905, 0.5
      %v1922 = vmul.f32 %v1906, 0.5
      %v1923 = vmul.f32 %v1907, 0.5
      %v1924 = vmul.f32 %v1908, 0.5
      %v1925 = vmul.f32 %v1909, 0.5
      %v1926 = vmul.f32 %v1910, 0.5
      %v1927 = vmul.f32 %v1911, 0.5
      %v1928 = vmul.f32 %v1753, %v1912
      %v1929 = vmul.f32 %v1756, %v1913
      %v1930 = vmul.f32 %v1759, %v1914
      %v1931 = vmul.f32 %v1762, %v1915
      %v1932 = vmul.f32 %v1765, %v1916
      %v1933 = vmul.f32 %v1768, %v1917
      %v1934 = vmul.f32 %v1771, %v1918
      %v1935 = vmul.f32 %v1774, %v1919
      %v1936 = vmul.f32 %v1777, %v1920
      %v1937 = vmul.f32 %v1780, %v1921
      %v1938 = vmul.f32 %v1783, %v1922
      %v1939 = vmul.f32 %v1786, %v1923
      %v1940 = vmul.f32 %v1789, %v1924
      %v1941 = vmul.f32 %v1792, %v1925
      %v1942 = vmul.f32 %v1795, %v1926
      %v1943 = vmul.f32 %v1798, %v1927
      %v1945 = vsel %vm1217, %v1928, 0
      %v1948 = vsel %vm1217, %v1929, 0
      %v1951 = vsel %vm1217, %v1930, 0
      %v1954 = vsel %vm1217, %v1931, 0
      %v1957 = vsel %vm1217, %v1932, 0
      %v1960 = vsel %vm1217, %v1933, 0
      %v1963 = vsel %vm1217, %v1934, 0
      %v1966 = vsel %vm1217, %v1935, 0
      %v1969 = vsel %vm1217, %v1936, 0
      %v1972 = vsel %vm1217, %v1937, 0
      %v1975 = vsel %vm1217, %v1938, 0
      %v1978 = vsel %vm1217, %v1939, 0
      %v1981 = vsel %vm1217, %v1940, 0
      %v1984 = vsel %vm1217, %v1941, 0
      %v1987 = vsel %vm1217, %v1942, 0
      %v1990 = vsel %vm1217, %v1943, 0
      %1992 = vmatpush.xpose.msra.mxu0 %v1990
      %1993 = vmatpush.xpose.msra.mxu0 %v1987
      %1994 = vmatpush.xpose.msra.mxu0 %v1984
      %1995 = vmatpush.xpose.msra.mxu0 %v1981
      %1996 = vmatpush.xpose.msra.mxu0 %v1978
      %1997 = vmatpush.xpose.msra.mxu0 %v1975
      %1998 = vmatpush.xpose.msra.mxu0 %v1972
      %1999 = vmatpush.xpose.msra.mxu0 %v1969
      %2000 = vmatpush.xpose.msra.mxu0 %v1966
      %2001 = vmatpush.xpose.msra.mxu0 %v1963
      %2002 = vmatpush.xpose.msra.mxu0 %v1960
      %2003 = vmatpush.xpose.msra.mxu0 %v1957
      %2004 = vmatpush.xpose.msra.mxu0 %v1954
      %2005 = vmatpush.xpose.msra.mxu0 %v1951
      %2006 = vmatpush.xpose.msra.mxu0 %v1948
      %2007 = vmatpush.xpose.msra.mxu0 %v1945
      %2008 = vmatmul.f32.gmra.mxu0 %v1219
      %v2009 = vpop.f32.mrf.mxu0
      %v2010 = vadd.f32 0.0, %v2009
      %2011 = vmatmul.f32.gmra.mxu0 %v1222
      %v2012 = vpop.f32.mrf.mxu0
      %v2013 = vadd.f32 0.0, %v2012
      %2014 = vdwg.mxu0
      %2015 = vxpose.xlu0.b32.start [1/16] %v879, 128
      %2016 = vxpose.xlu0.b32.cont [2/16] %v880, 128
      %2017 = vxpose.xlu0.b32.cont [3/16] 0.0, 128
      %2018 = vxpose.xlu0.b32.cont [4/16] 0.0, 128
      %2019 = vxpose.xlu0.b32.cont [5/16] 0.0, 128
      %2020 = vxpose.xlu0.b32.cont [6/16] 0.0, 128
      %2021 = vxpose.xlu0.b32.cont [7/16] 0.0, 128
      %2022 = vxpose.xlu0.b32.cont [8/16] 0.0, 128
      %2023 = vxpose.xlu0.b32.cont [9/16] 0.0, 128
      %2024 = vxpose.xlu0.b32.cont [10/16] 0.0, 128
      %2025 = vxpose.xlu0.b32.cont [11/16] 0.0, 128
      %2026 = vxpose.xlu0.b32.cont [12/16] 0.0, 128
      %2027 = vxpose.xlu0.b32.cont [13/16] 0.0, 128
      %2028 = vxpose.xlu0.b32.cont [14/16] 0.0, 128
      %2029 = vxpose.xlu0.b32.cont [15/16] 0.0, 128
      %2030 = vxpose.xlu0.b32.end [16/16] 0.0, 128
      %v2031 = vpop.trf.xlu0
      %v2032 = vpop.trf.xlu0
      %v2033 = vpop.trf.xlu0
      %v2034 = vpop.trf.xlu0
      %v2035 = vpop.trf.xlu0
      %v2036 = vpop.trf.xlu0
      %v2037 = vpop.trf.xlu0
      %v2038 = vpop.trf.xlu0
      %v2039 = vpop.trf.xlu0
      %v2040 = vpop.trf.xlu0
      %v2041 = vpop.trf.xlu0
      %v2042 = vpop.trf.xlu0
      %v2043 = vpop.trf.xlu0
      %v2044 = vpop.trf.xlu0
      %v2045 = vpop.trf.xlu0
      %v2046 = vpop.trf.xlu0
      %v2048 = vsel %vm927, %v2031, 0
      %v2051 = vsel %vm927, %v2032, 0
      %v2054 = vsel %vm927, %v2033, 0
      %v2057 = vsel %vm927, %v2034, 0
      %v2060 = vsel %vm927, %v2035, 0
      %v2063 = vsel %vm927, %v2036, 0
      %v2066 = vsel %vm927, %v2037, 0
      %v2069 = vsel %vm927, %v2038, 0
      %v2072 = vsel %vm927, %v2039, 0
      %v2075 = vsel %vm927, %v2040, 0
      %v2078 = vsel %vm927, %v2041, 0
      %v2081 = vsel %vm927, %v2042, 0
      %v2084 = vsel %vm927, %v2043, 0
      %v2087 = vsel %vm927, %v2044, 0
      %v2090 = vsel %vm927, %v2045, 0
      %v2093 = vsel %vm927, %v2046, 0
      %2095 = vmatpush.msra.mxu0 0.0
      %2096 = vmatpush.msra.mxu0 0.0
      %2097 = vmatpush.msra.mxu0 0.0
      %2098 = vmatpush.msra.mxu0 0.0
      %2099 = vmatpush.msra.mxu0 0.0
      %2100 = vmatpush.msra.mxu0 0.0
      %2101 = vmatpush.msra.mxu0 0.0
      %2102 = vmatpush.msra.mxu0 0.0
      %2103 = vmatpush.msra.mxu0 0.0
      %2104 = vmatpush.msra.mxu0 0.0
      %2105 = vmatpush.msra.mxu0 0.0
      %2106 = vmatpush.msra.mxu0 0.0
      %2107 = vmatpush.msra.mxu0 0.0
      %2108 = vmatpush.msra.mxu0 0.0
      %2109 = vmatpush.msra.mxu0 %v882
      %2110 = vmatpush.msra.mxu0 %v881
      %2111 = vmatmul.f32.gmra.mxu0 %v2048
      %v2112 = vpop.f32.mrf.mxu0
      %v2113 = vadd.f32 %v893, %v2112
      %2114 = vmatmul.f32.gmra.mxu0 %v2051
      %v2115 = vpop.f32.mrf.mxu0
      %v2116 = vadd.f32 %v893, %v2115
      %2117 = vmatmul.f32.gmra.mxu0 %v2054
      %v2118 = vpop.f32.mrf.mxu0
      %v2119 = vadd.f32 %v893, %v2118
      %2120 = vmatmul.f32.gmra.mxu0 %v2057
      %v2121 = vpop.f32.mrf.mxu0
      %v2122 = vadd.f32 %v893, %v2121
      %2123 = vmatmul.f32.gmra.mxu0 %v2060
      %v2124 = vpop.f32.mrf.mxu0
      %v2125 = vadd.f32 %v893, %v2124
      %2126 = vmatmul.f32.gmra.mxu0 %v2063
      %v2127 = vpop.f32.mrf.mxu0
      %v2128 = vadd.f32 %v893, %v2127
      %2129 = vmatmul.f32.gmra.mxu0 %v2066
      %v2130 = vpop.f32.mrf.mxu0
      %v2131 = vadd.f32 %v893, %v2130
      %2132 = vmatmul.f32.gmra.mxu0 %v2069
      %v2133 = vpop.f32.mrf.mxu0
      %v2134 = vadd.f32 %v893, %v2133
      %2135 = vmatmul.f32.gmra.mxu0 %v2072
      %v2136 = vpop.f32.mrf.mxu0
      %v2137 = vadd.f32 %v893, %v2136
      %2138 = vmatmul.f32.gmra.mxu0 %v2075
      %v2139 = vpop.f32.mrf.mxu0
      %v2140 = vadd.f32 %v893, %v2139
      %2141 = vmatmul.f32.gmra.mxu0 %v2078
      %v2142 = vpop.f32.mrf.mxu0
      %v2143 = vadd.f32 %v893, %v2142
      %2144 = vmatmul.f32.gmra.mxu0 %v2081
      %v2145 = vpop.f32.mrf.mxu0
      %v2146 = vadd.f32 %v893, %v2145
      %2147 = vmatmul.f32.gmra.mxu0 %v2084
      %v2148 = vpop.f32.mrf.mxu0
      %v2149 = vadd.f32 %v893, %v2148
      %2150 = vmatmul.f32.gmra.mxu0 %v2087
      %v2151 = vpop.f32.mrf.mxu0
      %v2152 = vadd.f32 %v893, %v2151
      %2153 = vmatmul.f32.gmra.mxu0 %v2090
      %v2154 = vpop.f32.mrf.mxu0
      %v2155 = vadd.f32 %v893, %v2154
      %2156 = vmatmul.f32.gmra.mxu0 %v2093
      %v2157 = vpop.f32.mrf.mxu0
      %v2158 = vadd.f32 %v893, %v2157
      %2159 = vdwg.mxu0
      %v2160 = vmul.f32 %v2113, %v2113
      %v2161 = vmul.f32 %v2116, %v2116
      %v2162 = vmul.f32 %v2119, %v2119
      %v2163 = vmul.f32 %v2122, %v2122
      %v2164 = vmul.f32 %v2125, %v2125
      %v2165 = vmul.f32 %v2128, %v2128
      %v2166 = vmul.f32 %v2131, %v2131
      %v2167 = vmul.f32 %v2134, %v2134
      %v2168 = vmul.f32 %v2137, %v2137
      %v2169 = vmul.f32 %v2140, %v2140
      %v2170 = vmul.f32 %v2143, %v2143
      %v2171 = vmul.f32 %v2146, %v2146
      %v2172 = vmul.f32 %v2149, %v2149
      %v2173 = vmul.f32 %v2152, %v2152
      %v2174 = vmul.f32 %v2155, %v2155
      %v2175 = vmul.f32 %v2158, %v2158
      %v2176 = vmul.f32 %v2113, %v2160
      %v2177 = vmul.f32 %v2116, %v2161
      %v2178 = vmul.f32 %v2119, %v2162
      %v2179 = vmul.f32 %v2122, %v2163
      %v2180 = vmul.f32 %v2125, %v2164
      %v2181 = vmul.f32 %v2128, %v2165
      %v2182 = vmul.f32 %v2131, %v2166
      %v2183 = vmul.f32 %v2134, %v2167
      %v2184 = vmul.f32 %v2137, %v2168
      %v2185 = vmul.f32 %v2140, %v2169
      %v2186 = vmul.f32 %v2143, %v2170
      %v2187 = vmul.f32 %v2146, %v2171
      %v2188 = vmul.f32 %v2149, %v2172
      %v2189 = vmul.f32 %v2152, %v2173
      %v2190 = vmul.f32 %v2155, %v2174
      %v2191 = vmul.f32 %v2158, %v2175
      %v2192 = vmul.f32 %v2176, 0.044715
      %v2193 = vmul.f32 %v2177, 0.044715
      %v2194 = vmul.f32 %v2178, 0.044715
      %v2195 = vmul.f32 %v2179, 0.044715
      %v2196 = vmul.f32 %v2180, 0.044715
      %v2197 = vmul.f32 %v2181, 0.044715
      %v2198 = vmul.f32 %v2182, 0.044715
      %v2199 = vmul.f32 %v2183, 0.044715
      %v2200 = vmul.f32 %v2184, 0.044715
      %v2201 = vmul.f32 %v2185, 0.044715
      %v2202 = vmul.f32 %v2186, 0.044715
      %v2203 = vmul.f32 %v2187, 0.044715
      %v2204 = vmul.f32 %v2188, 0.044715
      %v2205 = vmul.f32 %v2189, 0.044715
      %v2206 = vmul.f32 %v2190, 0.044715
      %v2207 = vmul.f32 %v2191, 0.044715
      %v2208 = vadd.f32 %v2113, %v2192
      %v2209 = vadd.f32 %v2116, %v2193
      %v2210 = vadd.f32 %v2119, %v2194
      %v2211 = vadd.f32 %v2122, %v2195
      %v2212 = vadd.f32 %v2125, %v2196
      %v2213 = vadd.f32 %v2128, %v2197
      %v2214 = vadd.f32 %v2131, %v2198
      %v2215 = vadd.f32 %v2134, %v2199
      %v2216 = vadd.f32 %v2137, %v2200
      %v2217 = vadd.f32 %v2140, %v2201
      %v2218 = vadd.f32 %v2143, %v2202
      %v2219 = vadd.f32 %v2146, %v2203
      %v2220 = vadd.f32 %v2149, %v2204
      %v2221 = vadd.f32 %v2152, %v2205
      %v2222 = vadd.f32 %v2155, %v2206
      %v2223 = vadd.f32 %v2158, %v2207
      %v2224 = vmul.f32 %v2208, 0.7978846
      %v2225 = vmul.f32 %v2209, 0.7978846
      %v2226 = vmul.f32 %v2210, 0.7978846
      %v2227 = vmul.f32 %v2211, 0.7978846
      %v2228 = vmul.f32 %v2212, 0.7978846
      %v2229 = vmul.f32 %v2213, 0.7978846
      %v2230 = vmul.f32 %v2214, 0.7978846
      %v2231 = vmul.f32 %v2215, 0.7978846
      %v2232 = vmul.f32 %v2216, 0.7978846
      %v2233 = vmul.f32 %v2217, 0.7978846
      %v2234 = vmul.f32 %v2218, 0.7978846
      %v2235 = vmul.f32 %v2219, 0.7978846
      %v2236 = vmul.f32 %v2220, 0.7978846
      %v2237 = vmul.f32 %v2221, 0.7978846
      %v2238 = vmul.f32 %v2222, 0.7978846
      %v2239 = vmul.f32 %v2223, 0.7978846
      %v2240 = vtanh.pop %v2224
      %v2241 = vtanh.pop %v2225
      %v2242 = vtanh.pop %v2226
      %v2243 = vtanh.pop %v2227
      %v2244 = vtanh.pop %v2228
      %v2245 = vtanh.pop %v2229
      %v2246 = vtanh.pop %v2230
      %v2247 = vtanh.pop %v2231
      %v2248 = vtanh.pop %v2232
      %v2249 = vtanh.pop %v2233
      %v2250 = vtanh.pop %v2234
      %v2251 = vtanh.pop %v2235
      %v2252 = vtanh.pop %v2236
      %v2253 = vtanh.pop %v2237
      %v2254 = vtanh.pop %v2238
      %v2255 = vtanh.pop %v2239
      %v2256 = vadd.f32 %v2240, 1.0
      %v2257 = vadd.f32 %v2241, 1.0
      %v2258 = vadd.f32 %v2242, 1.0
      %v2259 = vadd.f32 %v2243, 1.0
      %v2260 = vadd.f32 %v2244, 1.0
      %v2261 = vadd.f32 %v2245, 1.0
      %v2262 = vadd.f32 %v2246, 1.0
      %v2263 = vadd.f32 %v2247, 1.0
      %v2264 = vadd.f32 %v2248, 1.0
      %v2265 = vadd.f32 %v2249, 1.0
      %v2266 = vadd.f32 %v2250, 1.0
      %v2267 = vadd.f32 %v2251, 1.0
      %v2268 = vadd.f32 %v2252, 1.0
      %v2269 = vadd.f32 %v2253, 1.0
      %v2270 = vadd.f32 %v2254, 1.0
      %v2271 = vadd.f32 %v2255, 1.0
      %v2272 = vmul.f32 %v2256, 0.5
      %v2273 = vmul.f32 %v2257, 0.5
      %v2274 = vmul.f32 %v2258, 0.5
      %v2275 = vmul.f32 %v2259, 0.5
      %v2276 = vmul.f32 %v2260, 0.5
      %v2277 = vmul.f32 %v2261, 0.5
      %v2278 = vmul.f32 %v2262, 0.5
      %v2279 = vmul.f32 %v2263, 0.5
      %v2280 = vmul.f32 %v2264, 0.5
      %v2281 = vmul.f32 %v2265, 0.5
      %v2282 = vmul.f32 %v2266, 0.5
      %v2283 = vmul.f32 %v2267, 0.5
      %v2284 = vmul.f32 %v2268, 0.5
      %v2285 = vmul.f32 %v2269, 0.5
      %v2286 = vmul.f32 %v2270, 0.5
      %v2287 = vmul.f32 %v2271, 0.5
      %v2288 = vmul.f32 %v2113, %v2272
      %v2289 = vmul.f32 %v2116, %v2273
      %v2290 = vmul.f32 %v2119, %v2274
      %v2291 = vmul.f32 %v2122, %v2275
      %v2292 = vmul.f32 %v2125, %v2276
      %v2293 = vmul.f32 %v2128, %v2277
      %v2294 = vmul.f32 %v2131, %v2278
      %v2295 = vmul.f32 %v2134, %v2279
      %v2296 = vmul.f32 %v2137, %v2280
      %v2297 = vmul.f32 %v2140, %v2281
      %v2298 = vmul.f32 %v2143, %v2282
      %v2299 = vmul.f32 %v2146, %v2283
      %v2300 = vmul.f32 %v2149, %v2284
      %v2301 = vmul.f32 %v2152, %v2285
      %v2302 = vmul.f32 %v2155, %v2286
      %v2303 = vmul.f32 %v2158, %v2287
      %v2305 = vsel %vm1217, %v2288, 0
      %v2308 = vsel %vm1217, %v2289, 0
      %v2311 = vsel %vm1217, %v2290, 0
      %v2314 = vsel %vm1217, %v2291, 0
      %v2317 = vsel %vm1217, %v2292, 0
      %v2320 = vsel %vm1217, %v2293, 0
      %v2323 = vsel %vm1217, %v2294, 0
      %v2326 = vsel %vm1217, %v2295, 0
      %v2329 = vsel %vm1217, %v2296, 0
      %v2332 = vsel %vm1217, %v2297, 0
      %v2335 = vsel %vm1217, %v2298, 0
      %v2338 = vsel %vm1217, %v2299, 0
      %v2341 = vsel %vm1217, %v2300, 0
      %v2344 = vsel %vm1217, %v2301, 0
      %v2347 = vsel %vm1217, %v2302, 0
      %v2350 = vsel %vm1217, %v2303, 0
      %2352 = vmatpush.xpose.msra.mxu0 %v2350
      %2353 = vmatpush.xpose.msra.mxu0 %v2347
      %2354 = vmatpush.xpose.msra.mxu0 %v2344
      %2355 = vmatpush.xpose.msra.mxu0 %v2341
      %2356 = vmatpush.xpose.msra.mxu0 %v2338
      %2357 = vmatpush.xpose.msra.mxu0 %v2335
      %2358 = vmatpush.xpose.msra.mxu0 %v2332
      %2359 = vmatpush.xpose.msra.mxu0 %v2329
      %2360 = vmatpush.xpose.msra.mxu0 %v2326
      %2361 = vmatpush.xpose.msra.mxu0 %v2323
      %2362 = vmatpush.xpose.msra.mxu0 %v2320
      %2363 = vmatpush.xpose.msra.mxu0 %v2317
      %2364 = vmatpush.xpose.msra.mxu0 %v2314
      %2365 = vmatpush.xpose.msra.mxu0 %v2311
      %2366 = vmatpush.xpose.msra.mxu0 %v2308
      %2367 = vmatpush.xpose.msra.mxu0 %v2305
      %2368 = vmatmul.f32.gmra.mxu0 %v1219
      %v2369 = vpop.f32.mrf.mxu0
      %v2370 = vadd.f32 0.0, %v2369
      %2371 = vmatmul.f32.gmra.mxu0 %v1222
      %v2372 = vpop.f32.mrf.mxu0
      %v2373 = vadd.f32 0.0, %v2372
      %2374 = vdwg.mxu0
      %v2375 = vld [vmem:[%s631] sm:$0xff]
      %v2376 = vld [vmem:[%s631 + $0x8] sm:$0xff]
      %2378 = vset.pattern.permute.xlu0 0
      %2379 = vperm.xlu0 %2378, %v2375
      %v2380 = vpop.permute.xlu0 %2379
      %2383 = vset.pattern.permute.xlu0 0
      %2384 = vperm.xlu0 %2383, %v2376
      %v2385 = vpop.permute.xlu0 %2384
      %v2387 = vadd.f32 %v1290, %v2380
      %v2388 = vadd.f32 %v1293, %v2385
      %v2389 = vadd.f32 %v1650, %v2380
      %v2390 = vadd.f32 %v1653, %v2385
      %v2391 = vadd.f32 %v2010, %v2380
      %v2392 = vadd.f32 %v2013, %v2385
      %v2393 = vadd.f32 %v2370, %v2380
      %v2394 = vadd.f32 %v2373, %v2385
      %v2395 = vadd.f32 %v682, %v2387
      %v2396 = vadd.f32 %v683, %v2388
      %v2397 = vadd.f32 %v684, %v2389
      %v2398 = vadd.f32 %v685, %v2390
      %v2399 = vadd.f32 %v686, %v2391
      %v2400 = vadd.f32 %v687, %v2392
      %v2401 = vadd.f32 %v688, %v2393
      %v2402 = vadd.f32 %v689, %v2394
      %v2403 = vld [vmem:[%s634] sm:$0x1]
      %v2404 = vld [vmem:[%s637] sm:$0x1]
      %2405 = vadd.xlane.f32.xlu0 %v2395
      %v2406 = vpop.xlane.xlu0 %2405
      %2407 = vadd.xlane.f32.xlu0 %v2396
      %v2408 = vpop.xlane.xlu0 %2407
      %2409 = vadd.xlane.f32.xlu0 %v2397
      %v2410 = vpop.xlane.xlu0 %2409
      %2411 = vadd.xlane.f32.xlu0 %v2398
      %v2412 = vpop.xlane.xlu0 %2411
      %2413 = vadd.xlane.f32.xlu0 %v2399
      %v2414 = vpop.xlane.xlu0 %2413
      %2415 = vadd.xlane.f32.xlu0 %v2400
      %v2416 = vpop.xlane.xlu0 %2415
      %2417 = vadd.xlane.f32.xlu0 %v2401
      %v2418 = vpop.xlane.xlu0 %2417
      %2419 = vadd.xlane.f32.xlu0 %v2402
      %v2420 = vpop.xlane.xlu0 %2419
      %v2421 = vmul.f32 %v2406, %v714
      %v2422 = vmul.f32 %v2408, %v714
      %v2423 = vmul.f32 %v2410, %v714
      %v2424 = vmul.f32 %v2412, %v714
      %v2425 = vmul.f32 %v2414, %v714
      %v2426 = vmul.f32 %v2416, %v714
      %v2427 = vmul.f32 %v2418, %v714
      %v2428 = vmul.f32 %v2420, %v714
      %v2429 = vsub.f32 %v2395, %v2421
      %v2430 = vsub.f32 %v2396, %v2422
      %v2431 = vsub.f32 %v2397, %v2423
      %v2432 = vsub.f32 %v2398, %v2424
      %v2433 = vsub.f32 %v2399, %v2425
      %v2434 = vsub.f32 %v2400, %v2426
      %v2435 = vsub.f32 %v2401, %v2427
      %v2436 = vsub.f32 %v2402, %v2428
      %v2437 = vmul.f32 %v2429, %v2429
      %v2438 = vmul.f32 %v2430, %v2430
      %v2439 = vmul.f32 %v2431, %v2431
      %v2440 = vmul.f32 %v2432, %v2432
      %v2441 = vmul.f32 %v2433, %v2433
      %v2442 = vmul.f32 %v2434, %v2434
      %v2443 = vmul.f32 %v2435, %v2435
      %v2444 = vmul.f32 %v2436, %v2436
      %2445 = vadd.xlane.f32.xlu0 %v2437
      %v2446 = vpop.xlane.xlu0 %2445
      %2447 = vadd.xlane.f32.xlu0 %v2438
      %v2448 = vpop.xlane.xlu0 %2447
      %2449 = vadd.xlane.f32.xlu0 %v2439
      %v2450 = vpop.xlane.xlu0 %2449
      %2451 = vadd.xlane.f32.xlu0 %v2440
      %v2452 = vpop.xlane.xlu0 %2451
      %2453 = vadd.xlane.f32.xlu0 %v2441
      %v2454 = vpop.xlane.xlu0 %2453
      %2455 = vadd.xlane.f32.xlu0 %v2442
      %v2456 = vpop.xlane.xlu0 %2455
      %2457 = vadd.xlane.f32.xlu0 %v2443
      %v2458 = vpop.xlane.xlu0 %2457
      %2459 = vadd.xlane.f32.xlu0 %v2444
      %v2460 = vpop.xlane.xlu0 %2459
      %v2461 = vmul.f32 %v2446, %v714
      %v2462 = vmul.f32 %v2448, %v714
      %v2463 = vmul.f32 %v2450, %v714
      %v2464 = vmul.f32 %v2452, %v714
      %v2465 = vmul.f32 %v2454, %v714
      %v2466 = vmul.f32 %v2456, %v714
      %v2467 = vmul.f32 %v2458, %v714
      %v2468 = vmul.f32 %v2460, %v714
      %v2469 = vadd.f32 %v2461, 1e-06
      %v2470 = vadd.f32 %v2462, 1e-06
      %v2471 = vadd.f32 %v2463, 1e-06
      %v2472 = vadd.f32 %v2464, 1e-06
      %v2473 = vadd.f32 %v2465, 1e-06
      %v2474 = vadd.f32 %v2466, 1e-06
      %v2475 = vadd.f32 %v2467, 1e-06
      %v2476 = vadd.f32 %v2468, 1e-06
      %v2477 = vrsqrt.pop %v2469
      %v2478 = vmul.f32 %v2477, %v2469
      %v2479 = vmul.f32 %v2478, %v2477
      %v2480 = vmul.f32 0.5, %v2479
      %v2481 = vsub.f32 1.5, %v2480
      %v2482 = vmul.f32 %v2477, %v2481
      %vm2483 = vweird.f32 %v2469
      %vm2484 = vweird.f32 %v2477
      %vm2485 = vmor %vm2483, %vm2484
      %v2486 = vsel %vm2485, %v2477, %v2482
      %v2487 = vrsqrt.pop %v2470
      %v2488 = vmul.f32 %v2487, %v2470
      %v2489 = vmul.f32 %v2488, %v2487
      %v2490 = vmul.f32 0.5, %v2489
      %v2491 = vsub.f32 1.5, %v2490
      %v2492 = vmul.f32 %v2487, %v2491
      %vm2493 = vweird.f32 %v2470
      %vm2494 = vweird.f32 %v2487
      %vm2495 = vmor %vm2493, %vm2494
      %v2496 = vsel %vm2495, %v2487, %v2492
      %v2497 = vrsqrt.pop %v2471
      %v2498 = vmul.f32 %v2497, %v2471
      %v2499 = vmul.f32 %v2498, %v2497
      %v2500 = vmul.f32 0.5, %v2499
      %v2501 = vsub.f32 1.5, %v2500
      %v2502 = vmul.f32 %v2497, %v2501
      %vm2503 = vweird.f32 %v2471
      %vm2504 = vweird.f32 %v2497
      %vm2505 = vmor %vm2503, %vm2504
      %v2506 = vsel %vm2505, %v2497, %v2502
      %v2507 = vrsqrt.pop %v2472
      %v2508 = vmul.f32 %v2507, %v2472
      %v2509 = vmul.f32 %v2508, %v2507
      %v2510 = vmul.f32 0.5, %v2509
      %v2511 = vsub.f32 1.5, %v2510
      %v2512 = vmul.f32 %v2507, %v2511
      %vm2513 = vweird.f32 %v2472
      %vm2514 = vweird.f32 %v2507
      %vm2515 = vmor %vm2513, %vm2514
      %v2516 = vsel %vm2515, %v2507, %v2512
      %v2517 = vrsqrt.pop %v2473
      %v2518 = vmul.f32 %v2517, %v2473
      %v2519 = vmul.f32 %v2518, %v2517
      %v2520 = vmul.f32 0.5, %v2519
      %v2521 = vsub.f32 1.5, %v2520
      %v2522 = vmul.f32 %v2517, %v2521
      %vm2523 = vweird.f32 %v2473
      %vm2524 = vweird.f32 %v2517
      %vm2525 = vmor %vm2523, %vm2524
      %v2526 = vsel %vm2525, %v2517, %v2522
      %v2527 = vrsqrt.pop %v2474
      %v2528 = vmul.f32 %v2527, %v2474
      %v2529 = vmul.f32 %v2528, %v2527
      %v2530 = vmul.f32 0.5, %v2529
      %v2531 = vsub.f32 1.5, %v2530
      %v2532 = vmul.f32 %v2527, %v2531
      %vm2533 = vweird.f32 %v2474
      %vm2534 = vweird.f32 %v2527
      %vm2535 = vmor %vm2533, %vm2534
      %v2536 = vsel %vm2535, %v2527, %v2532
      %v2537 = vrsqrt.pop %v2475
      %v2538 = vmul.f32 %v2537, %v2475
      %v2539 = vmul.f32 %v2538, %v2537
      %v2540 = vmul.f32 0.5, %v2539
      %v2541 = vsub.f32 1.5, %v2540
      %v2542 = vmul.f32 %v2537, %v2541
      %vm2543 = vweird.f32 %v2475
      %vm2544 = vweird.f32 %v2537
      %vm2545 = vmor %vm2543, %vm2544
      %v2546 = vsel %vm2545, %v2537, %v2542
      %v2547 = vrsqrt.pop %v2476
      %v2548 = vmul.f32 %v2547, %v2476
      %v2549 = vmul.f32 %v2548, %v2547
      %v2550 = vmul.f32 0.5, %v2549
      %v2551 = vsub.f32 1.5, %v2550
      %v2552 = vmul.f32 %v2547, %v2551
      %vm2553 = vweird.f32 %v2476
      %vm2554 = vweird.f32 %v2547
      %vm2555 = vmor %vm2553, %vm2554
      %v2556 = vsel %vm2555, %v2547, %v2552
      %v2557 = vmul.f32 %v2429, %v2486
      %v2558 = vmul.f32 %v2430, %v2496
      %v2559 = vmul.f32 %v2431, %v2506
      %v2560 = vmul.f32 %v2432, %v2516
      %v2561 = vmul.f32 %v2433, %v2526
      %v2562 = vmul.f32 %v2434, %v2536
      %v2563 = vmul.f32 %v2435, %v2546
      %v2564 = vmul.f32 %v2436, %v2556
      %v2566 = vperm.slane %v2403, 0
      %v2568 = vmul.f32 %v2557, %v2566
      %v2569 = vmul.f32 %v2558, %v2566
      %v2570 = vmul.f32 %v2559, %v2566
      %v2571 = vmul.f32 %v2560, %v2566
      %v2572 = vmul.f32 %v2561, %v2566
      %v2573 = vmul.f32 %v2562, %v2566
      %v2574 = vmul.f32 %v2563, %v2566
      %v2575 = vmul.f32 %v2564, %v2566
      %v2577 = vperm.slane %v2404, 0
      %v2579 = vadd.f32 %v2568, %v2577
      %v2580 = vadd.f32 %v2569, %v2577
      %v2581 = vadd.f32 %v2570, %v2577
      %v2582 = vadd.f32 %v2571, %v2577
      %v2583 = vadd.f32 %v2572, %v2577
      %v2584 = vadd.f32 %v2573, %v2577
      %v2585 = vadd.f32 %v2574, %v2577
      %v2586 = vadd.f32 %v2575, %v2577
      %v2587 = vld [vmem:[%s642] sm:$0xff]
      %v2588 = vld [vmem:[%s642 + $0x8] sm:$0xff]
      %v2589 = vld [vmem:[%s642 + $0x10] sm:$0xff]
      %v2590 = vld [vmem:[%s642 + $0x18] sm:$0xff]
      %v2591 = vld [vmem:[%s642 + $0x20] sm:$0xff]
      %v2592 = vld [vmem:[%s642 + $0x28] sm:$0xff]
      %v2593 = vld [vmem:[%s642 + $0x30] sm:$0xff]
      %v2594 = vld [vmem:[%s642 + $0x38] sm:$0xff]
      %v2595 = vld [vmem:[%s642 + $0x40] sm:$0xff]
      %v2596 = vld [vmem:[%s642 + $0x48] sm:$0xff]
      %v2597 = vld [vmem:[%s642 + $0x50] sm:$0xff]
      %v2598 = vld [vmem:[%s642 + $0x58] sm:$0xff]
      %v2599 = vld [vmem:[%s642 + $0x60] sm:$0xff]
      %v2600 = vld [vmem:[%s642 + $0x68] sm:$0xff]
      %v2601 = vld [vmem:[%s642 + $0x70] sm:$0xff]
      %v2602 = vld [vmem:[%s642 + $0x78] sm:$0xff]
      %v2603 = vld [vmem:[%s642 + $0x80] sm:$0xff]
      %v2604 = vld [vmem:[%s642 + $0x88] sm:$0xff]
      %v2605 = vld [vmem:[%s642 + $0x90] sm:$0xff]
      %v2606 = vld [vmem:[%s642 + $0x98] sm:$0xff]
      %v2607 = vld [vmem:[%s642 + $0xa0] sm:$0xff]
      %v2608 = vld [vmem:[%s642 + $0xa8] sm:$0xff]
      %v2609 = vld [vmem:[%s642 + $0xb0] sm:$0xff]
      %v2610 = vld [vmem:[%s642 + $0xb8] sm:$0xff]
      %v2611 = vld [vmem:[%s642 + $0xc0] sm:$0xff]
      %v2612 = vld [vmem:[%s642 + $0xc8] sm:$0xff]
      %v2613 = vld [vmem:[%s642 + $0xd0] sm:$0xff]
      %v2614 = vld [vmem:[%s642 + $0xd8] sm:$0xff]
      %v2615 = vld [vmem:[%s642 + $0xe0] sm:$0xff]
      %v2616 = vld [vmem:[%s642 + $0xe8] sm:$0xff]
      %v2617 = vld [vmem:[%s642 + $0xf0] sm:$0xff]
      %v2618 = vld [vmem:[%s642 + $0xf8] sm:$0xff]
      %v2619 = vld [vmem:[%s642 + $0x100] sm:$0xff]
      %v2620 = vld [vmem:[%s642 + $0x108] sm:$0xff]
      %v2621 = vld [vmem:[%s642 + $0x110] sm:$0xff]
      %v2622 = vld [vmem:[%s642 + $0x118] sm:$0xff]
      %v2623 = vld [vmem:[%s642 + $0x120] sm:$0xff]
      %v2624 = vld [vmem:[%s642 + $0x128] sm:$0xff]
      %v2625 = vld [vmem:[%s642 + $0x130] sm:$0xff]
      %v2626 = vld [vmem:[%s642 + $0x138] sm:$0xff]
      %v2627 = vld [vmem:[%s642 + $0x140] sm:$0xff]
      %v2628 = vld [vmem:[%s642 + $0x148] sm:$0xff]
      %v2629 = vld [vmem:[%s642 + $0x150] sm:$0xff]
      %v2630 = vld [vmem:[%s642 + $0x158] sm:$0xff]
      %v2631 = vld [vmem:[%s642 + $0x160] sm:$0xff]
      %v2632 = vld [vmem:[%s642 + $0x168] sm:$0xff]
      %v2633 = vld [vmem:[%s642 + $0x170] sm:$0xff]
      %v2634 = vld [vmem:[%s642 + $0x178] sm:$0xff]
      %v2635 = vld [vmem:[%s642 + $0x180] sm:$0xff]
      %v2636 = vld [vmem:[%s642 + $0x188] sm:$0xff]
      %v2637 = vld [vmem:[%s642 + $0x190] sm:$0xff]
      %v2638 = vld [vmem:[%s642 + $0x198] sm:$0xff]
      %v2639 = vld [vmem:[%s642 + $0x1a0] sm:$0xff]
      %v2640 = vld [vmem:[%s642 + $0x1a8] sm:$0xff]
      %v2641 = vld [vmem:[%s642 + $0x1b0] sm:$0xff]
      %v2642 = vld [vmem:[%s642 + $0x1b8] sm:$0xff]
      %v2643 = vld [vmem:[%s642 + $0x1c0] sm:$0xff]
      %v2644 = vld [vmem:[%s642 + $0x1c8] sm:$0xff]
      %v2645 = vld [vmem:[%s642 + $0x1d0] sm:$0xff]
      %v2646 = vld [vmem:[%s642 + $0x1d8] sm:$0xff]
      %v2647 = vld [vmem:[%s642 + $0x1e0] sm:$0xff]
      %v2648 = vld [vmem:[%s642 + $0x1e8] sm:$0xff]
      %v2649 = vld [vmem:[%s642 + $0x1f0] sm:$0xff]
      %v2650 = vld [vmem:[%s642 + $0x1f8] sm:$0xff]
      %v2651 = vld [vmem:[%s646] sm:$0xf]
      %v2653 = vperm.slane %v2651, 0
      %v2654 = vperm.slane %v2651, 1
      %v2655 = vperm.slane %v2651, 2
      %v2656 = vperm.slane %v2651, 3
      %2661 = vmatpush.msra.mxu0 %v2647
      %2662 = vmatpush.msra.mxu0 %v2643
      %2663 = vmatpush.msra.mxu0 %v2639
      %2664 = vmatpush.msra.mxu0 %v2635
      %2665 = vmatpush.msra.mxu0 %v2631
      %2666 = vmatpush.msra.mxu0 %v2627
      %2667 = vmatpush.msra.mxu0 %v2623
      %2668 = vmatpush.msra.mxu0 %v2619
      %2669 = vmatpush.msra.mxu0 %v2615
      %2670 = vmatpush.msra.mxu0 %v2611
      %2671 = vmatpush.msra.mxu0 %v2607
      %2672 = vmatpush.msra.mxu0 %v2603
      %2673 = vmatpush.msra.mxu0 %v2599
      %2674 = vmatpush.msra.mxu0 %v2595
      %2675 = vmatpush.msra.mxu0 %v2591
      %2676 = vmatpush.msra.mxu0 %v2587
      %2677 = vmatmul.f32.gmra.mxu0 %v2579
      %v2678 = vpop.f32.mrf.mxu0
      %v2679 = vadd.f32 %v2653, %v2678
      %2680 = vmatmul.f32.gmra.mxu0 %v2580
      %v2681 = vpop.f32.mrf.mxu0
      %v2682 = vadd.f32 %v2653, %v2681
      %2683 = vmatmul.f32.gmra.mxu0 %v2581
      %v2684 = vpop.f32.mrf.mxu0
      %v2685 = vadd.f32 %v2653, %v2684
      %2686 = vmatmul.f32.gmra.mxu0 %v2582
      %v2687 = vpop.f32.mrf.mxu0
      %v2688 = vadd.f32 %v2653, %v2687
      %2689 = vmatmul.f32.gmra.mxu0 %v2583
      %v2690 = vpop.f32.mrf.mxu0
      %v2691 = vadd.f32 %v2653, %v2690
      %2692 = vmatmul.f32.gmra.mxu0 %v2584
      %v2693 = vpop.f32.mrf.mxu0
      %v2694 = vadd.f32 %v2653, %v2693
      %2695 = vmatmul.f32.gmra.mxu0 %v2585
      %v2696 = vpop.f32.mrf.mxu0
      %v2697 = vadd.f32 %v2653, %v2696
      %2698 = vmatmul.f32.gmra.mxu0 %v2586
      %v2699 = vpop.f32.mrf.mxu0
      %v2700 = vadd.f32 %v2653, %v2699
      %2701 = vdwg.mxu0
      %2702 = vmatpush.msra.mxu0 %v2648
      %2703 = vmatpush.msra.mxu0 %v2644
      %2704 = vmatpush.msra.mxu0 %v2640
      %2705 = vmatpush.msra.mxu0 %v2636
      %2706 = vmatpush.msra.mxu0 %v2632
      %2707 = vmatpush.msra.mxu0 %v2628
      %2708 = vmatpush.msra.mxu0 %v2624
      %2709 = vmatpush.msra.mxu0 %v2620
      %2710 = vmatpush.msra.mxu0 %v2616
      %2711 = vmatpush.msra.mxu0 %v2612
      %2712 = vmatpush.msra.mxu0 %v2608
      %2713 = vmatpush.msra.mxu0 %v2604
      %2714 = vmatpush.msra.mxu0 %v2600
      %2715 = vmatpush.msra.mxu0 %v2596
      %2716 = vmatpush.msra.mxu0 %v2592
      %2717 = vmatpush.msra.mxu0 %v2588
      %2718 = vmatmul.f32.gmra.mxu0 %v2579
      %v2719 = vpop.f32.mrf.mxu0
      %v2720 = vadd.f32 %v2654, %v2719
      %2721 = vmatmul.f32.gmra.mxu0 %v2580
      %v2722 = vpop.f32.mrf.mxu0
      %v2723 = vadd.f32 %v2654, %v2722
      %2724 = vmatmul.f32.gmra.mxu0 %v2581
      %v2725 = vpop.f32.mrf.mxu0
      %v2726 = vadd.f32 %v2654, %v2725
      %2727 = vmatmul.f32.gmra.mxu0 %v2582
      %v2728 = vpop.f32.mrf.mxu0
      %v2729 = vadd.f32 %v2654, %v2728
      %2730 = vmatmul.f32.gmra.mxu0 %v2583
      %v2731 = vpop.f32.mrf.mxu0
      %v2732 = vadd.f32 %v2654, %v2731
      %2733 = vmatmul.f32.gmra.mxu0 %v2584
      %v2734 = vpop.f32.mrf.mxu0
      %v2735 = vadd.f32 %v2654, %v2734
      %2736 = vmatmul.f32.gmra.mxu0 %v2585
      %v2737 = vpop.f32.mrf.mxu0
      %v2738 = vadd.f32 %v2654, %v2737
      %2739 = vmatmul.f32.gmra.mxu0 %v2586
      %v2740 = vpop.f32.mrf.mxu0
      %v2741 = vadd.f32 %v2654, %v2740
      %2742 = vdwg.mxu0
      %2743 = vmatpush.msra.mxu0 %v2649
      %2744 = vmatpush.msra.mxu0 %v2645
      %2745 = vmatpush.msra.mxu0 %v2641
      %2746 = vmatpush.msra.mxu0 %v2637
      %2747 = vmatpush.msra.mxu0 %v2633
      %2748 = vmatpush.msra.mxu0 %v2629
      %2749 = vmatpush.msra.mxu0 %v2625
      %2750 = vmatpush.msra.mxu0 %v2621
      %2751 = vmatpush.msra.mxu0 %v2617
      %2752 = vmatpush.msra.mxu0 %v2613
      %2753 = vmatpush.msra.mxu0 %v2609
      %2754 = vmatpush.msra.mxu0 %v2605
      %2755 = vmatpush.msra.mxu0 %v2601
      %2756 = vmatpush.msra.mxu0 %v2597
      %2757 = vmatpush.msra.mxu0 %v2593
      %2758 = vmatpush.msra.mxu0 %v2589
      %2759 = vmatmul.f32.gmra.mxu0 %v2579
      %v2760 = vpop.f32.mrf.mxu0
      %v2761 = vadd.f32 %v2655, %v2760
      %2762 = vmatmul.f32.gmra.mxu0 %v2580
      %v2763 = vpop.f32.mrf.mxu0
      %v2764 = vadd.f32 %v2655, %v2763
      %2765 = vmatmul.f32.gmra.mxu0 %v2581
      %v2766 = vpop.f32.mrf.mxu0
      %v2767 = vadd.f32 %v2655, %v2766
      %2768 = vmatmul.f32.gmra.mxu0 %v2582
      %v2769 = vpop.f32.mrf.mxu0
      %v2770 = vadd.f32 %v2655, %v2769
      %2771 = vmatmul.f32.gmra.mxu0 %v2583
      %v2772 = vpop.f32.mrf.mxu0
      %v2773 = vadd.f32 %v2655, %v2772
      %2774 = vmatmul.f32.gmra.mxu0 %v2584
      %v2775 = vpop.f32.mrf.mxu0
      %v2776 = vadd.f32 %v2655, %v2775
      %2777 = vmatmul.f32.gmra.mxu0 %v2585
      %v2778 = vpop.f32.mrf.mxu0
      %v2779 = vadd.f32 %v2655, %v2778
      %2780 = vmatmul.f32.gmra.mxu0 %v2586
      %v2781 = vpop.f32.mrf.mxu0
      %v2782 = vadd.f32 %v2655, %v2781
      %2783 = vdwg.mxu0
      %2784 = vmatpush.msra.mxu0 %v2650
      %2785 = vmatpush.msra.mxu0 %v2646
      %2786 = vmatpush.msra.mxu0 %v2642
      %2787 = vmatpush.msra.mxu0 %v2638
      %2788 = vmatpush.msra.mxu0 %v2634
      %2789 = vmatpush.msra.mxu0 %v2630
      %2790 = vmatpush.msra.mxu0 %v2626
      %2791 = vmatpush.msra.mxu0 %v2622
      %2792 = vmatpush.msra.mxu0 %v2618
      %2793 = vmatpush.msra.mxu0 %v2614
      %2794 = vmatpush.msra.mxu0 %v2610
      %2795 = vmatpush.msra.mxu0 %v2606
      %2796 = vmatpush.msra.mxu0 %v2602
      %2797 = vmatpush.msra.mxu0 %v2598
      %2798 = vmatpush.msra.mxu0 %v2594
      %2799 = vmatpush.msra.mxu0 %v2590
      %2800 = vmatmul.f32.gmra.mxu0 %v2579
      %v2801 = vpop.f32.mrf.mxu0
      %v2802 = vadd.f32 %v2656, %v2801
      %2803 = vmatmul.f32.gmra.mxu0 %v2580
      %v2804 = vpop.f32.mrf.mxu0
      %v2805 = vadd.f32 %v2656, %v2804
      %2806 = vmatmul.f32.gmra.mxu0 %v2581
      %v2807 = vpop.f32.mrf.mxu0
      %v2808 = vadd.f32 %v2656, %v2807
      %2809 = vmatmul.f32.gmra.mxu0 %v2582
      %v2810 = vpop.f32.mrf.mxu0
      %v2811 = vadd.f32 %v2656, %v2810
      %2812 = vmatmul.f32.gmra.mxu0 %v2583
      %v2813 = vpop.f32.mrf.mxu0
      %v2814 = vadd.f32 %v2656, %v2813
      %2815 = vmatmul.f32.gmra.mxu0 %v2584
      %v2816 = vpop.f32.mrf.mxu0
      %v2817 = vadd.f32 %v2656, %v2816
      %2818 = vmatmul.f32.gmra.mxu0 %v2585
      %v2819 = vpop.f32.mrf.mxu0
      %v2820 = vadd.f32 %v2656, %v2819
      %2821 = vmatmul.f32.gmra.mxu0 %v2586
      %v2822 = vpop.f32.mrf.mxu0
      %v2823 = vadd.f32 %v2656, %v2822
      %2824 = vdwg.mxu0
      %v2825 = vmul.f32 %v2679, %v2679
      %v2826 = vmul.f32 %v2720, %v2720
      %v2827 = vmul.f32 %v2761, %v2761
      %v2828 = vmul.f32 %v2802, %v2802
      %v2829 = vmul.f32 %v2682, %v2682
      %v2830 = vmul.f32 %v2723, %v2723
      %v2831 = vmul.f32 %v2764, %v2764
      %v2832 = vmul.f32 %v2805, %v2805
      %v2833 = vmul.f32 %v2685, %v2685
      %v2834 = vmul.f32 %v2726, %v2726
      %v2835 = vmul.f32 %v2767, %v2767
      %v2836 = vmul.f32 %v2808, %v2808
      %v2837 = vmul.f32 %v2688, %v2688
      %v2838 = vmul.f32 %v2729, %v2729
      %v2839 = vmul.f32 %v2770, %v2770
      %v2840 = vmul.f32 %v2811, %v2811
      %v2841 = vmul.f32 %v2691, %v2691
      %v2842 = vmul.f32 %v2732, %v2732
      %v2843 = vmul.f32 %v2773, %v2773
      %v2844 = vmul.f32 %v2814, %v2814
      %v2845 = vmul.f32 %v2694, %v2694
      %v2846 = vmul.f32 %v2735, %v2735
      %v2847 = vmul.f32 %v2776, %v2776
      %v2848 = vmul.f32 %v2817, %v2817
      %v2849 = vmul.f32 %v2697, %v2697
      %v2850 = vmul.f32 %v2738, %v2738
      %v2851 = vmul.f32 %v2779, %v2779
      %v2852 = vmul.f32 %v2820, %v2820
      %v2853 = vmul.f32 %v2700, %v2700
      %v2854 = vmul.f32 %v2741, %v2741
      %v2855 = vmul.f32 %v2782, %v2782
      %v2856 = vmul.f32 %v2823, %v2823
      %v2857 = vmul.f32 %v2679, %v2825
      %v2858 = vmul.f32 %v2720, %v2826
      %v2859 = vmul.f32 %v2761, %v2827
      %v2860 = vmul.f32 %v2802, %v2828
      %v2861 = vmul.f32 %v2682, %v2829
      %v2862 = vmul.f32 %v2723, %v2830
      %v2863 = vmul.f32 %v2764, %v2831
      %v2864 = vmul.f32 %v2805, %v2832
      %v2865 = vmul.f32 %v2685, %v2833
      %v2866 = vmul.f32 %v2726, %v2834
      %v2867 = vmul.f32 %v2767, %v2835
      %v2868 = vmul.f32 %v2808, %v2836
      %v2869 = vmul.f32 %v2688, %v2837
      %v2870 = vmul.f32 %v2729, %v2838
      %v2871 = vmul.f32 %v2770, %v2839
      %v2872 = vmul.f32 %v2811, %v2840
      %v2873 = vmul.f32 %v2691, %v2841
      %v2874 = vmul.f32 %v2732, %v2842
      %v2875 = vmul.f32 %v2773, %v2843
      %v2876 = vmul.f32 %v2814, %v2844
      %v2877 = vmul.f32 %v2694, %v2845
      %v2878 = vmul.f32 %v2735, %v2846
      %v2879 = vmul.f32 %v2776, %v2847
      %v2880 = vmul.f32 %v2817, %v2848
      %v2881 = vmul.f32 %v2697, %v2849
      %v2882 = vmul.f32 %v2738, %v2850
      %v2883 = vmul.f32 %v2779, %v2851
      %v2884 = vmul.f32 %v2820, %v2852
      %v2885 = vmul.f32 %v2700, %v2853
      %v2886 = vmul.f32 %v2741, %v2854
      %v2887 = vmul.f32 %v2782, %v2855
      %v2888 = vmul.f32 %v2823, %v2856
      %v2889 = vmul.f32 %v2857, 0.044715
      %v2890 = vmul.f32 %v2858, 0.044715
      %v2891 = vmul.f32 %v2859, 0.044715
      %v2892 = vmul.f32 %v2860, 0.044715
      %v2893 = vmul.f32 %v2861, 0.044715
      %v2894 = vmul.f32 %v2862, 0.044715
      %v2895 = vmul.f32 %v2863, 0.044715
      %v2896 = vmul.f32 %v2864, 0.044715
      %v2897 = vmul.f32 %v2865, 0.044715
      %v2898 = vmul.f32 %v2866, 0.044715
      %v2899 = vmul.f32 %v2867, 0.044715
      %v2900 = vmul.f32 %v2868, 0.044715
      %v2901 = vmul.f32 %v2869, 0.044715
      %v2902 = vmul.f32 %v2870, 0.044715
      %v2903 = vmul.f32 %v2871, 0.044715
      %v2904 = vmul.f32 %v2872, 0.044715
      %v2905 = vmul.f32 %v2873, 0.044715
      %v2906 = vmul.f32 %v2874, 0.044715
      %v2907 = vmul.f32 %v2875, 0.044715
      %v2908 = vmul.f32 %v2876, 0.044715
      %v2909 = vmul.f32 %v2877, 0.044715
      %v2910 = vmul.f32 %v2878, 0.044715
      %v2911 = vmul.f32 %v2879, 0.044715
      %v2912 = vmul.f32 %v2880, 0.044715
      %v2913 = vmul.f32 %v2881, 0.044715
      %v2914 = vmul.f32 %v2882, 0.044715
      %v2915 = vmul.f32 %v2883, 0.044715
      %v2916 = vmul.f32 %v2884, 0.044715
      %v2917 = vmul.f32 %v2885, 0.044715
      %v2918 = vmul.f32 %v2886, 0.044715
      %v2919 = vmul.f32 %v2887, 0.044715
      %v2920 = vmul.f32 %v2888, 0.044715
      %v2921 = vadd.f32 %v2679, %v2889
      %v2922 = vadd.f32 %v2720, %v2890
      %v2923 = vadd.f32 %v2761, %v2891
      %v2924 = vadd.f32 %v2802, %v2892
      %v2925 = vadd.f32 %v2682, %v2893
      %v2926 = vadd.f32 %v2723, %v2894
      %v2927 = vadd.f32 %v2764, %v2895
      %v2928 = vadd.f32 %v2805, %v2896
      %v2929 = vadd.f32 %v2685, %v2897
      %v2930 = vadd.f32 %v2726, %v2898
      %v2931 = vadd.f32 %v2767, %v2899
      %v2932 = vadd.f32 %v2808, %v2900
      %v2933 = vadd.f32 %v2688, %v2901
      %v2934 = vadd.f32 %v2729, %v2902
      %v2935 = vadd.f32 %v2770, %v2903
      %v2936 = vadd.f32 %v2811, %v2904
      %v2937 = vadd.f32 %v2691, %v2905
      %v2938 = vadd.f32 %v2732, %v2906
      %v2939 = vadd.f32 %v2773, %v2907
      %v2940 = vadd.f32 %v2814, %v2908
      %v2941 = vadd.f32 %v2694, %v2909
      %v2942 = vadd.f32 %v2735, %v2910
      %v2943 = vadd.f32 %v2776, %v2911
      %v2944 = vadd.f32 %v2817, %v2912
      %v2945 = vadd.f32 %v2697, %v2913
      %v2946 = vadd.f32 %v2738, %v2914
      %v2947 = vadd.f32 %v2779, %v2915
      %v2948 = vadd.f32 %v2820, %v2916
      %v2949 = vadd.f32 %v2700, %v2917
      %v2950 = vadd.f32 %v2741, %v2918
      %v2951 = vadd.f32 %v2782, %v2919
      %v2952 = vadd.f32 %v2823, %v2920
      %v2953 = vmul.f32 %v2921, 0.7978846
      %v2954 = vmul.f32 %v2922, 0.7978846
      %v2955 = vmul.f32 %v2923, 0.7978846
      %v2956 = vmul.f32 %v2924, 0.7978846
      %v2957 = vmul.f32 %v2925, 0.7978846
      %v2958 = vmul.f32 %v2926, 0.7978846
      %v2959 = vmul.f32 %v2927, 0.7978846
      %v2960 = vmul.f32 %v2928, 0.7978846
      %v2961 = vmul.f32 %v2929, 0.7978846
      %v2962 = vmul.f32 %v2930, 0.7978846
      %v2963 = vmul.f32 %v2931, 0.7978846
      %v2964 = vmul.f32 %v2932, 0.7978846
      %v2965 = vmul.f32 %v2933, 0.7978846
      %v2966 = vmul.f32 %v2934, 0.7978846
      %v2967 = vmul.f32 %v2935, 0.7978846
      %v2968 = vmul.f32 %v2936, 0.7978846
      %v2969 = vmul.f32 %v2937, 0.7978846
      %v2970 = vmul.f32 %v2938, 0.7978846
      %v2971 = vmul.f32 %v2939, 0.7978846
      %v2972 = vmul.f32 %v2940, 0.7978846
      %v2973 = vmul.f32 %v2941, 0.7978846
      %v2974 = vmul.f32 %v2942, 0.7978846
      %v2975 = vmul.f32 %v2943, 0.7978846
      %v2976 = vmul.f32 %v2944, 0.7978846
      %v2977 = vmul.f32 %v2945, 0.7978846
      %v2978 = vmul.f32 %v2946, 0.7978846
      %v2979 = vmul.f32 %v2947, 0.7978846
      %v2980 = vmul.f32 %v2948, 0.7978846
      %v2981 = vmul.f32 %v2949, 0.7978846
      %v2982 = vmul.f32 %v2950, 0.7978846
      %v2983 = vmul.f32 %v2951, 0.7978846
      %v2984 = vmul.f32 %v2952, 0.7978846
      %v2985 = vtanh.pop %v2953
      %v2986 = vtanh.pop %v2954
      %v2987 = vtanh.pop %v2955
      %v2988 = vtanh.pop %v2956
      %v2989 = vtanh.pop %v2957
      %v2990 = vtanh.pop %v2958
      %v2991 = vtanh.pop %v2959
      %v2992 = vtanh.pop %v2960
      %v2993 = vtanh.pop %v2961
      %v2994 = vtanh.pop %v2962
      %v2995 = vtanh.pop %v2963
      %v2996 = vtanh.pop %v2964
      %v2997 = vtanh.pop %v2965
      %v2998 = vtanh.pop %v2966
      %v2999 = vtanh.pop %v2967
      %v3000 = vtanh.pop %v2968
      %v3001 = vtanh.pop %v2969
      %v3002 = vtanh.pop %v2970
      %v3003 = vtanh.pop %v2971
      %v3004 = vtanh.pop %v2972
      %v3005 = vtanh.pop %v2973
      %v3006 = vtanh.pop %v2974
      %v3007 = vtanh.pop %v2975
      %v3008 = vtanh.pop %v2976
      %v3009 = vtanh.pop %v2977
      %v3010 = vtanh.pop %v2978
      %v3011 = vtanh.pop %v2979
      %v3012 = vtanh.pop %v2980
      %v3013 = vtanh.pop %v2981
      %v3014 = vtanh.pop %v2982
      %v3015 = vtanh.pop %v2983
      %v3016 = vtanh.pop %v2984
      %v3017 = vadd.f32 %v2985, 1.0
      %v3018 = vadd.f32 %v2986, 1.0
      %v3019 = vadd.f32 %v2987, 1.0
      %v3020 = vadd.f32 %v2988, 1.0
      %v3021 = vadd.f32 %v2989, 1.0
      %v3022 = vadd.f32 %v2990, 1.0
      %v3023 = vadd.f32 %v2991, 1.0
      %v3024 = vadd.f32 %v2992, 1.0
      %v3025 = vadd.f32 %v2993, 1.0
      %v3026 = vadd.f32 %v2994, 1.0
      %v3027 = vadd.f32 %v2995, 1.0
      %v3028 = vadd.f32 %v2996, 1.0
      %v3029 = vadd.f32 %v2997, 1.0
      %v3030 = vadd.f32 %v2998, 1.0
      %v3031 = vadd.f32 %v2999, 1.0
      %v3032 = vadd.f32 %v3000, 1.0
      %v3033 = vadd.f32 %v3001, 1.0
      %v3034 = vadd.f32 %v3002, 1.0
      %v3035 = vadd.f32 %v3003, 1.0
      %v3036 = vadd.f32 %v3004, 1.0
      %v3037 = vadd.f32 %v3005, 1.0
      %v3038 = vadd.f32 %v3006, 1.0
      %v3039 = vadd.f32 %v3007, 1.0
      %v3040 = vadd.f32 %v3008, 1.0
      %v3041 = vadd.f32 %v3009, 1.0
      %v3042 = vadd.f32 %v3010, 1.0
      %v3043 = vadd.f32 %v3011, 1.0
      %v3044 = vadd.f32 %v3012, 1.0
      %v3045 = vadd.f32 %v3013, 1.0
      %v3046 = vadd.f32 %v3014, 1.0
      %v3047 = vadd.f32 %v3015, 1.0
      %v3048 = vadd.f32 %v3016, 1.0
      %v3049 = vmul.f32 %v3017, 0.5
      %v3050 = vmul.f32 %v3018, 0.5
      %v3051 = vmul.f32 %v3019, 0.5
      %v3052 = vmul.f32 %v3020, 0.5
      %v3053 = vmul.f32 %v3021, 0.5
      %v3054 = vmul.f32 %v3022, 0.5
      %v3055 = vmul.f32 %v3023, 0.5
      %v3056 = vmul.f32 %v3024, 0.5
      %v3057 = vmul.f32 %v3025, 0.5
      %v3058 = vmul.f32 %v3026, 0.5
      %v3059 = vmul.f32 %v3027, 0.5
      %v3060 = vmul.f32 %v3028, 0.5
      %v3061 = vmul.f32 %v3029, 0.5
      %v3062 = vmul.f32 %v3030, 0.5
      %v3063 = vmul.f32 %v3031, 0.5
      %v3064 = vmul.f32 %v3032, 0.5
      %v3065 = vmul.f32 %v3033, 0.5
      %v3066 = vmul.f32 %v3034, 0.5
      %v3067 = vmul.f32 %v3035, 0.5
      %v3068 = vmul.f32 %v3036, 0.5
      %v3069 = vmul.f32 %v3037, 0.5
      %v3070 = vmul.f32 %v3038, 0.5
      %v3071 = vmul.f32 %v3039, 0.5
      %v3072 = vmul.f32 %v3040, 0.5
      %v3073 = vmul.f32 %v3041, 0.5
      %v3074 = vmul.f32 %v3042, 0.5
      %v3075 = vmul.f32 %v3043, 0.5
      %v3076 = vmul.f32 %v3044, 0.5
      %v3077 = vmul.f32 %v3045, 0.5
      %v3078 = vmul.f32 %v3046, 0.5
      %v3079 = vmul.f32 %v3047, 0.5
      %v3080 = vmul.f32 %v3048, 0.5
      %v3081 = vmul.f32 %v2679, %v3049
      %v3082 = vmul.f32 %v2720, %v3050
      %v3083 = vmul.f32 %v2761, %v3051
      %v3084 = vmul.f32 %v2802, %v3052
      %v3085 = vmul.f32 %v2682, %v3053
      %v3086 = vmul.f32 %v2723, %v3054
      %v3087 = vmul.f32 %v2764, %v3055
      %v3088 = vmul.f32 %v2805, %v3056
      %v3089 = vmul.f32 %v2685, %v3057
      %v3090 = vmul.f32 %v2726, %v3058
      %v3091 = vmul.f32 %v2767, %v3059
      %v3092 = vmul.f32 %v2808, %v3060
      %v3093 = vmul.f32 %v2688, %v3061
      %v3094 = vmul.f32 %v2729, %v3062
      %v3095 = vmul.f32 %v2770, %v3063
      %v3096 = vmul.f32 %v2811, %v3064
      %v3097 = vmul.f32 %v2691, %v3065
      %v3098 = vmul.f32 %v2732, %v3066
      %v3099 = vmul.f32 %v2773, %v3067
      %v3100 = vmul.f32 %v2814, %v3068
      %v3101 = vmul.f32 %v2694, %v3069
      %v3102 = vmul.f32 %v2735, %v3070
      %v3103 = vmul.f32 %v2776, %v3071
      %v3104 = vmul.f32 %v2817, %v3072
      %v3105 = vmul.f32 %v2697, %v3073
      %v3106 = vmul.f32 %v2738, %v3074
      %v3107 = vmul.f32 %v2779, %v3075
      %v3108 = vmul.f32 %v2820, %v3076
      %v3109 = vmul.f32 %v2700, %v3077
      %v3110 = vmul.f32 %v2741, %v3078
      %v3111 = vmul.f32 %v2782, %v3079
      %v3112 = vmul.f32 %v2823, %v3080
      %v3113 = vld [vmem:[%s651] sm:$0xff]
      %v3114 = vld [vmem:[%s651 + $0x8] sm:$0xff]
      %v3115 = vld [vmem:[%s651 + $0x10] sm:$0xff]
      %v3116 = vld [vmem:[%s651 + $0x18] sm:$0xff]
      %v3117 = vld [vmem:[%s651 + $0x20] sm:$0xff]
      %v3118 = vld [vmem:[%s651 + $0x28] sm:$0xff]
      %v3119 = vld [vmem:[%s651 + $0x30] sm:$0xff]
      %v3120 = vld [vmem:[%s651 + $0x38] sm:$0xff]
      %v3121 = vld [vmem:[%s651 + $0x40] sm:$0xff]
      %v3122 = vld [vmem:[%s651 + $0x48] sm:$0xff]
      %v3123 = vld [vmem:[%s651 + $0x50] sm:$0xff]
      %v3124 = vld [vmem:[%s651 + $0x58] sm:$0xff]
      %v3125 = vld [vmem:[%s651 + $0x60] sm:$0xff]
      %v3126 = vld [vmem:[%s651 + $0x68] sm:$0xff]
      %v3127 = vld [vmem:[%s651 + $0x70] sm:$0xff]
      %v3128 = vld [vmem:[%s651 + $0x78] sm:$0xff]
      %v3129 = vld [vmem:[%s651 + $0x80] sm:$0xff]
      %v3130 = vld [vmem:[%s651 + $0x88] sm:$0xff]
      %v3131 = vld [vmem:[%s651 + $0x90] sm:$0xff]
      %v3132 = vld [vmem:[%s651 + $0x98] sm:$0xff]
      %v3133 = vld [vmem:[%s651 + $0xa0] sm:$0xff]
      %v3134 = vld [vmem:[%s651 + $0xa8] sm:$0xff]
      %v3135 = vld [vmem:[%s651 + $0xb0] sm:$0xff]
      %v3136 = vld [vmem:[%s651 + $0xb8] sm:$0xff]
      %v3137 = vld [vmem:[%s651 + $0xc0] sm:$0xff]
      %v3138 = vld [vmem:[%s651 + $0xc8] sm:$0xff]
      %v3139 = vld [vmem:[%s651 + $0xd0] sm:$0xff]
      %v3140 = vld [vmem:[%s651 + $0xd8] sm:$0xff]
      %v3141 = vld [vmem:[%s651 + $0xe0] sm:$0xff]
      %v3142 = vld [vmem:[%s651 + $0xe8] sm:$0xff]
      %v3143 = vld [vmem:[%s651 + $0xf0] sm:$0xff]
      %v3144 = vld [vmem:[%s651 + $0xf8] sm:$0xff]
      %v3145 = vld [vmem:[%s651 + $0x100] sm:$0xff]
      %v3146 = vld [vmem:[%s651 + $0x108] sm:$0xff]
      %v3147 = vld [vmem:[%s651 + $0x110] sm:$0xff]
      %v3148 = vld [vmem:[%s651 + $0x118] sm:$0xff]
      %v3149 = vld [vmem:[%s651 + $0x120] sm:$0xff]
      %v3150 = vld [vmem:[%s651 + $0x128] sm:$0xff]
      %v3151 = vld [vmem:[%s651 + $0x130] sm:$0xff]
      %v3152 = vld [vmem:[%s651 + $0x138] sm:$0xff]
      %v3153 = vld [vmem:[%s651 + $0x140] sm:$0xff]
      %v3154 = vld [vmem:[%s651 + $0x148] sm:$0xff]
      %v3155 = vld [vmem:[%s651 + $0x150] sm:$0xff]
      %v3156 = vld [vmem:[%s651 + $0x158] sm:$0xff]
      %v3157 = vld [vmem:[%s651 + $0x160] sm:$0xff]
      %v3158 = vld [vmem:[%s651 + $0x168] sm:$0xff]
      %v3159 = vld [vmem:[%s651 + $0x170] sm:$0xff]
      %v3160 = vld [vmem:[%s651 + $0x178] sm:$0xff]
      %v3161 = vld [vmem:[%s651 + $0x180] sm:$0xff]
      %v3162 = vld [vmem:[%s651 + $0x188] sm:$0xff]
      %v3163 = vld [vmem:[%s651 + $0x190] sm:$0xff]
      %v3164 = vld [vmem:[%s651 + $0x198] sm:$0xff]
      %v3165 = vld [vmem:[%s651 + $0x1a0] sm:$0xff]
      %v3166 = vld [vmem:[%s651 + $0x1a8] sm:$0xff]
      %v3167 = vld [vmem:[%s651 + $0x1b0] sm:$0xff]
      %v3168 = vld [vmem:[%s651 + $0x1b8] sm:$0xff]
      %v3169 = vld [vmem:[%s651 + $0x1c0] sm:$0xff]
      %v3170 = vld [vmem:[%s651 + $0x1c8] sm:$0xff]
      %v3171 = vld [vmem:[%s651 + $0x1d0] sm:$0xff]
      %v3172 = vld [vmem:[%s651 + $0x1d8] sm:$0xff]
      %v3173 = vld [vmem:[%s651 + $0x1e0] sm:$0xff]
      %v3174 = vld [vmem:[%s651 + $0x1e8] sm:$0xff]
      %v3175 = vld [vmem:[%s651 + $0x1f0] sm:$0xff]
      %v3176 = vld [vmem:[%s651 + $0x1f8] sm:$0xff]
      %v3177 = vld [vmem:[%s654] sm:$0x1]
      %v3179 = vperm.slane %v3177, 0
      %3181 = vmatpush.msra.mxu0 %v3128
      %3182 = vmatpush.msra.mxu0 %v3127
      %3183 = vmatpush.msra.mxu0 %v3126
      %3184 = vmatpush.msra.mxu0 %v3125
      %3185 = vmatpush.msra.mxu0 %v3124
      %3186 = vmatpush.msra.mxu0 %v3123
      %3187 = vmatpush.msra.mxu0 %v3122
      %3188 = vmatpush.msra.mxu0 %v3121
      %3189 = vmatpush.msra.mxu0 %v3120
      %3190 = vmatpush.msra.mxu0 %v3119
      %3191 = vmatpush.msra.mxu0 %v3118
      %3192 = vmatpush.msra.mxu0 %v3117
      %3193 = vmatpush.msra.mxu0 %v3116
      %3194 = vmatpush.msra.mxu0 %v3115
      %3195 = vmatpush.msra.mxu0 %v3114
      %3196 = vmatpush.msra.mxu0 %v3113
      %3197 = vmatmul.f32.gmra.mxu0 %v3081
      %v3198 = vpop.f32.mrf.mxu0
      %v3199 = vadd.f32 %v3179, %v3198
      %3200 = vmatmul.f32.gmra.mxu0 %v3085
      %v3201 = vpop.f32.mrf.mxu0
      %v3202 = vadd.f32 %v3179, %v3201
      %3203 = vmatmul.f32.gmra.mxu0 %v3089
      %v3204 = vpop.f32.mrf.mxu0
      %v3205 = vadd.f32 %v3179, %v3204
      %3206 = vmatmul.f32.gmra.mxu0 %v3093
      %v3207 = vpop.f32.mrf.mxu0
      %v3208 = vadd.f32 %v3179, %v3207
      %3209 = vmatmul.f32.gmra.mxu0 %v3097
      %v3210 = vpop.f32.mrf.mxu0
      %v3211 = vadd.f32 %v3179, %v3210
      %3212 = vmatmul.f32.gmra.mxu0 %v3101
      %v3213 = vpop.f32.mrf.mxu0
      %v3214 = vadd.f32 %v3179, %v3213
      %3215 = vmatmul.f32.gmra.mxu0 %v3105
      %v3216 = vpop.f32.mrf.mxu0
      %v3217 = vadd.f32 %v3179, %v3216
      %3218 = vmatmul.f32.gmra.mxu0 %v3109
      %v3219 = vpop.f32.mrf.mxu0
      %v3220 = vadd.f32 %v3179, %v3219
      %3221 = vdwg.mxu0
      %3222 = vmatpush.msra.mxu0 %v3144
      %3223 = vmatpush.msra.mxu0 %v3143
      %3224 = vmatpush.msra.mxu0 %v3142
      %3225 = vmatpush.msra.mxu0 %v3141
      %3226 = vmatpush.msra.mxu0 %v3140
      %3227 = vmatpush.msra.mxu0 %v3139
      %3228 = vmatpush.msra.mxu0 %v3138
      %3229 = vmatpush.msra.mxu0 %v3137
      %3230 = vmatpush.msra.mxu0 %v3136
      %3231 = vmatpush.msra.mxu0 %v3135
      %3232 = vmatpush.msra.mxu0 %v3134
      %3233 = vmatpush.msra.mxu0 %v3133
      %3234 = vmatpush.msra.mxu0 %v3132
      %3235 = vmatpush.msra.mxu0 %v3131
      %3236 = vmatpush.msra.mxu0 %v3130
      %3237 = vmatpush.msra.mxu0 %v3129
      %3238 = vmatmul.f32.gmra.mxu0 %v3082
      %v3239 = vpop.f32.mrf.mxu0
      %v3240 = vadd.f32 %v3199, %v3239
      %3241 = vmatmul.f32.gmra.mxu0 %v3086
      %v3242 = vpop.f32.mrf.mxu0
      %v3243 = vadd.f32 %v3202, %v3242
      %3244 = vmatmul.f32.gmra.mxu0 %v3090
      %v3245 = vpop.f32.mrf.mxu0
      %v3246 = vadd.f32 %v3205, %v3245
      %3247 = vmatmul.f32.gmra.mxu0 %v3094
      %v3248 = vpop.f32.mrf.mxu0
      %v3249 = vadd.f32 %v3208, %v3248
      %3250 = vmatmul.f32.gmra.mxu0 %v3098
      %v3251 = vpop.f32.mrf.mxu0
      %v3252 = vadd.f32 %v3211, %v3251
      %3253 = vmatmul.f32.gmra.mxu0 %v3102
      %v3254 = vpop.f32.mrf.mxu0
      %v3255 = vadd.f32 %v3214, %v3254
      %3256 = vmatmul.f32.gmra.mxu0 %v3106
      %v3257 = vpop.f32.mrf.mxu0
      %v3258 = vadd.f32 %v3217, %v3257
      %3259 = vmatmul.f32.gmra.mxu0 %v3110
      %v3260 = vpop.f32.mrf.mxu0
      %v3261 = vadd.f32 %v3220, %v3260
      %3262 = vdwg.mxu0
      %3263 = vmatpush.msra.mxu0 %v3160
      %3264 = vmatpush.msra.mxu0 %v3159
      %3265 = vmatpush.msra.mxu0 %v3158
      %3266 = vmatpush.msra.mxu0 %v3157
      %3267 = vmatpush.msra.mxu0 %v3156
      %3268 = vmatpush.msra.mxu0 %v3155
      %3269 = vmatpush.msra.mxu0 %v3154
      %3270 = vmatpush.msra.mxu0 %v3153
      %3271 = vmatpush.msra.mxu0 %v3152
      %3272 = vmatpush.msra.mxu0 %v3151
      %3273 = vmatpush.msra.mxu0 %v3150
      %3274 = vmatpush.msra.mxu0 %v3149
      %3275 = vmatpush.msra.mxu0 %v3148
      %3276 = vmatpush.msra.mxu0 %v3147
      %3277 = vmatpush.msra.mxu0 %v3146
      %3278 = vmatpush.msra.mxu0 %v3145
      %3279 = vmatmul.f32.gmra.mxu0 %v3083
      %v3280 = vpop.f32.mrf.mxu0
      %v3281 = vadd.f32 %v3240, %v3280
      %3282 = vmatmul.f32.gmra.mxu0 %v3087
      %v3283 = vpop.f32.mrf.mxu0
      %v3284 = vadd.f32 %v3243, %v3283
      %3285 = vmatmul.f32.gmra.mxu0 %v3091
      %v3286 = vpop.f32.mrf.mxu0
      %v3287 = vadd.f32 %v3246, %v3286
      %3288 = vmatmul.f32.gmra.mxu0 %v3095
      %v3289 = vpop.f32.mrf.mxu0
      %v3290 = vadd.f32 %v3249, %v3289
      %3291 = vmatmul.f32.gmra.mxu0 %v3099
      %v3292 = vpop.f32.mrf.mxu0
      %v3293 = vadd.f32 %v3252, %v3292
      %3294 = vmatmul.f32.gmra.mxu0 %v3103
      %v3295 = vpop.f32.mrf.mxu0
      %v3296 = vadd.f32 %v3255, %v3295
      %3297 = vmatmul.f32.gmra.mxu0 %v3107
      %v3298 = vpop.f32.mrf.mxu0
      %v3299 = vadd.f32 %v3258, %v3298
      %3300 = vmatmul.f32.gmra.mxu0 %v3111
      %v3301 = vpop.f32.mrf.mxu0
      %v3302 = vadd.f32 %v3261, %v3301
      %3303 = vdwg.mxu0
      %3304 = vmatpush.msra.mxu0 %v3176
      %3305 = vmatpush.msra.mxu0 %v3175
      %3306 = vmatpush.msra.mxu0 %v3174
      %3307 = vmatpush.msra.mxu0 %v3173
      %3308 = vmatpush.msra.mxu0 %v3172
      %3309 = vmatpush.msra.mxu0 %v3171
      %3310 = vmatpush.msra.mxu0 %v3170
      %3311 = vmatpush.msra.mxu0 %v3169
      %3312 = vmatpush.msra.mxu0 %v3168
      %3313 = vmatpush.msra.mxu0 %v3167
      %3314 = vmatpush.msra.mxu0 %v3166
      %3315 = vmatpush.msra.mxu0 %v3165
      %3316 = vmatpush.msra.mxu0 %v3164
      %3317 = vmatpush.msra.mxu0 %v3163
      %3318 = vmatpush.msra.mxu0 %v3162
      %3319 = vmatpush.msra.mxu0 %v3161
      %3320 = vmatmul.f32.gmra.mxu0 %v3084
      %v3321 = vpop.f32.mrf.mxu0
      %v3322 = vadd.f32 %v3281, %v3321
      %3323 = vmatmul.f32.gmra.mxu0 %v3088
      %v3324 = vpop.f32.mrf.mxu0
      %v3325 = vadd.f32 %v3284, %v3324
      %3326 = vmatmul.f32.gmra.mxu0 %v3092
      %v3327 = vpop.f32.mrf.mxu0
      %v3328 = vadd.f32 %v3287, %v3327
      %3329 = vmatmul.f32.gmra.mxu0 %v3096
      %v3330 = vpop.f32.mrf.mxu0
      %v3331 = vadd.f32 %v3290, %v3330
      %3332 = vmatmul.f32.gmra.mxu0 %v3100
      %v3333 = vpop.f32.mrf.mxu0
      %v3334 = vadd.f32 %v3293, %v3333
      %3335 = vmatmul.f32.gmra.mxu0 %v3104
      %v3336 = vpop.f32.mrf.mxu0
      %v3337 = vadd.f32 %v3296, %v3336
      %3338 = vmatmul.f32.gmra.mxu0 %v3108
      %v3339 = vpop.f32.mrf.mxu0
      %v3340 = vadd.f32 %v3299, %v3339
      %3341 = vmatmul.f32.gmra.mxu0 %v3112
      %v3342 = vpop.f32.mrf.mxu0
      %v3343 = vadd.f32 %v3302, %v3342
      %3344 = vdwg.mxu0
      %v3345 = vadd.f32 %v2395, %v3322
      %v3346 = vadd.f32 %v2396, %v3325
      %v3347 = vadd.f32 %v2397, %v3328
      %v3348 = vadd.f32 %v2398, %v3331
      %v3349 = vadd.f32 %v2399, %v3334
      %v3350 = vadd.f32 %v2400, %v3337
      %v3351 = vadd.f32 %v2401, %v3340
      %v3352 = vadd.f32 %v2402, %v3343
      %3353 = vst [vmem:[%s660] sm:$0xff] %v3345
      %3354 = vst [vmem:[%s660 + $0x8] sm:$0xff] %v3346
      %3355 = vst [vmem:[%s660 + $0x10] sm:$0xff] %v3347
      %3356 = vst [vmem:[%s660 + $0x18] sm:$0xff] %v3348
      %3357 = vst [vmem:[%s660 + $0x20] sm:$0xff] %v3349
      %3358 = vst [vmem:[%s660 + $0x28] sm:$0xff] %v3350
      %3359 = vst [vmem:[%s660 + $0x30] sm:$0xff] %v3351
      %3360 = vst [vmem:[%s660 + $0x38] sm:$0xff] %v3352
      %s3361 = smul.u32 4, %s28
      %p3362 = scmp.lt.s32.totalorder %s3361, 7
      %s3363 = scalar_select %p3362, %s3361, 7
      %s3364 = smul.addr %s3363, 2
      %s3365 = smul.addr %s3364, 8
      %s3366 = scalar_lea.vmem %s13, %s3365
      // Predicated region
      $region77: #{_lambda_.4} parent=71 // pred_check
        %p3367 = pneg %p392
      $region78: #{_lambda_.4} parent=71 // pred_check_branch
        %3369 = sbr.rel (%p3367) target = $region80
      $region79: #{_lambda_.4} parent=71 // pred_region
        %s3370 = smul.u32 4, %s28
      $region80: #{_lambda_.4} parent=71 // pred_fallthru
        _
    $region72: #{_lambda_.4} parent=5 // pred_fallthru
      _
    %p3371 = scmp.le.s32.totalorder 2, %s19
    // Predicated region
    $region81: #{_lambda_.4} parent=5 // pred_check
      %p3372 = pneg %p3371
    $region82: #{_lambda_.4} parent=5 // pred_check_branch
      %3374 = sbr.rel (%p3372) target = $region84
    $region83: #{_lambda_.4} parent=5 // pred_region
      %s3375 = ssub.s32 %s19, 2
      // Predicated region
      $region85: #{_lambda_.4} parent=83 // pred_check
        %p3376 = pneg %p398
      $region86: #{_lambda_.4} parent=83 // pred_check_branch
        %3378 = sbr.rel (%p3376) target = $region88
      $region87: #{_lambda_.4} parent=83 // pred_region
        %s3379 = smul.u32 4, %s30
        %p3380 = scmp.lt.s32.totalorder %s3379, 7
        %s3381 = scalar_select %p3380, %s3379, 7
        %s3382 = smul.addr %s3381, 2
        %s3383 = smul.addr %s3382, 8
        %s3384 = scalar_lea.vmem %s13, %s3383
      $region88: #{_lambda_.4} parent=83 // pred_fallthru
        _
    $region84: #{_lambda_.4} parent=5 // pred_fallthru
      _
  $region6: #{_lambda_.4} parent=0 // loop_footer
    %s23 = sadd.s32 1, %s19
  $region7: #{_lambda_.4} parent=0 // loop_footer_branch
    %18 = sbr.rel target = $region3
  $region8: #{_lambda_.4} parent=0 // loop_exit
    _

</llo_original>
